<compile_context>
chip_gen: v5e
topology: v5e:2x2
jax: 0.10.0
libtpu: 0.0.40
codegen_flags: <defaults>
</compile_context>

<pallas_src>
import jax
import jax.numpy as jnp
from jax import lax
from jax.experimental import pallas as pl
from jax.experimental.pallas import tpu as pltpu

EPS = 1e-5  # nn.BatchNorm2d default eps


def preact_block_kernel(x_ref, bn1_ref, w1_ref, bn2_ref, w2_ref, out_ref):
    """x_ref/out_ref: (NB, H, W, Cp) f32 (NB images, channels padded to 128-mult).
    bn*_ref: (2, Cp) f32, rows = [scale, shift] (inference BN folded to affine).
    w*_ref:  (3, 3*Cp, Cp) bf16, first dim = ky, K index = kx*Cp + cin."""
    NB, H, W, Cp = x_ref.shape
    Hp = H + 2                      # per-image zero rows at top & bottom
    R = NB * Hp * W                 # rows of the flattened, row-padded slab
    M = NB * H * W                  # matmul M (output pixels per grid step)

    x = x_ref[...]                  # (NB, H, W, Cp) f32

    # Column-validity masks for the +/-1 W shifts.  They kill the wrapped
    # column of the flattened roll (across rows and across images in the
    # block) and simultaneously implement the zero padding at the W borders.
    col = lax.broadcasted_iota(jnp.int32, (1, W, Cp), 1)
    mask_l = (col > 0).astype(jnp.float32).reshape(1, 1, W, Cp)      # col w-1 exists
    mask_r = (col < W - 1).astype(jnp.float32).reshape(1, 1, W, Cp)  # col w+1 exists

    zrow = jnp.zeros((NB, 1, W, Cp), jnp.float32)

    def bn_relu(v, bn_ref):
        scale = bn_ref[0:1, :].reshape(1, 1, 1, Cp)
        shift = bn_ref[1:2, :].reshape(1, 1, 1, Cp)
        return jnp.maximum(v * scale + shift, 0.0)

    def shift_w(a, shift):
        # a: (NB, Hp, W, Cp).  Roll along W through a flat 2-D view (sublane
        # rotate on the XLU).  Cross-row / cross-image wrap contamination
        # lands exactly on the columns the masks zero out afterwards.
        return pltpu.roll(a.reshape(R, Cp), shift, 0).reshape(NB, Hp, W, Cp)

    def conv3x3(y, w_ref):
        # y: (NB, H, W, Cp) f32 post bn+relu.  Zero-pad rows only (one cheap
        # zero tile-row per image); W padding is folded into the masks.
        ypad = jnp.concatenate([zrow, y, zrow], axis=1)              # (NB, Hp, W, Cp)
        s_m1 = (shift_w(ypad, 1) * mask_l).astype(jnp.bfloat16)      # input col w-1 (kx=0)
        s_ct = ypad.astype(jnp.bfloat16)                             # input col w   (kx=1)
        s_p1 = (shift_w(ypad, R - 1) * mask_r).astype(jnp.bfloat16)  # input col w+1 (kx=2)
        slab = jnp.concatenate([s_m1, s_ct, s_p1], axis=-1)          # (NB, Hp, W, 3*Cp)
        acc = None
        for ky in range(3):  # 3 deep MXU matmuls: (M, 3Cp) x (3Cp, Cp), f32 accum
            lhs = slab[:, ky:ky + H].reshape(M, 3 * Cp)
            d = jnp.dot(lhs, w_ref[ky], preferred_element_type=jnp.float32)
            acc = d if acc is None else acc + d
        return acc.reshape(NB, H, W, Cp)

    out1 = conv3x3(bn_relu(x, bn1_ref), w1_ref)
    out2 = conv3x3(bn_relu(out1, bn2_ref), w2_ref)
    out_ref[...] = (out2 + x).astype(out_ref.dtype)   # identity shortcut


def _images_per_step(N, H, W, target_rows=256):
    """Largest divisor of N that keeps the matmul M dim at/below ~target_rows.
    Batching several small images per grid step fills the MXU M dimension and
    amortizes per-grid-step overhead; one image per step already gives
    M >= 256 for early (large-HW) ResNet stages."""
    cap = max(1, target_rows // (H * W))
    nb = 1
    for d in range(1, N + 1):
        if N % d == 0 and d <= cap:
            nb = d
    return nb


def preact_block(x_nchw, bn1, w1_oihw, bn2, w2_oihw):
    """x_nchw: (N,C,H,W) like PyTorch.  bn*: (4,C) = gamma,beta,mean,var.
    w*_oihw: (Cout,Cin,3,3).  stride=1, Cin==Cout (identity shortcut) only."""
    N, C, H, W = x_nchw.shape
    assert w1_oihw.shape == (C, C, 3, 3) and w2_oihw.shape == (C, C, 3, 3)
    assert W % 8 == 0, "W must be a multiple of 8 (sublane-clean in-kernel reshapes)"

    Cp = ((C + 127) // 128) * 128                     # lane-dense channel padding
    NB = _images_per_step(N, H, W)

    x = jnp.transpose(x_nchw, (0, 2, 3, 1))           # NCHW -> NHWC
    xp = jnp.pad(x, ((0, 0), (0, 0), (0, 0), (0, Cp - C)))

    def prep_w(w):
        w = jnp.transpose(w, (2, 3, 1, 0))            # OIHW -> (ky, kx, Cin, Cout)
        w = jnp.pad(w, ((0, 0), (0, 0), (0, Cp - C), (0, Cp - C)))
        return w.reshape(3, 3 * Cp, Cp).astype(jnp.bfloat16)   # bf16 operands to the MXU

    def prep_bn(bn):
        g, b, m, v = bn
        scale = g * lax.rsqrt(v + EPS)
        shift = b - m * scale
        return jnp.stack([jnp.pad(scale, (0, Cp - C)),
                          jnp.pad(shift, (0, Cp - C))]).astype(jnp.float32)

    out = pl.pallas_call(
        preact_block_kernel,
        out_shape=jax.ShapeDtypeStruct((N, H, W, Cp), x.dtype),
        grid=(N // NB,),
        in_specs=[
            pl.BlockSpec((NB, H, W, Cp), lambda n: (n, 0, 0, 0)),
            pl.BlockSpec((2, Cp), lambda n: (0, 0)),
            pl.BlockSpec((3, 3 * Cp, Cp), lambda n: (0, 0, 0)),
            pl.BlockSpec((2, Cp), lambda n: (0, 0)),
            pl.BlockSpec((3, 3 * Cp, Cp), lambda n: (0, 0, 0)),
        ],
        out_specs=pl.BlockSpec((NB, H, W, Cp), lambda n: (n, 0, 0, 0)),
        compiler_params=pltpu.CompilerParams(
            dimension_semantics=("parallel",),        # batch blocks across 2 TCs on v7x
            vmem_limit_bytes=32 * 1024 * 1024),
    )(xp, prep_bn(bn1), prep_w(w1_oihw), prep_bn(bn2), prep_w(w2_oihw))

    return jnp.transpose(out[..., :C], (0, 3, 1, 2))  # drop channel pad, -> NCHW


# ----------------------- pure-JAX reference (NCHW) ------------------------- #
def _bn_relu_ref(x, bn):
    g, b, m, v = bn
    s = g * lax.rsqrt(v + EPS)
    t = b - m * s
    return jax.nn.relu(x * s[None, :, None, None] + t[None, :, None, None])


def _conv3x3_ref(x, w):
    # Same numeric contract as the kernel: bf16 operands, f32 accumulation.
    return lax.conv_general_dilated(
        x.astype(jnp.bfloat16), w.astype(jnp.bfloat16),
        window_strides=(1, 1), padding=((1, 1), (1, 1)),
        dimension_numbers=("NCHW", "OIHW", "NCHW"),
        preferred_element_type=jnp.float32)


def ref_forward(x, bn1, w1, bn2, w2):
    out = _conv3x3_ref(_bn_relu_ref(x, bn1), w1)
    out = _conv3x3_ref(_bn_relu_ref(out, bn2), w2)
    return out + x


def _make_params(key, C):
    ks = jax.random.split(key, 10)
    w1 = 0.1 * jax.random.normal(ks[0], (C, C, 3, 3), jnp.float32)
    w2 = 0.1 * jax.random.normal(ks[1], (C, C, 3, 3), jnp.float32)

    def bn(k0, k1, k2, k3):
        return jnp.stack([
            1.0 + 0.1 * jax.random.normal(k0, (C,)),
            0.1 * jax.random.normal(k1, (C,)),
            0.1 * jax.random.normal(k2, (C,)),
            jax.random.uniform(k3, (C,), minval=0.5, maxval=1.5),
        ]).astype(jnp.float32)

    return bn(ks[2], ks[3], ks[4], ks[5]), w1, bn(ks[6], ks[7], ks[8], ks[9]), w2


if __name__ == "__main__":
    key = jax.random.PRNGKey(0)

    # Case 1: early-stage shape -> one image per grid step (megacore over batch).
    # Case 2: late-stage shape  -> 4 small images batched into one grid step.
    for (N, C, H, W) in [(2, 16, 16, 16), (4, 16, 8, 8)]:
        key, kx, kp = jax.random.split(key, 3)
        x = jax.random.normal(kx, (N, C, H, W), jnp.float32)
        bn1, w1, bn2, w2 = _make_params(kp, C)

        out = jax.block_until_ready(preact_block(x, bn1, w1, bn2, w2))
        ref = jax.block_until_ready(ref_forward(x, bn1, w1, bn2, w2))

        assert out.shape == (N, C, H, W) and out.dtype == jnp.float32
        if not bool(jnp.allclose(out, ref, atol=1e-2, rtol=1e-2)):
            raise AssertionError(
                f"Pallas kernel output mismatch vs JAX reference at {(N, C, H, W)}")

    print("KERNEL_OK")
</pallas_src>

<mosaic_0001>
module attributes {stable_mosaic.version = 11 : i64} {
  func.func @preact_block_kernel(%arg0: i32, %arg1: memref<1x16x16x128xf32, #tpu.memory_space<vmem>>, %arg2: memref<2x128xf32, #tpu.memory_space<vmem>>, %arg3: memref<3x384x128xbf16, #tpu.memory_space<vmem>>, %arg4: memref<2x128xf32, #tpu.memory_space<vmem>>, %arg5: memref<3x384x128xbf16, #tpu.memory_space<vmem>>, %arg6: memref<1x16x16x128xf32, #tpu.memory_space<vmem>>) attributes {dimension_semantics = [#tpu.dimension_semantics<parallel>], iteration_bounds = array<i64: 2>, scalar_prefetch = 0 : i64, scratch_operands = 0 : i64, tpu.core_type = #tpu.core_type<tc>, window_params = [{transform_indices = @transform_0, window_bounds = array<i64: 1, 16, 16, 128>}, {pipeline_mode = #tpu.pipeline_mode<synchronous>, transform_indices = @transform_1, window_bounds = array<i64: 2, 128>}, {pipeline_mode = #tpu.pipeline_mode<synchronous>, transform_indices = @transform_2, window_bounds = array<i64: 3, 384, 128>}, {pipeline_mode = #tpu.pipeline_mode<synchronous>, transform_indices = @transform_3, window_bounds = array<i64: 2, 128>}, {pipeline_mode = #tpu.pipeline_mode<synchronous>, transform_indices = @transform_4, window_bounds = array<i64: 3, 384, 128>}, {transform_indices = @transform_5, window_bounds = array<i64: 1, 16, 16, 128>}]} {
    %c0 = arith.constant 0 : index
    %c0_0 = arith.constant 0 : index
    %c0_1 = arith.constant 0 : index
    %c0_2 = arith.constant 0 : index
    %0 = vector.load %arg1[%c0, %c0_0, %c0_1, %c0_2] : memref<1x16x16x128xf32, #tpu.memory_space<vmem>>, vector<1x16x16x128xf32>
    %1 = tpu.iota {dimensions = array<i32: 1>} : vector<1x16x128xi32>
    %c0_i32 = arith.constant 0 : i32
    %2 = vector.broadcast %c0_i32 : i32 to vector<1x16x128xi32>
    %3 = arith.cmpi sgt, %1, %2 : vector<1x16x128xi32>
    %4 = arith.extui %3 : vector<1x16x128xi1> to vector<1x16x128xi32>
    %5 = arith.sitofp %4 : vector<1x16x128xi32> to vector<1x16x128xf32>
    %6 = vector.shape_cast %5 : vector<1x16x128xf32> to vector<1x1x16x128xf32>
    %c15_i32 = arith.constant 15 : i32
    %7 = vector.broadcast %c15_i32 : i32 to vector<1x16x128xi32>
    %8 = arith.cmpi slt, %1, %7 : vector<1x16x128xi32>
    %9 = arith.extui %8 : vector<1x16x128xi1> to vector<1x16x128xi32>
    %10 = arith.sitofp %9 : vector<1x16x128xi32> to vector<1x16x128xf32>
    %11 = vector.shape_cast %10 : vector<1x16x128xf32> to vector<1x1x16x128xf32>
    %cst = arith.constant 0.000000e+00 : f32
    %12 = vector.broadcast %cst : f32 to vector<1x1x16x128xf32>
    %c0_3 = arith.constant 0 : index
    %c0_4 = arith.constant 0 : index
    %13 = vector.load %arg2[%c0_3, %c0_4] : memref<2x128xf32, #tpu.memory_space<vmem>>, vector<1x128xf32>
    %14 = vector.shape_cast %13 : vector<1x128xf32> to vector<1x1x1x128xf32>
    %c1 = arith.constant 1 : index
    %c0_5 = arith.constant 0 : index
    %15 = vector.load %arg2[%c1, %c0_5] : memref<2x128xf32, #tpu.memory_space<vmem>>, vector<1x128xf32>
    %16 = vector.shape_cast %15 : vector<1x128xf32> to vector<1x1x1x128xf32>
    %17 = vector.broadcast %14 : vector<1x1x1x128xf32> to vector<1x16x16x128xf32>
    %18 = arith.mulf %0, %17 : vector<1x16x16x128xf32>
    %19 = vector.broadcast %16 : vector<1x1x1x128xf32> to vector<1x16x16x128xf32>
    %20 = arith.addf %18, %19 : vector<1x16x16x128xf32>
    %cst_6 = arith.constant 0.000000e+00 : f32
    %21 = vector.broadcast %cst_6 : f32 to vector<1x16x16x128xf32>
    %22 = arith.maximumf %20, %21 : vector<1x16x16x128xf32>
    %23 = tpu.concatenate %12, %22, %12 in 1 : vector<1x1x16x128xf32>, vector<1x16x16x128xf32>, vector<1x1x16x128xf32> -> vector<1x18x16x128xf32>
    %24 = vector.shape_cast %23 : vector<1x18x16x128xf32> to vector<288x128xf32>
    %c1_i32 = arith.constant 1 : i32
    %25 = tpu.dynamic_rotate %24 by %c1_i32 dim 0 : vector<288x128xf32>, i32 -> vector<288x128xf32>
    %26 = vector.shape_cast %25 : vector<288x128xf32> to vector<1x18x16x128xf32>
    %27 = vector.broadcast %6 : vector<1x1x16x128xf32> to vector<1x18x16x128xf32>
    %28 = arith.mulf %26, %27 : vector<1x18x16x128xf32>
    %29 = arith.truncf %28 : vector<1x18x16x128xf32> to vector<1x18x16x128xbf16>
    %30 = arith.truncf %23 : vector<1x18x16x128xf32> to vector<1x18x16x128xbf16>
    %31 = vector.shape_cast %23 : vector<1x18x16x128xf32> to vector<288x128xf32>
    %c287_i32 = arith.constant 287 : i32
    %32 = tpu.dynamic_rotate %31 by %c287_i32 dim 0 : vector<288x128xf32>, i32 -> vector<288x128xf32>
    %33 = vector.shape_cast %32 : vector<288x128xf32> to vector<1x18x16x128xf32>
    %34 = vector.broadcast %11 : vector<1x1x16x128xf32> to vector<1x18x16x128xf32>
    %35 = arith.mulf %33, %34 : vector<1x18x16x128xf32>
    %36 = arith.truncf %35 : vector<1x18x16x128xf32> to vector<1x18x16x128xbf16>
    %37 = tpu.concatenate %29, %30, %36 in 3 : vector<1x18x16x128xbf16>, vector<1x18x16x128xbf16>, vector<1x18x16x128xbf16> -> vector<1x18x16x384xbf16>
    %38 = vector.extract_strided_slice %37 {offsets = [0, 0, 0, 0], sizes = [1, 16, 16, 384], strides = [1, 1, 1, 1]} : vector<1x18x16x384xbf16> to vector<1x16x16x384xbf16>
    %39 = vector.shape_cast %38 : vector<1x16x16x384xbf16> to vector<256x384xbf16>
    %c0_7 = arith.constant 0 : index
    %c0_8 = arith.constant 0 : index
    %c0_9 = arith.constant 0 : index
    %40 = vector.load %arg3[%c0_7, %c0_8, %c0_9] : memref<3x384x128xbf16, #tpu.memory_space<vmem>>, vector<1x384x128xbf16>
    %41 = vector.shape_cast %40 : vector<1x384x128xbf16> to vector<384x128xbf16>
    %cst_10 = arith.constant dense<0.000000e+00> : vector<256x128xf32>
    %42 = tpu.matmul %39, %41, %cst_10 {dimension_numbers = #tpu.dot_dimension_numbers<[1], [0], [0], [1], [0, 0, 1, 1], [], []>} : vector<256x384xbf16>, vector<384x128xbf16>, vector<256x128xf32> -> vector<256x128xf32>
    %43 = vector.extract_strided_slice %37 {offsets = [0, 1, 0, 0], sizes = [1, 16, 16, 384], strides = [1, 1, 1, 1]} : vector<1x18x16x384xbf16> to vector<1x16x16x384xbf16>
    %44 = vector.shape_cast %43 : vector<1x16x16x384xbf16> to vector<256x384xbf16>
    %c1_11 = arith.constant 1 : index
    %c0_12 = arith.constant 0 : index
    %c0_13 = arith.constant 0 : index
    %45 = vector.load %arg3[%c1_11, %c0_12, %c0_13] : memref<3x384x128xbf16, #tpu.memory_space<vmem>>, vector<1x384x128xbf16>
    %46 = vector.shape_cast %45 : vector<1x384x128xbf16> to vector<384x128xbf16>
    %cst_14 = arith.constant dense<0.000000e+00> : vector<256x128xf32>
    %47 = tpu.matmul %44, %46, %cst_14 {dimension_numbers = #tpu.dot_dimension_numbers<[1], [0], [0], [1], [0, 0, 1, 1], [], []>} : vector<256x384xbf16>, vector<384x128xbf16>, vector<256x128xf32> -> vector<256x128xf32>
    %48 = arith.addf %42, %47 : vector<256x128xf32>
    %49 = vector.extract_strided_slice %37 {offsets = [0, 2, 0, 0], sizes = [1, 16, 16, 384], strides = [1, 1, 1, 1]} : vector<1x18x16x384xbf16> to vector<1x16x16x384xbf16>
    %50 = vector.shape_cast %49 : vector<1x16x16x384xbf16> to vector<256x384xbf16>
    %c2 = arith.constant 2 : index
    %c0_15 = arith.constant 0 : index
    %c0_16 = arith.constant 0 : index
    %51 = vector.load %arg3[%c2, %c0_15, %c0_16] : memref<3x384x128xbf16, #tpu.memory_space<vmem>>, vector<1x384x128xbf16>
    %52 = vector.shape_cast %51 : vector<1x384x128xbf16> to vector<384x128xbf16>
    %cst_17 = arith.constant dense<0.000000e+00> : vector<256x128xf32>
    %53 = tpu.matmul %50, %52, %cst_17 {dimension_numbers = #tpu.dot_dimension_numbers<[1], [0], [0], [1], [0, 0, 1, 1], [], []>} : vector<256x384xbf16>, vector<384x128xbf16>, vector<256x128xf32> -> vector<256x128xf32>
    %54 = arith.addf %48, %53 : vector<256x128xf32>
    %55 = vector.shape_cast %54 : vector<256x128xf32> to vector<1x16x16x128xf32>
    %c0_18 = arith.constant 0 : index
    %c0_19 = arith.constant 0 : index
    %56 = vector.load %arg4[%c0_18, %c0_19] : memref<2x128xf32, #tpu.memory_space<vmem>>, vector<1x128xf32>
    %57 = vector.shape_cast %56 : vector<1x128xf32> to vector<1x1x1x128xf32>
    %c1_20 = arith.constant 1 : index
    %c0_21 = arith.constant 0 : index
    %58 = vector.load %arg4[%c1_20, %c0_21] : memref<2x128xf32, #tpu.memory_space<vmem>>, vector<1x128xf32>
    %59 = vector.shape_cast %58 : vector<1x128xf32> to vector<1x1x1x128xf32>
    %60 = vector.broadcast %57 : vector<1x1x1x128xf32> to vector<1x16x16x128xf32>
    %61 = arith.mulf %55, %60 : vector<1x16x16x128xf32>
    %62 = vector.broadcast %59 : vector<1x1x1x128xf32> to vector<1x16x16x128xf32>
    %63 = arith.addf %61, %62 : vector<1x16x16x128xf32>
    %cst_22 = arith.constant 0.000000e+00 : f32
    %64 = vector.broadcast %cst_22 : f32 to vector<1x16x16x128xf32>
    %65 = arith.maximumf %63, %64 : vector<1x16x16x128xf32>
    %66 = tpu.concatenate %12, %65, %12 in 1 : vector<1x1x16x128xf32>, vector<1x16x16x128xf32>, vector<1x1x16x128xf32> -> vector<1x18x16x128xf32>
    %67 = vector.shape_cast %66 : vector<1x18x16x128xf32> to vector<288x128xf32>
    %c1_i32_23 = arith.constant 1 : i32
    %68 = tpu.dynamic_rotate %67 by %c1_i32_23 dim 0 : vector<288x128xf32>, i32 -> vector<288x128xf32>
    %69 = vector.shape_cast %68 : vector<288x128xf32> to vector<1x18x16x128xf32>
    %70 = vector.broadcast %6 : vector<1x1x16x128xf32> to vector<1x18x16x128xf32>
    %71 = arith.mulf %69, %70 : vector<1x18x16x128xf32>
    %72 = arith.truncf %71 : vector<1x18x16x128xf32> to vector<1x18x16x128xbf16>
    %73 = arith.truncf %66 : vector<1x18x16x128xf32> to vector<1x18x16x128xbf16>
    %74 = vector.shape_cast %66 : vector<1x18x16x128xf32> to vector<288x128xf32>
    %c287_i32_24 = arith.constant 287 : i32
    %75 = tpu.dynamic_rotate %74 by %c287_i32_24 dim 0 : vector<288x128xf32>, i32 -> vector<288x128xf32>
    %76 = vector.shape_cast %75 : vector<288x128xf32> to vector<1x18x16x128xf32>
    %77 = vector.broadcast %11 : vector<1x1x16x128xf32> to vector<1x18x16x128xf32>
    %78 = arith.mulf %76, %77 : vector<1x18x16x128xf32>
    %79 = arith.truncf %78 : vector<1x18x16x128xf32> to vector<1x18x16x128xbf16>
    %80 = tpu.concatenate %72, %73, %79 in 3 : vector<1x18x16x128xbf16>, vector<1x18x16x128xbf16>, vector<1x18x16x128xbf16> -> vector<1x18x16x384xbf16>
    %81 = vector.extract_strided_slice %80 {offsets = [0, 0, 0, 0], sizes = [1, 16, 16, 384], strides = [1, 1, 1, 1]} : vector<1x18x16x384xbf16> to vector<1x16x16x384xbf16>
    %82 = vector.shape_cast %81 : vector<1x16x16x384xbf16> to vector<256x384xbf16>
    %c0_25 = arith.constant 0 : index
    %c0_26 = arith.constant 0 : index
    %c0_27 = arith.constant 0 : index
    %83 = vector.load %arg5[%c0_25, %c0_26, %c0_27] : memref<3x384x128xbf16, #tpu.memory_space<vmem>>, vector<1x384x128xbf16>
    %84 = vector.shape_cast %83 : vector<1x384x128xbf16> to vector<384x128xbf16>
    %cst_28 = arith.constant dense<0.000000e+00> : vector<256x128xf32>
    %85 = tpu.matmul %82, %84, %cst_28 {dimension_numbers = #tpu.dot_dimension_numbers<[1], [0], [0], [1], [0, 0, 1, 1], [], []>} : vector<256x384xbf16>, vector<384x128xbf16>, vector<256x128xf32> -> vector<256x128xf32>
    %86 = vector.extract_strided_slice %80 {offsets = [0, 1, 0, 0], sizes = [1, 16, 16, 384], strides = [1, 1, 1, 1]} : vector<1x18x16x384xbf16> to vector<1x16x16x384xbf16>
    %87 = vector.shape_cast %86 : vector<1x16x16x384xbf16> to vector<256x384xbf16>
    %c1_29 = arith.constant 1 : index
    %c0_30 = arith.constant 0 : index
    %c0_31 = arith.constant 0 : index
    %88 = vector.load %arg5[%c1_29, %c0_30, %c0_31] : memref<3x384x128xbf16, #tpu.memory_space<vmem>>, vector<1x384x128xbf16>
    %89 = vector.shape_cast %88 : vector<1x384x128xbf16> to vector<384x128xbf16>
    %cst_32 = arith.constant dense<0.000000e+00> : vector<256x128xf32>
    %90 = tpu.matmul %87, %89, %cst_32 {dimension_numbers = #tpu.dot_dimension_numbers<[1], [0], [0], [1], [0, 0, 1, 1], [], []>} : vector<256x384xbf16>, vector<384x128xbf16>, vector<256x128xf32> -> vector<256x128xf32>
    %91 = arith.addf %85, %90 : vector<256x128xf32>
    %92 = vector.extract_strided_slice %80 {offsets = [0, 2, 0, 0], sizes = [1, 16, 16, 384], strides = [1, 1, 1, 1]} : vector<1x18x16x384xbf16> to vector<1x16x16x384xbf16>
    %93 = vector.shape_cast %92 : vector<1x16x16x384xbf16> to vector<256x384xbf16>
    %c2_33 = arith.constant 2 : index
    %c0_34 = arith.constant 0 : index
    %c0_35 = arith.constant 0 : index
    %94 = vector.load %arg5[%c2_33, %c0_34, %c0_35] : memref<3x384x128xbf16, #tpu.memory_space<vmem>>, vector<1x384x128xbf16>
    %95 = vector.shape_cast %94 : vector<1x384x128xbf16> to vector<384x128xbf16>
    %cst_36 = arith.constant dense<0.000000e+00> : vector<256x128xf32>
    %96 = tpu.matmul %93, %95, %cst_36 {dimension_numbers = #tpu.dot_dimension_numbers<[1], [0], [0], [1], [0, 0, 1, 1], [], []>} : vector<256x384xbf16>, vector<384x128xbf16>, vector<256x128xf32> -> vector<256x128xf32>
    %97 = arith.addf %91, %96 : vector<256x128xf32>
    %98 = vector.shape_cast %97 : vector<256x128xf32> to vector<1x16x16x128xf32>
    %99 = arith.addf %98, %0 : vector<1x16x16x128xf32>
    %c0_37 = arith.constant 0 : index
    %c0_38 = arith.constant 0 : index
    %c0_39 = arith.constant 0 : index
    %c0_40 = arith.constant 0 : index
    %100 = vector.load %arg6[%c0_37, %c0_38, %c0_39, %c0_40] : memref<1x16x16x128xf32, #tpu.memory_space<vmem>>, vector<1x16x16x128xf32>
    tpu.vector_store %arg6[%c0_37, %c0_38, %c0_39, %c0_40], %99 {strides = array<i32>} : memref<1x16x16x128xf32, #tpu.memory_space<vmem>>, vector<1x16x16x128xf32>,
    return
  }
  func.func @transform_0(%arg0: i32) -> (i32, i32, i32, i32) {
    %c0_i32 = arith.constant 0 : i32
    %c0_i32_0 = arith.constant 0 : i32
    %c0_i32_1 = arith.constant 0 : i32
    %c0_i32_2 = arith.constant 0 : i32
    return %arg0, %c0_i32, %c0_i32_0, %c0_i32_1 : i32, i32, i32, i32
  }
  func.func @transform_1(%arg0: i32) -> (i32, i32) {
    %c0_i32 = arith.constant 0 : i32
    %c0_i32_0 = arith.constant 0 : i32
    %c0_i32_1 = arith.constant 0 : i32
    return %c0_i32, %c0_i32_0 : i32, i32
  }
  func.func @transform_2(%arg0: i32) -> (i32, i32, i32) {
    %c0_i32 = arith.constant 0 : i32
    %c0_i32_0 = arith.constant 0 : i32
    %c0_i32_1 = arith.constant 0 : i32
    %c0_i32_2 = arith.constant 0 : i32
    return %c0_i32, %c0_i32_0, %c0_i32_1 : i32, i32, i32
  }
  func.func @transform_3(%arg0: i32) -> (i32, i32) {
    %c0_i32 = arith.constant 0 : i32
    %c0_i32_0 = arith.constant 0 : i32
    %c0_i32_1 = arith.constant 0 : i32
    return %c0_i32, %c0_i32_0 : i32, i32
  }
  func.func @transform_4(%arg0: i32) -> (i32, i32, i32) {
    %c0_i32 = arith.constant 0 : i32
    %c0_i32_0 = arith.constant 0 : i32
    %c0_i32_1 = arith.constant 0 : i32
    %c0_i32_2 = arith.constant 0 : i32
    return %c0_i32, %c0_i32_0, %c0_i32_1 : i32, i32, i32
  }
  func.func @transform_5(%arg0: i32) -> (i32, i32, i32, i32) {
    %c0_i32 = arith.constant 0 : i32
    %c0_i32_0 = arith.constant 0 : i32
    %c0_i32_1 = arith.constant 0 : i32
    %c0_i32_2 = arith.constant 0 : i32
    return %arg0, %c0_i32, %c0_i32_0, %c0_i32_1 : i32, i32, i32, i32
  }
}

</mosaic_0001>

<llo_original>
// kernel: tpu_custom_call.1
$region0: #{tpu_custom_call.1}
  #allocation0 [shape = 'u32[]', space=smem, size = 0x4, offset = 0x4, fixed_abs, tag = 'smem constant byte address 0x4 - core index']
  #allocation1 [shape = 'u32[72,128]{1,0:T(1,128)}', space=vmem, size = 0x9000, scoped, tag = 'internal scratch']
  %s0 = inlined_call_operand.hbm [shape: f32[2,16,16,128], index: 0, kind: input, shape index: {}]
  %s1 = inlined_call_operand.hbm [shape: f32[2,128], index: 1, kind: input, shape index: {}]
  %s2 = inlined_call_operand.hbm [shape: bf16[3,384,128], index: 2, kind: input, shape index: {}]
  %s3 = inlined_call_operand.vmem [shape: f32[2,128], index: 3, kind: input, shape index: {}]
  %s4 = inlined_call_operand.hbm [shape: bf16[3,384,128], index: 4, kind: input, shape index: {}]
  %s5 = inlined_call_operand.hbm [shape: f32[2,16,16,128], index: 5, kind: output, shape index: {}]
  %s6 = sld [smem:[#allocation0]]
  $region69: #{tpu_custom_call.1} parent=0
    _
  %s8 = ssub.s32 1, %s6
  %s9 = scalar_select 0, %s8, %s6
  $region1: #{tpu_custom_call.1} parent=0
    #allocation2 [shape = 'u8[262144]{0}', space=vmem, size = 0x40000, scoped, tag = 'input window, operand 0']
    #allocation3 [shape = 's32[2]{0}', space=sflag, size = 0x8, scoped, tag = 'scoped memory for tpu_custom_call.1']
    #allocation4 [shape = 's32[2]{0}', space=sflag, size = 0x8, scoped, tag = 'scoped memory for tpu_custom_call.1']
    #allocation5 [shape = 'u8[1024]{0}', space=vmem, size = 0x400, scoped, tag = 'input window, operand 1, single buffered']
    #allocation6 [shape = 's32[1]{0}', space=sflag, size = 0x4, scoped, tag = 'scoped memory for tpu_custom_call.1']
    #allocation7 [shape = 'u8[294912]{0}', space=vmem, size = 0x48000, scoped, tag = 'input window, operand 2, single buffered']
    #allocation8 [shape = 'u8[294912]{0}', space=vmem, size = 0x48000, scoped, tag = 'input window, operand 4, single buffered']
    #allocation9 [shape = 's32[1]{0}', space=sflag, size = 0x4, scoped, tag = 'scoped memory for tpu_custom_call.1']
    #allocation10 [shape = 'u8[262144]{0}', space=vmem, size = 0x40000, scoped, tag = 'output window, operand 0']
    %10 = vsyncpa [#allocation3], 0
    %s11 = scalar_lea.sflag [#allocation3], 1
    %12 = vsyncpa %s11, 0
    %13 = vsyncpa [#allocation6], 0
    %14 = vsyncpa [#allocation9], 0
    %15 = vsyncpa [#allocation4], 0
    %s16 = scalar_lea.sflag [#allocation4], 1
    %17 = vsyncpa %s16, 0
    loop: start=0, step=1, limit=4
    $region2: #{tpu_custom_call.1} parent=1 // loop_pre_header
      _
    $region3: #{tpu_custom_call.1} parent=1 // loop_header
      %s19 = sphi 0, %s23
      %p20 = scmp.ge.s32.totalorder %s19, 4
      %s29 = sphi 0, %s31
      %s32 = sphi 0, %s29
      %s33 = sphi 0, %s32
      %s49 = sphi 0, %s33
      %s53 = sphi 0, %s53
      %s55 = sphi 0, %s53
      %s56 = sphi 0, %s55
      %s70 = sphi 0, %s56
      %s74 = sphi 0, %s74
      %s76 = sphi 0, %s74
      %s77 = sphi 0, %s76
      %s91 = sphi 0, %s77
      %s95 = sphi 0, %s95
      %s97 = sphi 0, %s95
      %s98 = sphi 0, %s97
      %s112 = sphi 0, %s98
      %s116 = sphi 0, %s116
      %s118 = sphi 0, %s116
      %s119 = sphi 0, %s118
      %s133 = sphi 0, %s119
      %s139 = sphi 0, %s141
      %s142 = sphi 0, %s139
      %s143 = sphi 0, %s142
      %s159 = sphi 0, %s143
    $region4: #{tpu_custom_call.1} parent=1 // loop_header_branch
      %22 = sbr.rel (%p20) target = $region8
    $region5: #{tpu_custom_call.1} parent=1 // loop_body
      %s24 = ssub.s32 %s19, 1
      %s25 = ssub.s32 %s19, 2
      %s26 = sadd.s32 %s19, 1
      %s27 = ssub.s32 %s19, %s26
      %p28 = scmp.eq.s32.totalorder %s27, 0
      %s30 = sadd.s32 %s29, 1
      %s31 = scalar_select %p28, %s29, %s30
      %p34 = pneg %p28
      %p35 = scmp.eq.s32.totalorder %s19, 1
      %p36 = por %p34, %p35
      %p37 = scmp.ne.s32.totalorder %s29, %s32
      %p38 = scmp.eq.s32.totalorder %s19, 0
      %p39 = por %p37, %p38
      %p40 = scmp.ne.s32.totalorder %s29, %s32
      %p41 = scmp.eq.s32.totalorder %s24, 1
      %p42 = por %p40, %p41
      %p43 = scmp.ne.s32.totalorder %s32, %s33
      %p44 = scmp.eq.s32.totalorder %s24, 0
      %p45 = por %p43, %p44
      %p46 = scmp.ne.s32.totalorder %s32, %s33
      %p47 = scmp.eq.s32.totalorder %s25, 1
      %p48 = por %p46, %p47
      %p50 = scmp.ne.s32.totalorder %s33, %s49
      %p51 = scmp.eq.s32.totalorder %s25, 0
      %p52 = por %p50, %p51
      %s54 = sadd.s32 %s53, 1
      %p57 = scmp.eq.s32.totalorder %s19, 1
      %p58 = scmp.ne.s32.totalorder %s53, %s55
      %p59 = scmp.eq.s32.totalorder %s19, 0
      %p60 = por %p58, %p59
      %p61 = scmp.ne.s32.totalorder %s53, %s55
      %p62 = scmp.eq.s32.totalorder %s24, 1
      %p63 = por %p61, %p62
      %p64 = scmp.ne.s32.totalorder %s55, %s56
      %p65 = scmp.eq.s32.totalorder %s24, 0
      %p66 = por %p64, %p65
      %p67 = scmp.ne.s32.totalorder %s55, %s56
      %p68 = scmp.eq.s32.totalorder %s25, 1
      %p69 = por %p67, %p68
      %p71 = scmp.ne.s32.totalorder %s56, %s70
      %p72 = scmp.eq.s32.totalorder %s25, 0
      %p73 = por %p71, %p72
      %s75 = sadd.s32 %s74, 1
      %p78 = scmp.eq.s32.totalorder %s19, 1
      %p79 = scmp.ne.s32.totalorder %s74, %s76
      %p80 = scmp.eq.s32.totalorder %s19, 0
      %p81 = por %p79, %p80
      %p82 = scmp.ne.s32.totalorder %s74, %s76
      %p83 = scmp.eq.s32.totalorder %s24, 1
      %p84 = por %p82, %p83
      %p85 = scmp.ne.s32.totalorder %s76, %s77
      %p86 = scmp.eq.s32.totalorder %s24, 0
      %p87 = por %p85, %p86
      %p88 = scmp.ne.s32.totalorder %s76, %s77
      %p89 = scmp.eq.s32.totalorder %s25, 1
      %p90 = por %p88, %p89
      %p92 = scmp.ne.s32.totalorder %s77, %s91
      %p93 = scmp.eq.s32.totalorder %s25, 0
      %p94 = por %p92, %p93
      %s96 = sadd.s32 %s95, 1
      %p99 = scmp.eq.s32.totalorder %s19, 1
      %p100 = scmp.ne.s32.totalorder %s95, %s97
      %p101 = scmp.eq.s32.totalorder %s19, 0
      %p102 = por %p100, %p101
      %p103 = scmp.ne.s32.totalorder %s95, %s97
      %p104 = scmp.eq.s32.totalorder %s24, 1
      %p105 = por %p103, %p104
      %p106 = scmp.ne.s32.totalorder %s97, %s98
      %p107 = scmp.eq.s32.totalorder %s24, 0
      %p108 = por %p106, %p107
      %p109 = scmp.ne.s32.totalorder %s97, %s98
      %p110 = scmp.eq.s32.totalorder %s25, 1
      %p111 = por %p109, %p110
      %p113 = scmp.ne.s32.totalorder %s98, %s112
      %p114 = scmp.eq.s32.totalorder %s25, 0
      %p115 = por %p113, %p114
      %s117 = sadd.s32 %s116, 1
      %p120 = scmp.eq.s32.totalorder %s19, 1
      %p121 = scmp.ne.s32.totalorder %s116, %s118
      %p122 = scmp.eq.s32.totalorder %s19, 0
      %p123 = por %p121, %p122
      %p124 = scmp.ne.s32.totalorder %s116, %s118
      %p125 = scmp.eq.s32.totalorder %s24, 1
      %p126 = por %p124, %p125
      %p127 = scmp.ne.s32.totalorder %s118, %s119
      %p128 = scmp.eq.s32.totalorder %s24, 0
      %p129 = por %p127, %p128
      %p130 = scmp.ne.s32.totalorder %s118, %s119
      %p131 = scmp.eq.s32.totalorder %s25, 1
      %p132 = por %p130, %p131
      %p134 = scmp.ne.s32.totalorder %s119, %s133
      %p135 = scmp.eq.s32.totalorder %s25, 0
      %p136 = por %p134, %p135
      %s137 = ssub.s32 %s19, %s26
      %p138 = scmp.eq.s32.totalorder %s137, 0
      %s140 = sadd.s32 %s139, 1
      %s141 = scalar_select %p138, %s139, %s140
      %p144 = pneg %p138
      %p145 = scmp.eq.s32.totalorder %s19, 1
      %p146 = por %p144, %p145
      %p147 = scmp.ne.s32.totalorder %s139, %s142
      %p148 = scmp.eq.s32.totalorder %s19, 0
      %p149 = por %p147, %p148
      %p150 = scmp.ne.s32.totalorder %s139, %s142
      %p151 = scmp.eq.s32.totalorder %s24, 1
      %p152 = por %p150, %p151
      %p153 = scmp.ne.s32.totalorder %s142, %s143
      %p154 = scmp.eq.s32.totalorder %s24, 0
      %p155 = por %p153, %p154
      %p156 = scmp.ne.s32.totalorder %s142, %s143
      %p157 = scmp.eq.s32.totalorder %s25, 1
      %p158 = por %p156, %p157
      %p160 = scmp.ne.s32.totalorder %s143, %s159
      %p161 = scmp.eq.s32.totalorder %s25, 0
      %p162 = por %p160, %p161
      %p163 = scmp.le.s32.totalorder 1, %s19
      %p164 = scmp.lt.s32.totalorder %s19, 3
      %p165 = pnand %p163, %p164
      %p166 = pneg %p165
      // Predicated region
      $region9: #{tpu_custom_call.1} parent=5 // pred_check
        _
      $region10: #{tpu_custom_call.1} parent=5 // pred_check_branch
        %168 = sbr.rel (%p165) target = $region12
      $region11: #{tpu_custom_call.1} parent=5 // pred_region
        %s169 = ssub.s32 %s19, 1
        // Predicated region
        $region13: #{tpu_custom_call.1} parent=11 // pred_check
          %p170 = pneg %p66
        $region14: #{tpu_custom_call.1} parent=11 // pred_check_branch
          %172 = sbr.rel (%p170) target = $region16
        $region15: #{tpu_custom_call.1} parent=11 // pred_region
          %174 = vsyncadd [#allocation6], 0
          %s176 = sshll.u32 %s1, 4
          %s177 = int_to_ptr.hbm [resolvable:$true] %s176
          %s178 = sshll.u32 [#allocation5], 4
          %s179 = int_to_ptr.vmem [resolvable:$true] %s178
          %181 = dma.hbm_to_vmem [thread:$0]  %s177, 32, %s179, [#allocation6]
        $region16: #{tpu_custom_call.1} parent=11 // pred_fallthru
          _
        // Predicated region
        $region17: #{tpu_custom_call.1} parent=11 // pred_check
          %p182 = pneg %p87
        $region18: #{tpu_custom_call.1} parent=11 // pred_check_branch
          %184 = sbr.rel (%p182) target = $region20
        $region19: #{tpu_custom_call.1} parent=11 // pred_region
          %186 = vsyncadd [#allocation6], 0
          %s187 = sshll.u32 %s2, 4
          %s188 = int_to_ptr.hbm [resolvable:$true] %s187
          %s189 = sshll.u32 [#allocation7], 4
          %s190 = int_to_ptr.vmem [resolvable:$true] %s189
          %195 = dma.hbm_to_vmem [thread:$0]  %s188, 9216, %s190, [#allocation6], 64, 64, 4
        $region20: #{tpu_custom_call.1} parent=11 // pred_fallthru
          _
        // Predicated region
        $region21: #{tpu_custom_call.1} parent=11 // pred_check
          %p196 = pneg %p108
        $region22: #{tpu_custom_call.1} parent=11 // pred_check_branch
          %198 = sbr.rel (%p196) target = $region24
        $region23: #{tpu_custom_call.1} parent=11 // pred_region
          _
        $region24: #{tpu_custom_call.1} parent=11 // pred_fallthru
          _
        // Predicated region
        $region25: #{tpu_custom_call.1} parent=11 // pred_check
          %p199 = pneg %p129
        $region26: #{tpu_custom_call.1} parent=11 // pred_check_branch
          %201 = sbr.rel (%p199) target = $region28
        $region27: #{tpu_custom_call.1} parent=11 // pred_region
          %203 = vsyncadd [#allocation9], 0
          %s204 = sshll.u32 %s4, 4
          %s205 = int_to_ptr.hbm [resolvable:$true] %s204
          %s206 = sshll.u32 [#allocation8], 4
          %s207 = int_to_ptr.vmem [resolvable:$true] %s206
          %212 = dma.hbm_to_vmem [thread:$0]  %s205, 9216, %s207, [#allocation9], 64, 64, 4
        $region28: #{tpu_custom_call.1} parent=11 // pred_fallthru
          _
      $region12: #{tpu_custom_call.1} parent=5 // pred_fallthru
        _
      %p213 = scmp.lt.s32.totalorder %s19, 2
      // Predicated region
      $region29: #{tpu_custom_call.1} parent=5 // pred_check
        %p214 = pneg %p213
      $region30: #{tpu_custom_call.1} parent=5 // pred_check_branch
        %216 = sbr.rel (%p214) target = $region32
      $region31: #{tpu_custom_call.1} parent=5 // pred_region
        // Predicated region
        $region33: #{tpu_custom_call.1} parent=31 // pred_check
          %p217 = pneg %p39
        $region34: #{tpu_custom_call.1} parent=31 // pred_check_branch
          %219 = sbr.rel (%p217) target = $region36
        $region35: #{tpu_custom_call.1} parent=31 // pred_region
          %s220 = sand.u32 %s29, 1
          %s221 = scalar_lea.sflag [#allocation3], %s220
          %s222 = sand.u32 %s29, 1
          %s223 = smul.addr %s222, 256
          %s224 = scalar_lea.vmem [#allocation2], %s223
          %226 = vsyncadd %s221, 0
          %s227 = smul.addr %s19, 32
          %s228 = smul.addr %s227, 8
          %s229 = scalar_lea.hbm %s0, %s228
          %s230 = sshll.u32 %s229, 4
          %s231 = int_to_ptr.hbm [resolvable:$true] %s230
          %s232 = sshll.u32 %s224, 4
          %s233 = int_to_ptr.vmem [resolvable:$true] %s232
          %238 = dma.hbm_to_vmem [thread:$0]  %s231, 4096, %s233, %s221, 128, 128, 8
        $region36: #{tpu_custom_call.1} parent=31 // pred_fallthru
          _
      $region32: #{tpu_custom_call.1} parent=5 // pred_fallthru
        _
      %p239 = scmp.le.s32.totalorder 1, %s19
      %p240 = scmp.lt.s32.totalorder %s19, 3
      %p241 = pnand %p239, %p240
      %p242 = pneg %p241
      // Predicated region
      $region37: #{tpu_custom_call.1} parent=5 // pred_check
        _
      $region38: #{tpu_custom_call.1} parent=5 // pred_check_branch
        %244 = sbr.rel (%p241) target = $region40
      $region39: #{tpu_custom_call.1} parent=5 // pred_region
        %s245 = ssub.s32 %s19, 1
        %s246 = sand.u32 %s32, 1
        %s247 = scalar_lea.sflag [#allocation3], %s246
        %s248 = sand.u32 %s32, 1
        %s249 = smul.addr %s248, 256
        %s250 = scalar_lea.vmem [#allocation2], %s249
        // Predicated region
        $region41: #{tpu_custom_call.1} parent=39 // pred_check
          %p251 = pneg %p45
        $region42: #{tpu_custom_call.1} parent=39 // pred_check_branch
          %253 = sbr.rel (%p251) target = $region44
        $region43: #{tpu_custom_call.1} parent=39 // pred_region
          %255 = dma.done %s247, 4096
        $region44: #{tpu_custom_call.1} parent=39 // pred_fallthru
          _
        // Predicated region
        $region45: #{tpu_custom_call.1} parent=39 // pred_check
          %p256 = pneg %p66
        $region46: #{tpu_custom_call.1} parent=39 // pred_check_branch
          %258 = sbr.rel (%p256) target = $region48
        $region47: #{tpu_custom_call.1} parent=39 // pred_region
          %260 = dma.done [#allocation6], 32
        $region48: #{tpu_custom_call.1} parent=39 // pred_fallthru
          _
        // Predicated region
        $region49: #{tpu_custom_call.1} parent=39 // pred_check
          %p261 = pneg %p87
        $region50: #{tpu_custom_call.1} parent=39 // pred_check_branch
          %263 = sbr.rel (%p261) target = $region52
        $region51: #{tpu_custom_call.1} parent=39 // pred_region
          %265 = dma.done [#allocation6], 9216
        $region52: #{tpu_custom_call.1} parent=39 // pred_fallthru
          _
        // Predicated region
        $region53: #{tpu_custom_call.1} parent=39 // pred_check
          %p266 = pneg %p129
        $region54: #{tpu_custom_call.1} parent=39 // pred_check_branch
          %268 = sbr.rel (%p266) target = $region56
        $region55: #{tpu_custom_call.1} parent=39 // pred_region
          %270 = dma.done [#allocation9], 9216
        $region56: #{tpu_custom_call.1} parent=39 // pred_fallthru
          _
        %s271 = sand.u32 %s32, 1
        %s272 = scalar_lea.sflag [#allocation3], %s271
        %s273 = sand.u32 %s32, 1
        %s274 = smul.addr %s273, 256
        %s275 = scalar_lea.vmem [#allocation2], %s274
        %p276 = pneg %p45
        %p277 = pneg %p42
        %p278 = pneg %p66
        %p279 = pneg %p63
        %p280 = pneg %p87
        %p281 = pneg %p84
        %p282 = pneg %p108
        %p283 = pneg %p105
        %p284 = pneg %p129
        %p285 = pneg %p126
        %p286 = pneg %p155
        %p287 = pneg %p152
        %s288 = sand.u32 %s142, 1
        %s289 = scalar_lea.sflag [#allocation4], %s288
        %s290 = sand.u32 %s142, 1
        %s291 = smul.addr %s290, 256
        %s292 = scalar_lea.vmem [#allocation10], %s291
        %v293 = vld [vmem:[%s250] sm:$0xff]
        %v294 = vld [vmem:[%s250 + $0x8] sm:$0xff]
        %v295 = vld [vmem:[%s250 + $0x10] sm:$0xff]
        %v296 = vld [vmem:[%s250 + $0x18] sm:$0xff]
        %v297 = vld [vmem:[%s250 + $0x20] sm:$0xff]
        %v298 = vld [vmem:[%s250 + $0x28] sm:$0xff]
        %v299 = vld [vmem:[%s250 + $0x30] sm:$0xff]
        %v300 = vld [vmem:[%s250 + $0x38] sm:$0xff]
        %v301 = vld [vmem:[%s250 + $0x40] sm:$0xff]
        %v302 = vld [vmem:[%s250 + $0x48] sm:$0xff]
        %v303 = vld [vmem:[%s250 + $0x50] sm:$0xff]
        %v304 = vld [vmem:[%s250 + $0x58] sm:$0xff]
        %v305 = vld [vmem:[%s250 + $0x60] sm:$0xff]
        %v306 = vld [vmem:[%s250 + $0x68] sm:$0xff]
        %v307 = vld [vmem:[%s250 + $0x70] sm:$0xff]
        %v308 = vld [vmem:[%s250 + $0x78] sm:$0xff]
        %v309 = vld [vmem:[%s250 + $0x80] sm:$0xff]
        %v310 = vld [vmem:[%s250 + $0x88] sm:$0xff]
        %v311 = vld [vmem:[%s250 + $0x90] sm:$0xff]
        %v312 = vld [vmem:[%s250 + $0x98] sm:$0xff]
        %v313 = vld [vmem:[%s250 + $0xa0] sm:$0xff]
        %v314 = vld [vmem:[%s250 + $0xa8] sm:$0xff]
        %v315 = vld [vmem:[%s250 + $0xb0] sm:$0xff]
        %v316 = vld [vmem:[%s250 + $0xb8] sm:$0xff]
        %v317 = vld [vmem:[%s250 + $0xc0] sm:$0xff]
        %v318 = vld [vmem:[%s250 + $0xc8] sm:$0xff]
        %v319 = vld [vmem:[%s250 + $0xd0] sm:$0xff]
        %v320 = vld [vmem:[%s250 + $0xd8] sm:$0xff]
        %v321 = vld [vmem:[%s250 + $0xe0] sm:$0xff]
        %v322 = vld [vmem:[%s250 + $0xe8] sm:$0xff]
        %v323 = vld [vmem:[%s250 + $0xf0] sm:$0xff]
        %v324 = vld [vmem:[%s250 + $0xf8] sm:$0xff]
        %v325 = vlaneseq
        %v326 = vshrl.u32 %v325, 7
        %v327 = vadd.s32 %v326, 8
        %vm328 = vcmp.gt.s32.totalorder %v326, 0
        %vm329 = vcmp.gt.s32.totalorder %v327, 0
        %v330 = vsel %vm328, 1, 0
        %v331 = vsel %vm329, 1, 0
        %v332 = vcvt.s32.f32 %v330
        %v333 = vcvt.s32.f32 %v331
        %vm334 = vcmp.lt.s32.totalorder %v326, 15
        %vm335 = vcmp.lt.s32.totalorder %v327, 15
        %v336 = vsel %vm334, 1, 0
        %v337 = vsel %vm335, 1, 0
        %v338 = vcvt.s32.f32 %v336
        %v339 = vcvt.s32.f32 %v337
        %v340 = vld [vmem:[#allocation5] sm:$0x1]
        %v341 = vld [vmem:[#allocation5 + $0x1] sm:$0x1]
        %v342 = vperm.slane %v340, 0
        %v343 = vmul.f32 %v293, %v342
        %v344 = vmul.f32 %v294, %v342
        %v345 = vmul.f32 %v295, %v342
        %v346 = vmul.f32 %v296, %v342
        %v347 = vmul.f32 %v297, %v342
        %v348 = vmul.f32 %v298, %v342
        %v349 = vmul.f32 %v299, %v342
        %v350 = vmul.f32 %v300, %v342
        %v351 = vmul.f32 %v301, %v342
        %v352 = vmul.f32 %v302, %v342
        %v353 = vmul.f32 %v303, %v342
        %v354 = vmul.f32 %v304, %v342
        %v355 = vmul.f32 %v305, %v342
        %v356 = vmul.f32 %v306, %v342
        %v357 = vmul.f32 %v307, %v342
        %v358 = vmul.f32 %v308, %v342
        %v359 = vmul.f32 %v309, %v342
        %v360 = vmul.f32 %v310, %v342
        %v361 = vmul.f32 %v311, %v342
        %v362 = vmul.f32 %v312, %v342
        %v363 = vmul.f32 %v313, %v342
        %v364 = vmul.f32 %v314, %v342
        %v365 = vmul.f32 %v315, %v342
        %v366 = vmul.f32 %v316, %v342
        %v367 = vmul.f32 %v317, %v342
        %v368 = vmul.f32 %v318, %v342
        %v369 = vmul.f32 %v319, %v342
        %v370 = vmul.f32 %v320, %v342
        %v371 = vmul.f32 %v321, %v342
        %v372 = vmul.f32 %v322, %v342
        %v373 = vmul.f32 %v323, %v342
        %v374 = vmul.f32 %v324, %v342
        %v375 = vperm.slane %v341, 0
        %v376 = vadd.f32 %v343, %v375
        %v377 = vadd.f32 %v344, %v375
        %v378 = vadd.f32 %v345, %v375
        %v379 = vadd.f32 %v346, %v375
        %v380 = vadd.f32 %v347, %v375
        %v381 = vadd.f32 %v348, %v375
        %v382 = vadd.f32 %v349, %v375
        %v383 = vadd.f32 %v350, %v375
        %v384 = vadd.f32 %v351, %v375
        %v385 = vadd.f32 %v352, %v375
        %v386 = vadd.f32 %v353, %v375
        %v387 = vadd.f32 %v354, %v375
        %v388 = vadd.f32 %v355, %v375
        %v389 = vadd.f32 %v356, %v375
        %v390 = vadd.f32 %v357, %v375
        %v391 = vadd.f32 %v358, %v375
        %v392 = vadd.f32 %v359, %v375
        %v393 = vadd.f32 %v360, %v375
        %v394 = vadd.f32 %v361, %v375
        %v395 = vadd.f32 %v362, %v375
        %v396 = vadd.f32 %v363, %v375
        %v397 = vadd.f32 %v364, %v375
        %v398 = vadd.f32 %v365, %v375
        %v399 = vadd.f32 %v366, %v375
        %v400 = vadd.f32 %v367, %v375
        %v401 = vadd.f32 %v368, %v375
        %v402 = vadd.f32 %v369, %v375
        %v403 = vadd.f32 %v370, %v375
        %v404 = vadd.f32 %v371, %v375
        %v405 = vadd.f32 %v372, %v375
        %v406 = vadd.f32 %v373, %v375
        %v407 = vadd.f32 %v374, %v375
        %v408 = vmax.f32 %v376, 0.0
        %v409 = vmax.f32 %v377, 0.0
        %v410 = vmax.f32 %v378, 0.0
        %v411 = vmax.f32 %v379, 0.0
        %v412 = vmax.f32 %v380, 0.0
        %v413 = vmax.f32 %v381, 0.0
        %v414 = vmax.f32 %v382, 0.0
        %v415 = vmax.f32 %v383, 0.0
        %v416 = vmax.f32 %v384, 0.0
        %v417 = vmax.f32 %v385, 0.0
        %v418 = vmax.f32 %v386, 0.0
        %v419 = vmax.f32 %v387, 0.0
        %v420 = vmax.f32 %v388, 0.0
        %v421 = vmax.f32 %v389, 0.0
        %v422 = vmax.f32 %v390, 0.0
        %v423 = vmax.f32 %v391, 0.0
        %v424 = vmax.f32 %v392, 0.0
        %v425 = vmax.f32 %v393, 0.0
        %v426 = vmax.f32 %v394, 0.0
        %v427 = vmax.f32 %v395, 0.0
        %v428 = vmax.f32 %v396, 0.0
        %v429 = vmax.f32 %v397, 0.0
        %v430 = vmax.f32 %v398, 0.0
        %v431 = vmax.f32 %v399, 0.0
        %v432 = vmax.f32 %v400, 0.0
        %v433 = vmax.f32 %v401, 0.0
        %v434 = vmax.f32 %v402, 0.0
        %v435 = vmax.f32 %v403, 0.0
        %v436 = vmax.f32 %v404, 0.0
        %v437 = vmax.f32 %v405, 0.0
        %v438 = vmax.f32 %v406, 0.0
        %v439 = vmax.f32 %v407, 0.0
        %v440 = vrot.slane %v408, 7
        %v441 = vrot.slane %v409, 7
        %v442 = vrot.slane %v410, 7
        %v443 = vrot.slane %v411, 7
        %v444 = vrot.slane %v412, 7
        %v445 = vrot.slane %v413, 7
        %v446 = vrot.slane %v414, 7
        %v447 = vrot.slane %v415, 7
        %v448 = vrot.slane %v416, 7
        %v449 = vrot.slane %v417, 7
        %v450 = vrot.slane %v418, 7
        %v451 = vrot.slane %v419, 7
        %v452 = vrot.slane %v420, 7
        %v453 = vrot.slane %v421, 7
        %v454 = vrot.slane %v422, 7
        %v455 = vrot.slane %v423, 7
        %v456 = vrot.slane %v424, 7
        %v457 = vrot.slane %v425, 7
        %v458 = vrot.slane %v426, 7
        %v459 = vrot.slane %v427, 7
        %v460 = vrot.slane %v428, 7
        %v461 = vrot.slane %v429, 7
        %v462 = vrot.slane %v430, 7
        %v463 = vrot.slane %v431, 7
        %v464 = vrot.slane %v432, 7
        %v465 = vrot.slane %v433, 7
        %v466 = vrot.slane %v434, 7
        %v467 = vrot.slane %v435, 7
        %v468 = vrot.slane %v436, 7
        %v469 = vrot.slane %v437, 7
        %v470 = vrot.slane %v438, 7
        %v471 = vrot.slane %v439, 7
        %vm472 = vcmp.lt.s32.totalorder %v326, 1
        %v473 = vsel %vm472, %v471, 0.0
        %v474 = vsel %vm472, %v470, %v471
        %v475 = vsel %vm472, %v469, %v470
        %v476 = vsel %vm472, %v468, %v469
        %v477 = vsel %vm472, %v467, %v468
        %v478 = vsel %vm472, %v466, %v467
        %v479 = vsel %vm472, %v465, %v466
        %v480 = vsel %vm472, %v464, %v465
        %v481 = vsel %vm472, %v463, %v464
        %v482 = vsel %vm472, %v462, %v463
        %v483 = vsel %vm472, %v461, %v462
        %v484 = vsel %vm472, %v460, %v461
        %v485 = vsel %vm472, %v459, %v460
        %v486 = vsel %vm472, %v458, %v459
        %v487 = vsel %vm472, %v457, %v458
        %v488 = vsel %vm472, %v456, %v457
        %v489 = vsel %vm472, %v455, %v456
        %v490 = vsel %vm472, %v454, %v455
        %v491 = vsel %vm472, %v453, %v454
        %v492 = vsel %vm472, %v452, %v453
        %v493 = vsel %vm472, %v451, %v452
        %v494 = vsel %vm472, %v450, %v451
        %v495 = vsel %vm472, %v449, %v450
        %v496 = vsel %vm472, %v448, %v449
        %v497 = vsel %vm472, %v447, %v448
        %v498 = vsel %vm472, %v446, %v447
        %v499 = vsel %vm472, %v445, %v446
        %v500 = vsel %vm472, %v444, %v445
        %v501 = vsel %vm472, %v443, %v444
        %v502 = vsel %vm472, %v442, %v443
        %v503 = vsel %vm472, %v441, %v442
        %v504 = vsel %vm472, %v440, %v441
        %v505 = vsel %vm472, 0.0, %v440
        %v506 = vmul.f32 0.0, %v332
        %v507 = vmul.f32 0.0, %v333
        %v508 = vmul.f32 %v505, %v332
        %v509 = vmul.f32 %v504, %v333
        %v510 = vmul.f32 %v503, %v332
        %v511 = vmul.f32 %v502, %v333
        %v512 = vmul.f32 %v501, %v332
        %v513 = vmul.f32 %v500, %v333
        %v514 = vmul.f32 %v499, %v332
        %v515 = vmul.f32 %v498, %v333
        %v516 = vmul.f32 %v497, %v332
        %v517 = vmul.f32 %v496, %v333
        %v518 = vmul.f32 %v495, %v332
        %v519 = vmul.f32 %v494, %v333
        %v520 = vmul.f32 %v493, %v332
        %v521 = vmul.f32 %v492, %v333
        %v522 = vmul.f32 %v491, %v332
        %v523 = vmul.f32 %v490, %v333
        %v524 = vmul.f32 %v489, %v332
        %v525 = vmul.f32 %v488, %v333
        %v526 = vmul.f32 %v487, %v332
        %v527 = vmul.f32 %v486, %v333
        %v528 = vmul.f32 %v485, %v332
        %v529 = vmul.f32 %v484, %v333
        %v530 = vmul.f32 %v483, %v332
        %v531 = vmul.f32 %v482, %v333
        %v532 = vmul.f32 %v481, %v332
        %v533 = vmul.f32 %v480, %v333
        %v534 = vmul.f32 %v479, %v332
        %v535 = vmul.f32 %v478, %v333
        %v536 = vmul.f32 %v477, %v332
        %v537 = vmul.f32 %v476, %v333
        %v538 = vmul.f32 %v475, %v332
        %v539 = vmul.f32 %v474, %v333
        %v540 = vmul.f32 %v473, %v332
        %v541 = vpack.c.bf16 %v506, %v506
        %v542 = vpack.c.bf16 %v507, %v507
        %v543 = vpack.c.bf16 %v508, %v508
        %v544 = vpack.c.bf16 %v509, %v509
        %v545 = vpack.c.bf16 %v510, %v510
        %v546 = vpack.c.bf16 %v511, %v511
        %v547 = vpack.c.bf16 %v512, %v512
        %v548 = vpack.c.bf16 %v513, %v513
        %v549 = vpack.c.bf16 %v514, %v514
        %v550 = vpack.c.bf16 %v515, %v515
        %v551 = vpack.c.bf16 %v516, %v516
        %v552 = vpack.c.bf16 %v517, %v517
        %v553 = vpack.c.bf16 %v518, %v518
        %v554 = vpack.c.bf16 %v519, %v519
        %v555 = vpack.c.bf16 %v520, %v520
        %v556 = vpack.c.bf16 %v521, %v521
        %v557 = vpack.c.bf16 %v522, %v522
        %v558 = vpack.c.bf16 %v523, %v523
        %v559 = vpack.c.bf16 %v524, %v524
        %v560 = vpack.c.bf16 %v525, %v525
        %v561 = vpack.c.bf16 %v526, %v526
        %v562 = vpack.c.bf16 %v527, %v527
        %v563 = vpack.c.bf16 %v528, %v528
        %v564 = vpack.c.bf16 %v529, %v529
        %v565 = vpack.c.bf16 %v530, %v530
        %v566 = vpack.c.bf16 %v531, %v531
        %v567 = vpack.c.bf16 %v532, %v532
        %v568 = vpack.c.bf16 %v533, %v533
        %v569 = vpack.c.bf16 %v534, %v534
        %v570 = vpack.c.bf16 %v535, %v535
        %v571 = vpack.c.bf16 %v536, %v536
        %v572 = vpack.c.bf16 %v537, %v537
        %v573 = vpack.c.bf16 %v538, %v538
        %v574 = vpack.c.bf16 %v539, %v539
        %v575 = vpack.c.bf16 %v540, %v540
        %v576 = vpack.c.bf16 0.0, 0.0
        %v577 = vpack.c.bf16 %v408, %v408
        %v578 = vpack.c.bf16 %v409, %v409
        %v579 = vpack.c.bf16 %v410, %v410
        %v580 = vpack.c.bf16 %v411, %v411
        %v581 = vpack.c.bf16 %v412, %v412
        %v582 = vpack.c.bf16 %v413, %v413
        %v583 = vpack.c.bf16 %v414, %v414
        %v584 = vpack.c.bf16 %v415, %v415
        %v585 = vpack.c.bf16 %v416, %v416
        %v586 = vpack.c.bf16 %v417, %v417
        %v587 = vpack.c.bf16 %v418, %v418
        %v588 = vpack.c.bf16 %v419, %v419
        %v589 = vpack.c.bf16 %v420, %v420
        %v590 = vpack.c.bf16 %v421, %v421
        %v591 = vpack.c.bf16 %v422, %v422
        %v592 = vpack.c.bf16 %v423, %v423
        %v593 = vpack.c.bf16 %v424, %v424
        %v594 = vpack.c.bf16 %v425, %v425
        %v595 = vpack.c.bf16 %v426, %v426
        %v596 = vpack.c.bf16 %v427, %v427
        %v597 = vpack.c.bf16 %v428, %v428
        %v598 = vpack.c.bf16 %v429, %v429
        %v599 = vpack.c.bf16 %v430, %v430
        %v600 = vpack.c.bf16 %v431, %v431
        %v601 = vpack.c.bf16 %v432, %v432
        %v602 = vpack.c.bf16 %v433, %v433
        %v603 = vpack.c.bf16 %v434, %v434
        %v604 = vpack.c.bf16 %v435, %v435
        %v605 = vpack.c.bf16 %v436, %v436
        %v606 = vpack.c.bf16 %v437, %v437
        %v607 = vpack.c.bf16 %v438, %v438
        %v608 = vpack.c.bf16 %v439, %v439
        %v609 = vrot.slane %v408, 1
        %v610 = vrot.slane %v409, 1
        %v611 = vrot.slane %v410, 1
        %v612 = vrot.slane %v411, 1
        %v613 = vrot.slane %v412, 1
        %v614 = vrot.slane %v413, 1
        %v615 = vrot.slane %v414, 1
        %v616 = vrot.slane %v415, 1
        %v617 = vrot.slane %v416, 1
        %v618 = vrot.slane %v417, 1
        %v619 = vrot.slane %v418, 1
        %v620 = vrot.slane %v419, 1
        %v621 = vrot.slane %v420, 1
        %v622 = vrot.slane %v421, 1
        %v623 = vrot.slane %v422, 1
        %v624 = vrot.slane %v423, 1
        %v625 = vrot.slane %v424, 1
        %v626 = vrot.slane %v425, 1
        %v627 = vrot.slane %v426, 1
        %v628 = vrot.slane %v427, 1
        %v629 = vrot.slane %v428, 1
        %v630 = vrot.slane %v429, 1
        %v631 = vrot.slane %v430, 1
        %v632 = vrot.slane %v431, 1
        %v633 = vrot.slane %v432, 1
        %v634 = vrot.slane %v433, 1
        %v635 = vrot.slane %v434, 1
        %v636 = vrot.slane %v435, 1
        %v637 = vrot.slane %v436, 1
        %v638 = vrot.slane %v437, 1
        %v639 = vrot.slane %v438, 1
        %v640 = vrot.slane %v439, 1
        %vm641 = vcmp.lt.s32.totalorder %v326, 7
        %v642 = vsel %vm641, %v640, 0.0
        %v643 = vsel %vm641, %v639, %v640
        %v644 = vsel %vm641, %v638, %v639
        %v645 = vsel %vm641, %v637, %v638
        %v646 = vsel %vm641, %v636, %v637
        %v647 = vsel %vm641, %v635, %v636
        %v648 = vsel %vm641, %v634, %v635
        %v649 = vsel %vm641, %v633, %v634
        %v650 = vsel %vm641, %v632, %v633
        %v651 = vsel %vm641, %v631, %v632
        %v652 = vsel %vm641, %v630, %v631
        %v653 = vsel %vm641, %v629, %v630
        %v654 = vsel %vm641, %v628, %v629
        %v655 = vsel %vm641, %v627, %v628
        %v656 = vsel %vm641, %v626, %v627
        %v657 = vsel %vm641, %v625, %v626
        %v658 = vsel %vm641, %v624, %v625
        %v659 = vsel %vm641, %v623, %v624
        %v660 = vsel %vm641, %v622, %v623
        %v661 = vsel %vm641, %v621, %v622
        %v662 = vsel %vm641, %v620, %v621
        %v663 = vsel %vm641, %v619, %v620
        %v664 = vsel %vm641, %v618, %v619
        %v665 = vsel %vm641, %v617, %v618
        %v666 = vsel %vm641, %v616, %v617
        %v667 = vsel %vm641, %v615, %v616
        %v668 = vsel %vm641, %v614, %v615
        %v669 = vsel %vm641, %v613, %v614
        %v670 = vsel %vm641, %v612, %v613
        %v671 = vsel %vm641, %v611, %v612
        %v672 = vsel %vm641, %v610, %v611
        %v673 = vsel %vm641, %v609, %v610
        %v674 = vsel %vm641, 0.0, %v609
        %v675 = vmul.f32 0.0, %v338
        %v676 = vmul.f32 %v674, %v339
        %v677 = vmul.f32 %v673, %v338
        %v678 = vmul.f32 %v672, %v339
        %v679 = vmul.f32 %v671, %v338
        %v680 = vmul.f32 %v670, %v339
        %v681 = vmul.f32 %v669, %v338
        %v682 = vmul.f32 %v668, %v339
        %v683 = vmul.f32 %v667, %v338
        %v684 = vmul.f32 %v666, %v339
        %v685 = vmul.f32 %v665, %v338
        %v686 = vmul.f32 %v664, %v339
        %v687 = vmul.f32 %v663, %v338
        %v688 = vmul.f32 %v662, %v339
        %v689 = vmul.f32 %v661, %v338
        %v690 = vmul.f32 %v660, %v339
        %v691 = vmul.f32 %v659, %v338
        %v692 = vmul.f32 %v658, %v339
        %v693 = vmul.f32 %v657, %v338
        %v694 = vmul.f32 %v656, %v339
        %v695 = vmul.f32 %v655, %v338
        %v696 = vmul.f32 %v654, %v339
        %v697 = vmul.f32 %v653, %v338
        %v698 = vmul.f32 %v652, %v339
        %v699 = vmul.f32 %v651, %v338
        %v700 = vmul.f32 %v650, %v339
        %v701 = vmul.f32 %v649, %v338
        %v702 = vmul.f32 %v648, %v339
        %v703 = vmul.f32 %v647, %v338
        %v704 = vmul.f32 %v646, %v339
        %v705 = vmul.f32 %v645, %v338
        %v706 = vmul.f32 %v644, %v339
        %v707 = vmul.f32 %v643, %v338
        %v708 = vmul.f32 %v642, %v339
        %v709 = vmul.f32 0.0, %v339
        %v710 = vpack.c.bf16 %v675, %v675
        %v711 = vpack.c.bf16 %v676, %v676
        %v712 = vpack.c.bf16 %v677, %v677
        %v713 = vpack.c.bf16 %v678, %v678
        %v714 = vpack.c.bf16 %v679, %v679
        %v715 = vpack.c.bf16 %v680, %v680
        %v716 = vpack.c.bf16 %v681, %v681
        %v717 = vpack.c.bf16 %v682, %v682
        %v718 = vpack.c.bf16 %v683, %v683
        %v719 = vpack.c.bf16 %v684, %v684
        %v720 = vpack.c.bf16 %v685, %v685
        %v721 = vpack.c.bf16 %v686, %v686
        %v722 = vpack.c.bf16 %v687, %v687
        %v723 = vpack.c.bf16 %v688, %v688
        %v724 = vpack.c.bf16 %v689, %v689
        %v725 = vpack.c.bf16 %v690, %v690
        %v726 = vpack.c.bf16 %v691, %v691
        %v727 = vpack.c.bf16 %v692, %v692
        %v728 = vpack.c.bf16 %v693, %v693
        %v729 = vpack.c.bf16 %v694, %v694
        %v730 = vpack.c.bf16 %v695, %v695
        %v731 = vpack.c.bf16 %v696, %v696
        %v732 = vpack.c.bf16 %v697, %v697
        %v733 = vpack.c.bf16 %v698, %v698
        %v734 = vpack.c.bf16 %v699, %v699
        %v735 = vpack.c.bf16 %v700, %v700
        %v736 = vpack.c.bf16 %v701, %v701
        %v737 = vpack.c.bf16 %v702, %v702
        %v738 = vpack.c.bf16 %v703, %v703
        %v739 = vpack.c.bf16 %v704, %v704
        %v740 = vpack.c.bf16 %v705, %v705
        %v741 = vpack.c.bf16 %v706, %v706
        %v742 = vpack.c.bf16 %v707, %v707
        %v743 = vpack.c.bf16 %v708, %v708
        %v744 = vpack.c.bf16 %v709, %v709
        %v780 = vunpack.c.l.b16 %v541
        %v781 = vunpack.c.l.b16 %v542
        %v782 = vunpack.c.l.b16 %v543
        %v783 = vunpack.c.l.b16 %v544
        %v784 = vunpack.c.l.b16 %v545
        %v785 = vunpack.c.l.b16 %v546
        %v786 = vunpack.c.l.b16 %v547
        %v787 = vunpack.c.l.b16 %v548
        %v788 = vunpack.c.l.b16 %v549
        %v789 = vunpack.c.l.b16 %v550
        %v790 = vunpack.c.l.b16 %v551
        %v791 = vunpack.c.l.b16 %v552
        %v792 = vunpack.c.l.b16 %v553
        %v793 = vunpack.c.l.b16 %v554
        %v794 = vunpack.c.l.b16 %v555
        %v795 = vunpack.c.l.b16 %v556
        %v796 = vunpack.c.l.b16 %v557
        %v797 = vunpack.c.l.b16 %v558
        %v798 = vunpack.c.l.b16 %v559
        %v799 = vunpack.c.l.b16 %v560
        %v800 = vunpack.c.l.b16 %v561
        %v801 = vunpack.c.l.b16 %v562
        %v802 = vunpack.c.l.b16 %v563
        %v803 = vunpack.c.l.b16 %v564
        %v804 = vunpack.c.l.b16 %v565
        %v805 = vunpack.c.l.b16 %v566
        %v806 = vunpack.c.l.b16 %v567
        %v807 = vunpack.c.l.b16 %v568
        %v808 = vunpack.c.l.b16 %v569
        %v809 = vunpack.c.l.b16 %v570
        %v810 = vunpack.c.l.b16 %v571
        %v811 = vunpack.c.l.b16 %v572
        %v812 = vunpack.c.l.b16 %v573
        %v813 = vunpack.c.l.b16 %v574
        %v814 = vunpack.c.l.b16 %v575
        %v815 = vpack.c.b16 %v781, %v780
        %v816 = vpack.c.b16 %v783, %v782
        %v817 = vpack.c.b16 %v785, %v784
        %v818 = vpack.c.b16 %v787, %v786
        %v819 = vpack.c.b16 %v789, %v788
        %v820 = vpack.c.b16 %v791, %v790
        %v821 = vpack.c.b16 %v793, %v792
        %v822 = vpack.c.b16 %v795, %v794
        %v823 = vpack.c.b16 %v797, %v796
        %v824 = vpack.c.b16 %v799, %v798
        %v825 = vpack.c.b16 %v801, %v800
        %v826 = vpack.c.b16 %v803, %v802
        %v827 = vpack.c.b16 %v805, %v804
        %v828 = vpack.c.b16 %v807, %v806
        %v829 = vpack.c.b16 %v809, %v808
        %v830 = vpack.c.b16 %v811, %v810
        %v831 = vpack.c.b16 %v813, %v812
        %v832 = vpack.c.b16 %v781, %v814
        %v884 = vunpack.c.l.b16 %v576
        %v885 = vunpack.c.l.b16 %v577
        %v886 = vunpack.c.l.b16 %v578
        %v887 = vunpack.c.l.b16 %v579
        %v888 = vunpack.c.l.b16 %v580
        %v889 = vunpack.c.l.b16 %v581
        %v890 = vunpack.c.l.b16 %v582
        %v891 = vunpack.c.l.b16 %v583
        %v892 = vunpack.c.l.b16 %v584
        %v893 = vunpack.c.l.b16 %v585
        %v894 = vunpack.c.l.b16 %v586
        %v895 = vunpack.c.l.b16 %v587
        %v896 = vunpack.c.l.b16 %v588
        %v897 = vunpack.c.l.b16 %v589
        %v898 = vunpack.c.l.b16 %v590
        %v899 = vunpack.c.l.b16 %v591
        %v900 = vunpack.c.l.b16 %v592
        %v901 = vunpack.c.l.b16 %v593
        %v902 = vunpack.c.l.b16 %v594
        %v903 = vunpack.c.l.b16 %v595
        %v904 = vunpack.c.l.b16 %v596
        %v905 = vunpack.c.l.b16 %v597
        %v906 = vunpack.c.l.b16 %v598
        %v907 = vunpack.c.l.b16 %v599
        %v908 = vunpack.c.l.b16 %v600
        %v909 = vunpack.c.l.b16 %v601
        %v910 = vunpack.c.l.b16 %v602
        %v911 = vunpack.c.l.b16 %v603
        %v912 = vunpack.c.l.b16 %v604
        %v913 = vunpack.c.l.b16 %v605
        %v914 = vunpack.c.l.b16 %v606
        %v915 = vunpack.c.l.b16 %v607
        %v916 = vunpack.c.l.b16 %v608
        %v917 = vpack.c.b16 %v884, %v884
        %v918 = vpack.c.b16 %v886, %v885
        %v919 = vpack.c.b16 %v888, %v887
        %v920 = vpack.c.b16 %v890, %v889
        %v921 = vpack.c.b16 %v892, %v891
        %v922 = vpack.c.b16 %v894, %v893
        %v923 = vpack.c.b16 %v896, %v895
        %v924 = vpack.c.b16 %v898, %v897
        %v925 = vpack.c.b16 %v900, %v899
        %v926 = vpack.c.b16 %v902, %v901
        %v927 = vpack.c.b16 %v904, %v903
        %v928 = vpack.c.b16 %v906, %v905
        %v929 = vpack.c.b16 %v908, %v907
        %v930 = vpack.c.b16 %v910, %v909
        %v931 = vpack.c.b16 %v912, %v911
        %v932 = vpack.c.b16 %v914, %v913
        %v933 = vpack.c.b16 %v916, %v915
        %v986 = vunpack.c.l.b16 %v710
        %v987 = vunpack.c.l.b16 %v711
        %v988 = vunpack.c.l.b16 %v712
        %v989 = vunpack.c.l.b16 %v713
        %v990 = vunpack.c.l.b16 %v714
        %v991 = vunpack.c.l.b16 %v715
        %v992 = vunpack.c.l.b16 %v716
        %v993 = vunpack.c.l.b16 %v717
        %v994 = vunpack.c.l.b16 %v718
        %v995 = vunpack.c.l.b16 %v719
        %v996 = vunpack.c.l.b16 %v720
        %v997 = vunpack.c.l.b16 %v721
        %v998 = vunpack.c.l.b16 %v722
        %v999 = vunpack.c.l.b16 %v723
        %v1000 = vunpack.c.l.b16 %v724
        %v1001 = vunpack.c.l.b16 %v725
        %v1002 = vunpack.c.l.b16 %v726
        %v1003 = vunpack.c.l.b16 %v727
        %v1004 = vunpack.c.l.b16 %v728
        %v1005 = vunpack.c.l.b16 %v729
        %v1006 = vunpack.c.l.b16 %v730
        %v1007 = vunpack.c.l.b16 %v731
        %v1008 = vunpack.c.l.b16 %v732
        %v1009 = vunpack.c.l.b16 %v733
        %v1010 = vunpack.c.l.b16 %v734
        %v1011 = vunpack.c.l.b16 %v735
        %v1012 = vunpack.c.l.b16 %v736
        %v1013 = vunpack.c.l.b16 %v737
        %v1014 = vunpack.c.l.b16 %v738
        %v1015 = vunpack.c.l.b16 %v739
        %v1016 = vunpack.c.l.b16 %v740
        %v1017 = vunpack.c.l.b16 %v741
        %v1018 = vunpack.c.l.b16 %v742
        %v1019 = vunpack.c.l.b16 %v743
        %v1020 = vunpack.c.l.b16 %v744
        %v1021 = vpack.c.b16 %v987, %v986
        %v1022 = vpack.c.b16 %v989, %v988
        %v1023 = vpack.c.b16 %v991, %v990
        %v1024 = vpack.c.b16 %v993, %v992
        %v1025 = vpack.c.b16 %v995, %v994
        %v1026 = vpack.c.b16 %v997, %v996
        %v1027 = vpack.c.b16 %v999, %v998
        %v1028 = vpack.c.b16 %v1001, %v1000
        %v1029 = vpack.c.b16 %v1003, %v1002
        %v1030 = vpack.c.b16 %v1005, %v1004
        %v1031 = vpack.c.b16 %v1007, %v1006
        %v1032 = vpack.c.b16 %v1009, %v1008
        %v1033 = vpack.c.b16 %v1011, %v1010
        %v1034 = vpack.c.b16 %v1013, %v1012
        %v1035 = vpack.c.b16 %v1015, %v1014
        %v1036 = vpack.c.b16 %v1017, %v1016
        %v1037 = vpack.c.b16 %v1019, %v1018
        %v1038 = vpack.c.b16 %v1020, %v986
        %v1057 = vld [vmem:[#allocation7] sm:$0xf]
        %v1058 = vld [vmem:[#allocation7 + $0x4] sm:$0xf]
        %v1059 = vld [vmem:[#allocation7 + $0x8] sm:$0xf]
        %v1060 = vld [vmem:[#allocation7 + $0xc] sm:$0xf]
        %v1061 = vld [vmem:[#allocation7 + $0x10] sm:$0xf]
        %v1062 = vld [vmem:[#allocation7 + $0x14] sm:$0xf]
        %v1063 = vld [vmem:[#allocation7 + $0x18] sm:$0xf]
        %v1064 = vld [vmem:[#allocation7 + $0x1c] sm:$0xf]
        %v1065 = vld [vmem:[#allocation7 + $0x20] sm:$0xf]
        %v1066 = vld [vmem:[#allocation7 + $0x24] sm:$0xf]
        %v1067 = vld [vmem:[#allocation7 + $0x28] sm:$0xf]
        %v1068 = vld [vmem:[#allocation7 + $0x2c] sm:$0xf]
        %v1069 = vld [vmem:[#allocation7 + $0x30] sm:$0xf]
        %v1070 = vld [vmem:[#allocation7 + $0x34] sm:$0xf]
        %v1071 = vld [vmem:[#allocation7 + $0x38] sm:$0xf]
        %v1072 = vld [vmem:[#allocation7 + $0x3c] sm:$0xf]
        %v1073 = vld [vmem:[#allocation7 + $0x40] sm:$0xf]
        %v1074 = vld [vmem:[#allocation7 + $0x44] sm:$0xf]
        %v1075 = vld [vmem:[#allocation7 + $0x48] sm:$0xf]
        %v1076 = vld [vmem:[#allocation7 + $0x4c] sm:$0xf]
        %v1077 = vld [vmem:[#allocation7 + $0x50] sm:$0xf]
        %v1078 = vld [vmem:[#allocation7 + $0x54] sm:$0xf]
        %v1079 = vld [vmem:[#allocation7 + $0x58] sm:$0xf]
        %v1080 = vld [vmem:[#allocation7 + $0x5c] sm:$0xf]
        %v1081 = vld [vmem:[#allocation7 + $0x60] sm:$0xf]
        %v1082 = vld [vmem:[#allocation7 + $0x64] sm:$0xf]
        %v1083 = vld [vmem:[#allocation7 + $0x68] sm:$0xf]
        %v1084 = vld [vmem:[#allocation7 + $0x6c] sm:$0xf]
        %v1085 = vld [vmem:[#allocation7 + $0x70] sm:$0xf]
        %v1086 = vld [vmem:[#allocation7 + $0x74] sm:$0xf]
        %v1087 = vld [vmem:[#allocation7 + $0x78] sm:$0xf]
        %v1088 = vld [vmem:[#allocation7 + $0x7c] sm:$0xf]
        %v1089 = vld [vmem:[#allocation7 + $0x80] sm:$0xf]
        %v1090 = vld [vmem:[#allocation7 + $0x84] sm:$0xf]
        %v1091 = vld [vmem:[#allocation7 + $0x88] sm:$0xf]
        %v1092 = vld [vmem:[#allocation7 + $0x8c] sm:$0xf]
        %v1093 = vld [vmem:[#allocation7 + $0x90] sm:$0xf]
        %v1094 = vld [vmem:[#allocation7 + $0x94] sm:$0xf]
        %v1095 = vld [vmem:[#allocation7 + $0x98] sm:$0xf]
        %v1096 = vld [vmem:[#allocation7 + $0x9c] sm:$0xf]
        %v1097 = vld [vmem:[#allocation7 + $0xa0] sm:$0xf]
        %v1098 = vld [vmem:[#allocation7 + $0xa4] sm:$0xf]
        %v1099 = vld [vmem:[#allocation7 + $0xa8] sm:$0xf]
        %v1100 = vld [vmem:[#allocation7 + $0xac] sm:$0xf]
        %v1101 = vld [vmem:[#allocation7 + $0xb0] sm:$0xf]
        %v1102 = vld [vmem:[#allocation7 + $0xb4] sm:$0xf]
        %v1103 = vld [vmem:[#allocation7 + $0xb8] sm:$0xf]
        %v1104 = vld [vmem:[#allocation7 + $0xbc] sm:$0xf]
        %s1105 = scalar_lea.vmem [#allocation7], 192
        %v1106 = vld [vmem:[%s1105] sm:$0xf]
        %v1107 = vld [vmem:[%s1105 + $0x4] sm:$0xf]
        %v1108 = vld [vmem:[%s1105 + $0x8] sm:$0xf]
        %v1109 = vld [vmem:[%s1105 + $0xc] sm:$0xf]
        %v1110 = vld [vmem:[%s1105 + $0x10] sm:$0xf]
        %v1111 = vld [vmem:[%s1105 + $0x14] sm:$0xf]
        %v1112 = vld [vmem:[%s1105 + $0x18] sm:$0xf]
        %v1113 = vld [vmem:[%s1105 + $0x1c] sm:$0xf]
        %v1114 = vld [vmem:[%s1105 + $0x20] sm:$0xf]
        %v1115 = vld [vmem:[%s1105 + $0x24] sm:$0xf]
        %v1116 = vld [vmem:[%s1105 + $0x28] sm:$0xf]
        %v1117 = vld [vmem:[%s1105 + $0x2c] sm:$0xf]
        %v1118 = vld [vmem:[%s1105 + $0x30] sm:$0xf]
        %v1119 = vld [vmem:[%s1105 + $0x34] sm:$0xf]
        %v1120 = vld [vmem:[%s1105 + $0x38] sm:$0xf]
        %v1121 = vld [vmem:[%s1105 + $0x3c] sm:$0xf]
        %v1122 = vld [vmem:[%s1105 + $0x40] sm:$0xf]
        %v1123 = vld [vmem:[%s1105 + $0x44] sm:$0xf]
        %v1124 = vld [vmem:[%s1105 + $0x48] sm:$0xf]
        %v1125 = vld [vmem:[%s1105 + $0x4c] sm:$0xf]
        %v1126 = vld [vmem:[%s1105 + $0x50] sm:$0xf]
        %v1127 = vld [vmem:[%s1105 + $0x54] sm:$0xf]
        %v1128 = vld [vmem:[%s1105 + $0x58] sm:$0xf]
        %v1129 = vld [vmem:[%s1105 + $0x5c] sm:$0xf]
        %v1130 = vld [vmem:[%s1105 + $0x60] sm:$0xf]
        %v1131 = vld [vmem:[%s1105 + $0x64] sm:$0xf]
        %v1132 = vld [vmem:[%s1105 + $0x68] sm:$0xf]
        %v1133 = vld [vmem:[%s1105 + $0x6c] sm:$0xf]
        %v1134 = vld [vmem:[%s1105 + $0x70] sm:$0xf]
        %v1135 = vld [vmem:[%s1105 + $0x74] sm:$0xf]
        %v1136 = vld [vmem:[%s1105 + $0x78] sm:$0xf]
        %v1137 = vld [vmem:[%s1105 + $0x7c] sm:$0xf]
        %v1138 = vld [vmem:[%s1105 + $0x80] sm:$0xf]
        %v1139 = vld [vmem:[%s1105 + $0x84] sm:$0xf]
        %v1140 = vld [vmem:[%s1105 + $0x88] sm:$0xf]
        %v1141 = vld [vmem:[%s1105 + $0x8c] sm:$0xf]
        %v1142 = vld [vmem:[%s1105 + $0x90] sm:$0xf]
        %v1143 = vld [vmem:[%s1105 + $0x94] sm:$0xf]
        %v1144 = vld [vmem:[%s1105 + $0x98] sm:$0xf]
        %v1145 = vld [vmem:[%s1105 + $0x9c] sm:$0xf]
        %v1146 = vld [vmem:[%s1105 + $0xa0] sm:$0xf]
        %v1147 = vld [vmem:[%s1105 + $0xa4] sm:$0xf]
        %v1148 = vld [vmem:[%s1105 + $0xa8] sm:$0xf]
        %v1149 = vld [vmem:[%s1105 + $0xac] sm:$0xf]
        %v1150 = vld [vmem:[%s1105 + $0xb0] sm:$0xf]
        %v1151 = vld [vmem:[%s1105 + $0xb4] sm:$0xf]
        %v1152 = vld [vmem:[%s1105 + $0xb8] sm:$0xf]
        %v1153 = vld [vmem:[%s1105 + $0xbc] sm:$0xf]
        %v1202 = vunpack.c.l.b16 %v1106
        %v1203 = vunpack.c.l.b16 %v1107
        %v1204 = vunpack.c.l.b16 %v1108
        %v1205 = vunpack.c.l.b16 %v1109
        %v1206 = vunpack.c.l.b16 %v1110
        %v1207 = vunpack.c.l.b16 %v1111
        %v1208 = vunpack.c.l.b16 %v1112
        %v1209 = vunpack.c.l.b16 %v1113
        %v1210 = vunpack.c.l.b16 %v1114
        %v1211 = vunpack.c.l.b16 %v1115
        %v1212 = vunpack.c.l.b16 %v1116
        %v1213 = vunpack.c.l.b16 %v1117
        %v1214 = vunpack.c.l.b16 %v1118
        %v1215 = vunpack.c.l.b16 %v1119
        %v1216 = vunpack.c.l.b16 %v1120
        %v1217 = vunpack.c.l.b16 %v1121
        %v1218 = vunpack.c.l.b16 %v1122
        %v1219 = vunpack.c.l.b16 %v1123
        %v1220 = vunpack.c.l.b16 %v1124
        %v1221 = vunpack.c.l.b16 %v1125
        %v1222 = vunpack.c.l.b16 %v1126
        %v1223 = vunpack.c.l.b16 %v1127
        %v1224 = vunpack.c.l.b16 %v1128
        %v1225 = vunpack.c.l.b16 %v1129
        %v1226 = vunpack.c.l.b16 %v1130
        %v1227 = vunpack.c.l.b16 %v1131
        %v1228 = vunpack.c.l.b16 %v1132
        %v1229 = vunpack.c.l.b16 %v1133
        %v1230 = vunpack.c.l.b16 %v1134
        %v1231 = vunpack.c.l.b16 %v1135
        %v1232 = vunpack.c.l.b16 %v1136
        %v1233 = vunpack.c.l.b16 %v1137
        %v1234 = vunpack.c.l.b16 %v1138
        %v1235 = vunpack.c.l.b16 %v1139
        %v1236 = vunpack.c.l.b16 %v1140
        %v1237 = vunpack.c.l.b16 %v1141
        %v1238 = vunpack.c.l.b16 %v1142
        %v1239 = vunpack.c.l.b16 %v1143
        %v1240 = vunpack.c.l.b16 %v1144
        %v1241 = vunpack.c.l.b16 %v1145
        %v1242 = vunpack.c.l.b16 %v1146
        %v1243 = vunpack.c.l.b16 %v1147
        %v1244 = vunpack.c.l.b16 %v1148
        %v1245 = vunpack.c.l.b16 %v1149
        %v1246 = vunpack.c.l.b16 %v1150
        %v1247 = vunpack.c.l.b16 %v1151
        %v1248 = vunpack.c.l.b16 %v1152
        %v1249 = vunpack.c.l.b16 %v1153
        %v1250 = vpack.c.b16 %v1203, %v1202
        %v1251 = vpack.c.b16 %v1205, %v1204
        %v1252 = vpack.c.b16 %v1207, %v1206
        %v1253 = vpack.c.b16 %v1209, %v1208
        %v1254 = vpack.c.b16 %v1211, %v1210
        %v1255 = vpack.c.b16 %v1213, %v1212
        %v1256 = vpack.c.b16 %v1215, %v1214
        %v1257 = vpack.c.b16 %v1217, %v1216
        %v1258 = vpack.c.b16 %v1219, %v1218
        %v1259 = vpack.c.b16 %v1221, %v1220
        %v1260 = vpack.c.b16 %v1223, %v1222
        %v1261 = vpack.c.b16 %v1225, %v1224
        %v1262 = vpack.c.b16 %v1227, %v1226
        %v1263 = vpack.c.b16 %v1229, %v1228
        %v1264 = vpack.c.b16 %v1231, %v1230
        %v1265 = vpack.c.b16 %v1233, %v1232
        %v1266 = vpack.c.b16 %v1235, %v1234
        %v1267 = vpack.c.b16 %v1237, %v1236
        %v1268 = vpack.c.b16 %v1239, %v1238
        %v1269 = vpack.c.b16 %v1241, %v1240
        %v1270 = vpack.c.b16 %v1243, %v1242
        %v1271 = vpack.c.b16 %v1245, %v1244
        %v1272 = vpack.c.b16 %v1247, %v1246
        %v1273 = vpack.c.b16 %v1249, %v1248
        %1298 = vmatpush.bf16.msra.mxu0 %v1257
        %1299 = vmatpush.bf16.msra.mxu0 %v1256
        %1300 = vmatpush.bf16.msra.mxu0 %v1255
        %1301 = vmatpush.bf16.msra.mxu0 %v1254
        %1302 = vmatpush.bf16.msra.mxu0 %v1253
        %1303 = vmatpush.bf16.msra.mxu0 %v1252
        %1304 = vmatpush.bf16.msra.mxu0 %v1251
        %1305 = vmatpush.bf16.msra.mxu0 %v1250
        %1306 = vmatmul.bf16.gmra.mxu0 %v816
        %v1307 = vpop.f32.mrf.mxu0
        %v1308 = vadd.f32 0.0, %v1307
        %v1309 = vpop.f32.mrf.mxu0
        %v1310 = vadd.f32 0.0, %v1309
        %1311 = vmatmul.bf16.gmra.mxu0 %v817
        %v1312 = vpop.f32.mrf.mxu0
        %v1313 = vadd.f32 0.0, %v1312
        %v1314 = vpop.f32.mrf.mxu0
        %v1315 = vadd.f32 0.0, %v1314
        %1316 = vmatmul.bf16.gmra.mxu0 %v818
        %v1317 = vpop.f32.mrf.mxu0
        %v1318 = vadd.f32 0.0, %v1317
        %v1319 = vpop.f32.mrf.mxu0
        %v1320 = vadd.f32 0.0, %v1319
        %1321 = vmatmul.bf16.gmra.mxu0 %v819
        %v1322 = vpop.f32.mrf.mxu0
        %v1323 = vadd.f32 0.0, %v1322
        %v1324 = vpop.f32.mrf.mxu0
        %v1325 = vadd.f32 0.0, %v1324
        %1326 = vmatmul.bf16.gmra.mxu0 %v820
        %v1327 = vpop.f32.mrf.mxu0
        %v1328 = vadd.f32 0.0, %v1327
        %v1329 = vpop.f32.mrf.mxu0
        %v1330 = vadd.f32 0.0, %v1329
        %1331 = vmatmul.bf16.gmra.mxu0 %v821
        %v1332 = vpop.f32.mrf.mxu0
        %v1333 = vadd.f32 0.0, %v1332
        %v1334 = vpop.f32.mrf.mxu0
        %v1335 = vadd.f32 0.0, %v1334
        %1336 = vmatmul.bf16.gmra.mxu0 %v822
        %v1337 = vpop.f32.mrf.mxu0
        %v1338 = vadd.f32 0.0, %v1337
        %v1339 = vpop.f32.mrf.mxu0
        %v1340 = vadd.f32 0.0, %v1339
        %1341 = vmatmul.bf16.gmra.mxu0 %v823
        %v1342 = vpop.f32.mrf.mxu0
        %v1343 = vadd.f32 0.0, %v1342
        %v1344 = vpop.f32.mrf.mxu0
        %v1345 = vadd.f32 0.0, %v1344
        %1346 = vmatmul.bf16.gmra.mxu0 %v824
        %v1347 = vpop.f32.mrf.mxu0
        %v1348 = vadd.f32 0.0, %v1347
        %v1349 = vpop.f32.mrf.mxu0
        %v1350 = vadd.f32 0.0, %v1349
        %1351 = vmatmul.bf16.gmra.mxu0 %v825
        %v1352 = vpop.f32.mrf.mxu0
        %v1353 = vadd.f32 0.0, %v1352
        %v1354 = vpop.f32.mrf.mxu0
        %v1355 = vadd.f32 0.0, %v1354
        %1356 = vmatmul.bf16.gmra.mxu0 %v826
        %v1357 = vpop.f32.mrf.mxu0
        %v1358 = vadd.f32 0.0, %v1357
        %v1359 = vpop.f32.mrf.mxu0
        %v1360 = vadd.f32 0.0, %v1359
        %1361 = vmatmul.bf16.gmra.mxu0 %v827
        %v1362 = vpop.f32.mrf.mxu0
        %v1363 = vadd.f32 0.0, %v1362
        %v1364 = vpop.f32.mrf.mxu0
        %v1365 = vadd.f32 0.0, %v1364
        %1366 = vmatmul.bf16.gmra.mxu0 %v828
        %v1367 = vpop.f32.mrf.mxu0
        %v1368 = vadd.f32 0.0, %v1367
        %v1369 = vpop.f32.mrf.mxu0
        %v1370 = vadd.f32 0.0, %v1369
        %1371 = vmatmul.bf16.gmra.mxu0 %v829
        %v1372 = vpop.f32.mrf.mxu0
        %v1373 = vadd.f32 0.0, %v1372
        %v1374 = vpop.f32.mrf.mxu0
        %v1375 = vadd.f32 0.0, %v1374
        %1376 = vmatmul.bf16.gmra.mxu0 %v830
        %v1377 = vpop.f32.mrf.mxu0
        %v1378 = vadd.f32 0.0, %v1377
        %v1379 = vpop.f32.mrf.mxu0
        %v1380 = vadd.f32 0.0, %v1379
        %1381 = vmatmul.bf16.gmra.mxu0 %v831
        %v1382 = vpop.f32.mrf.mxu0
        %v1383 = vadd.f32 0.0, %v1382
        %v1384 = vpop.f32.mrf.mxu0
        %v1385 = vadd.f32 0.0, %v1384
        %1386 = vdwg.mxu0
        %1387 = vmatpush.bf16.msra.mxu0 %v1265
        %1388 = vmatpush.bf16.msra.mxu0 %v1264
        %1389 = vmatpush.bf16.msra.mxu0 %v1263
        %1390 = vmatpush.bf16.msra.mxu0 %v1262
        %1391 = vmatpush.bf16.msra.mxu0 %v1261
        %1392 = vmatpush.bf16.msra.mxu0 %v1260
        %1393 = vmatpush.bf16.msra.mxu0 %v1259
        %1394 = vmatpush.bf16.msra.mxu0 %v1258
        %1395 = vmatmul.bf16.gmra.mxu0 %v918
        %v1396 = vpop.f32.mrf.mxu0
        %v1397 = vadd.f32 %v1308, %v1396
        %v1398 = vpop.f32.mrf.mxu0
        %v1399 = vadd.f32 %v1310, %v1398
        %1400 = vmatmul.bf16.gmra.mxu0 %v919
        %v1401 = vpop.f32.mrf.mxu0
        %v1402 = vadd.f32 %v1313, %v1401
        %v1403 = vpop.f32.mrf.mxu0
        %v1404 = vadd.f32 %v1315, %v1403
        %1405 = vmatmul.bf16.gmra.mxu0 %v920
        %v1406 = vpop.f32.mrf.mxu0
        %v1407 = vadd.f32 %v1318, %v1406
        %v1408 = vpop.f32.mrf.mxu0
        %v1409 = vadd.f32 %v1320, %v1408
        %1410 = vmatmul.bf16.gmra.mxu0 %v921
        %v1411 = vpop.f32.mrf.mxu0
        %v1412 = vadd.f32 %v1323, %v1411
        %v1413 = vpop.f32.mrf.mxu0
        %v1414 = vadd.f32 %v1325, %v1413
        %1415 = vmatmul.bf16.gmra.mxu0 %v922
        %v1416 = vpop.f32.mrf.mxu0
        %v1417 = vadd.f32 %v1328, %v1416
        %v1418 = vpop.f32.mrf.mxu0
        %v1419 = vadd.f32 %v1330, %v1418
        %1420 = vmatmul.bf16.gmra.mxu0 %v923
        %v1421 = vpop.f32.mrf.mxu0
        %v1422 = vadd.f32 %v1333, %v1421
        %v1423 = vpop.f32.mrf.mxu0
        %v1424 = vadd.f32 %v1335, %v1423
        %1425 = vmatmul.bf16.gmra.mxu0 %v924
        %v1426 = vpop.f32.mrf.mxu0
        %v1427 = vadd.f32 %v1338, %v1426
        %v1428 = vpop.f32.mrf.mxu0
        %v1429 = vadd.f32 %v1340, %v1428
        %1430 = vmatmul.bf16.gmra.mxu0 %v925
        %v1431 = vpop.f32.mrf.mxu0
        %v1432 = vadd.f32 %v1343, %v1431
        %v1433 = vpop.f32.mrf.mxu0
        %v1434 = vadd.f32 %v1345, %v1433
        %1435 = vmatmul.bf16.gmra.mxu0 %v926
        %v1436 = vpop.f32.mrf.mxu0
        %v1437 = vadd.f32 %v1348, %v1436
        %v1438 = vpop.f32.mrf.mxu0
        %v1439 = vadd.f32 %v1350, %v1438
        %1440 = vmatmul.bf16.gmra.mxu0 %v927
        %v1441 = vpop.f32.mrf.mxu0
        %v1442 = vadd.f32 %v1353, %v1441
        %v1443 = vpop.f32.mrf.mxu0
        %v1444 = vadd.f32 %v1355, %v1443
        %1445 = vmatmul.bf16.gmra.mxu0 %v928
        %v1446 = vpop.f32.mrf.mxu0
        %v1447 = vadd.f32 %v1358, %v1446
        %v1448 = vpop.f32.mrf.mxu0
        %v1449 = vadd.f32 %v1360, %v1448
        %1450 = vmatmul.bf16.gmra.mxu0 %v929
        %v1451 = vpop.f32.mrf.mxu0
        %v1452 = vadd.f32 %v1363, %v1451
        %v1453 = vpop.f32.mrf.mxu0
        %v1454 = vadd.f32 %v1365, %v1453
        %1455 = vmatmul.bf16.gmra.mxu0 %v930
        %v1456 = vpop.f32.mrf.mxu0
        %v1457 = vadd.f32 %v1368, %v1456
        %v1458 = vpop.f32.mrf.mxu0
        %v1459 = vadd.f32 %v1370, %v1458
        %1460 = vmatmul.bf16.gmra.mxu0 %v931
        %v1461 = vpop.f32.mrf.mxu0
        %v1462 = vadd.f32 %v1373, %v1461
        %v1463 = vpop.f32.mrf.mxu0
        %v1464 = vadd.f32 %v1375, %v1463
        %1465 = vmatmul.bf16.gmra.mxu0 %v932
        %v1466 = vpop.f32.mrf.mxu0
        %v1467 = vadd.f32 %v1378, %v1466
        %v1468 = vpop.f32.mrf.mxu0
        %v1469 = vadd.f32 %v1380, %v1468
        %1470 = vmatmul.bf16.gmra.mxu0 %v933
        %v1471 = vpop.f32.mrf.mxu0
        %v1472 = vadd.f32 %v1383, %v1471
        %v1473 = vpop.f32.mrf.mxu0
        %v1474 = vadd.f32 %v1385, %v1473
        %1475 = vdwg.mxu0
        %1476 = vmatpush.bf16.msra.mxu0 %v1273
        %1477 = vmatpush.bf16.msra.mxu0 %v1272
        %1478 = vmatpush.bf16.msra.mxu0 %v1271
        %1479 = vmatpush.bf16.msra.mxu0 %v1270
        %1480 = vmatpush.bf16.msra.mxu0 %v1269
        %1481 = vmatpush.bf16.msra.mxu0 %v1268
        %1482 = vmatpush.bf16.msra.mxu0 %v1267
        %1483 = vmatpush.bf16.msra.mxu0 %v1266
        %1484 = vmatmul.bf16.gmra.mxu0 %v1022
        %v1485 = vpop.f32.mrf.mxu0
        %v1486 = vadd.f32 %v1397, %v1485
        %v1487 = vpop.f32.mrf.mxu0
        %v1488 = vadd.f32 %v1399, %v1487
        %1489 = vmatmul.bf16.gmra.mxu0 %v1023
        %v1490 = vpop.f32.mrf.mxu0
        %v1491 = vadd.f32 %v1402, %v1490
        %v1492 = vpop.f32.mrf.mxu0
        %v1493 = vadd.f32 %v1404, %v1492
        %1494 = vmatmul.bf16.gmra.mxu0 %v1024
        %v1495 = vpop.f32.mrf.mxu0
        %v1496 = vadd.f32 %v1407, %v1495
        %v1497 = vpop.f32.mrf.mxu0
        %v1498 = vadd.f32 %v1409, %v1497
        %1499 = vmatmul.bf16.gmra.mxu0 %v1025
        %v1500 = vpop.f32.mrf.mxu0
        %v1501 = vadd.f32 %v1412, %v1500
        %v1502 = vpop.f32.mrf.mxu0
        %v1503 = vadd.f32 %v1414, %v1502
        %1504 = vmatmul.bf16.gmra.mxu0 %v1026
        %v1505 = vpop.f32.mrf.mxu0
        %v1506 = vadd.f32 %v1417, %v1505
        %v1507 = vpop.f32.mrf.mxu0
        %v1508 = vadd.f32 %v1419, %v1507
        %1509 = vmatmul.bf16.gmra.mxu0 %v1027
        %v1510 = vpop.f32.mrf.mxu0
        %v1511 = vadd.f32 %v1422, %v1510
        %v1512 = vpop.f32.mrf.mxu0
        %v1513 = vadd.f32 %v1424, %v1512
        %1514 = vmatmul.bf16.gmra.mxu0 %v1028
        %v1515 = vpop.f32.mrf.mxu0
        %v1516 = vadd.f32 %v1427, %v1515
        %v1517 = vpop.f32.mrf.mxu0
        %v1518 = vadd.f32 %v1429, %v1517
        %1519 = vmatmul.bf16.gmra.mxu0 %v1029
        %v1520 = vpop.f32.mrf.mxu0
        %v1521 = vadd.f32 %v1432, %v1520
        %v1522 = vpop.f32.mrf.mxu0
        %v1523 = vadd.f32 %v1434, %v1522
        %1524 = vmatmul.bf16.gmra.mxu0 %v1030
        %v1525 = vpop.f32.mrf.mxu0
        %v1526 = vadd.f32 %v1437, %v1525
        %v1527 = vpop.f32.mrf.mxu0
        %v1528 = vadd.f32 %v1439, %v1527
        %1529 = vmatmul.bf16.gmra.mxu0 %v1031
        %v1530 = vpop.f32.mrf.mxu0
        %v1531 = vadd.f32 %v1442, %v1530
        %v1532 = vpop.f32.mrf.mxu0
        %v1533 = vadd.f32 %v1444, %v1532
        %1534 = vmatmul.bf16.gmra.mxu0 %v1032
        %v1535 = vpop.f32.mrf.mxu0
        %v1536 = vadd.f32 %v1447, %v1535
        %v1537 = vpop.f32.mrf.mxu0
        %v1538 = vadd.f32 %v1449, %v1537
        %1539 = vmatmul.bf16.gmra.mxu0 %v1033
        %v1540 = vpop.f32.mrf.mxu0
        %v1541 = vadd.f32 %v1452, %v1540
        %v1542 = vpop.f32.mrf.mxu0
        %v1543 = vadd.f32 %v1454, %v1542
        %1544 = vmatmul.bf16.gmra.mxu0 %v1034
        %v1545 = vpop.f32.mrf.mxu0
        %v1546 = vadd.f32 %v1457, %v1545
        %v1547 = vpop.f32.mrf.mxu0
        %v1548 = vadd.f32 %v1459, %v1547
        %1549 = vmatmul.bf16.gmra.mxu0 %v1035
        %v1550 = vpop.f32.mrf.mxu0
        %v1551 = vadd.f32 %v1462, %v1550
        %v1552 = vpop.f32.mrf.mxu0
        %v1553 = vadd.f32 %v1464, %v1552
        %1554 = vmatmul.bf16.gmra.mxu0 %v1036
        %v1555 = vpop.f32.mrf.mxu0
        %v1556 = vadd.f32 %v1467, %v1555
        %v1557 = vpop.f32.mrf.mxu0
        %v1558 = vadd.f32 %v1469, %v1557
        %1559 = vmatmul.bf16.gmra.mxu0 %v1037
        %v1560 = vpop.f32.mrf.mxu0
        %v1561 = vadd.f32 %v1472, %v1560
        %v1562 = vpop.f32.mrf.mxu0
        %v1563 = vadd.f32 %v1474, %v1562
        %1564 = vdwg.mxu0
        %v1613 = vunpack.c.l.b16 %v1057
        %v1614 = vunpack.c.l.b16 %v1058
        %v1615 = vunpack.c.l.b16 %v1059
        %v1616 = vunpack.c.l.b16 %v1060
        %v1617 = vunpack.c.l.b16 %v1061
        %v1618 = vunpack.c.l.b16 %v1062
        %v1619 = vunpack.c.l.b16 %v1063
        %v1620 = vunpack.c.l.b16 %v1064
        %v1621 = vunpack.c.l.b16 %v1065
        %v1622 = vunpack.c.l.b16 %v1066
        %v1623 = vunpack.c.l.b16 %v1067
        %v1624 = vunpack.c.l.b16 %v1068
        %v1625 = vunpack.c.l.b16 %v1069
        %v1626 = vunpack.c.l.b16 %v1070
        %v1627 = vunpack.c.l.b16 %v1071
        %v1628 = vunpack.c.l.b16 %v1072
        %v1629 = vunpack.c.l.b16 %v1073
        %v1630 = vunpack.c.l.b16 %v1074
        %v1631 = vunpack.c.l.b16 %v1075
        %v1632 = vunpack.c.l.b16 %v1076
        %v1633 = vunpack.c.l.b16 %v1077
        %v1634 = vunpack.c.l.b16 %v1078
        %v1635 = vunpack.c.l.b16 %v1079
        %v1636 = vunpack.c.l.b16 %v1080
        %v1637 = vunpack.c.l.b16 %v1081
        %v1638 = vunpack.c.l.b16 %v1082
        %v1639 = vunpack.c.l.b16 %v1083
        %v1640 = vunpack.c.l.b16 %v1084
        %v1641 = vunpack.c.l.b16 %v1085
        %v1642 = vunpack.c.l.b16 %v1086
        %v1643 = vunpack.c.l.b16 %v1087
        %v1644 = vunpack.c.l.b16 %v1088
        %v1645 = vunpack.c.l.b16 %v1089
        %v1646 = vunpack.c.l.b16 %v1090
        %v1647 = vunpack.c.l.b16 %v1091
        %v1648 = vunpack.c.l.b16 %v1092
        %v1649 = vunpack.c.l.b16 %v1093
        %v1650 = vunpack.c.l.b16 %v1094
        %v1651 = vunpack.c.l.b16 %v1095
        %v1652 = vunpack.c.l.b16 %v1096
        %v1653 = vunpack.c.l.b16 %v1097
        %v1654 = vunpack.c.l.b16 %v1098
        %v1655 = vunpack.c.l.b16 %v1099
        %v1656 = vunpack.c.l.b16 %v1100
        %v1657 = vunpack.c.l.b16 %v1101
        %v1658 = vunpack.c.l.b16 %v1102
        %v1659 = vunpack.c.l.b16 %v1103
        %v1660 = vunpack.c.l.b16 %v1104
        %v1661 = vpack.c.b16 %v1614, %v1613
        %v1662 = vpack.c.b16 %v1616, %v1615
        %v1663 = vpack.c.b16 %v1618, %v1617
        %v1664 = vpack.c.b16 %v1620, %v1619
        %v1665 = vpack.c.b16 %v1622, %v1621
        %v1666 = vpack.c.b16 %v1624, %v1623
        %v1667 = vpack.c.b16 %v1626, %v1625
        %v1668 = vpack.c.b16 %v1628, %v1627
        %v1669 = vpack.c.b16 %v1630, %v1629
        %v1670 = vpack.c.b16 %v1632, %v1631
        %v1671 = vpack.c.b16 %v1634, %v1633
        %v1672 = vpack.c.b16 %v1636, %v1635
        %v1673 = vpack.c.b16 %v1638, %v1637
        %v1674 = vpack.c.b16 %v1640, %v1639
        %v1675 = vpack.c.b16 %v1642, %v1641
        %v1676 = vpack.c.b16 %v1644, %v1643
        %v1677 = vpack.c.b16 %v1646, %v1645
        %v1678 = vpack.c.b16 %v1648, %v1647
        %v1679 = vpack.c.b16 %v1650, %v1649
        %v1680 = vpack.c.b16 %v1652, %v1651
        %v1681 = vpack.c.b16 %v1654, %v1653
        %v1682 = vpack.c.b16 %v1656, %v1655
        %v1683 = vpack.c.b16 %v1658, %v1657
        %v1684 = vpack.c.b16 %v1660, %v1659
        %1709 = vmatpush.bf16.msra.mxu0 %v1668
        %1710 = vmatpush.bf16.msra.mxu0 %v1667
        %1711 = vmatpush.bf16.msra.mxu0 %v1666
        %1712 = vmatpush.bf16.msra.mxu0 %v1665
        %1713 = vmatpush.bf16.msra.mxu0 %v1664
        %1714 = vmatpush.bf16.msra.mxu0 %v1663
        %1715 = vmatpush.bf16.msra.mxu0 %v1662
        %1716 = vmatpush.bf16.msra.mxu0 %v1661
        %1717 = vmatmul.bf16.gmra.mxu0 %v815
        %v1718 = vpop.f32.mrf.mxu0
        %v1719 = vadd.f32 %v1486, %v1718
        %v1720 = vpop.f32.mrf.mxu0
        %v1721 = vadd.f32 %v1488, %v1720
        %1722 = vmatmul.bf16.gmra.mxu0 %v816
        %v1723 = vpop.f32.mrf.mxu0
        %v1724 = vadd.f32 %v1491, %v1723
        %v1725 = vpop.f32.mrf.mxu0
        %v1726 = vadd.f32 %v1493, %v1725
        %1727 = vmatmul.bf16.gmra.mxu0 %v817
        %v1728 = vpop.f32.mrf.mxu0
        %v1729 = vadd.f32 %v1496, %v1728
        %v1730 = vpop.f32.mrf.mxu0
        %v1731 = vadd.f32 %v1498, %v1730
        %1732 = vmatmul.bf16.gmra.mxu0 %v818
        %v1733 = vpop.f32.mrf.mxu0
        %v1734 = vadd.f32 %v1501, %v1733
        %v1735 = vpop.f32.mrf.mxu0
        %v1736 = vadd.f32 %v1503, %v1735
        %1737 = vmatmul.bf16.gmra.mxu0 %v819
        %v1738 = vpop.f32.mrf.mxu0
        %v1739 = vadd.f32 %v1506, %v1738
        %v1740 = vpop.f32.mrf.mxu0
        %v1741 = vadd.f32 %v1508, %v1740
        %1742 = vmatmul.bf16.gmra.mxu0 %v820
        %v1743 = vpop.f32.mrf.mxu0
        %v1744 = vadd.f32 %v1511, %v1743
        %v1745 = vpop.f32.mrf.mxu0
        %v1746 = vadd.f32 %v1513, %v1745
        %1747 = vmatmul.bf16.gmra.mxu0 %v821
        %v1748 = vpop.f32.mrf.mxu0
        %v1749 = vadd.f32 %v1516, %v1748
        %v1750 = vpop.f32.mrf.mxu0
        %v1751 = vadd.f32 %v1518, %v1750
        %1752 = vmatmul.bf16.gmra.mxu0 %v822
        %v1753 = vpop.f32.mrf.mxu0
        %v1754 = vadd.f32 %v1521, %v1753
        %v1755 = vpop.f32.mrf.mxu0
        %v1756 = vadd.f32 %v1523, %v1755
        %1757 = vmatmul.bf16.gmra.mxu0 %v823
        %v1758 = vpop.f32.mrf.mxu0
        %v1759 = vadd.f32 %v1526, %v1758
        %v1760 = vpop.f32.mrf.mxu0
        %v1761 = vadd.f32 %v1528, %v1760
        %1762 = vmatmul.bf16.gmra.mxu0 %v824
        %v1763 = vpop.f32.mrf.mxu0
        %v1764 = vadd.f32 %v1531, %v1763
        %v1765 = vpop.f32.mrf.mxu0
        %v1766 = vadd.f32 %v1533, %v1765
        %1767 = vmatmul.bf16.gmra.mxu0 %v825
        %v1768 = vpop.f32.mrf.mxu0
        %v1769 = vadd.f32 %v1536, %v1768
        %v1770 = vpop.f32.mrf.mxu0
        %v1771 = vadd.f32 %v1538, %v1770
        %1772 = vmatmul.bf16.gmra.mxu0 %v826
        %v1773 = vpop.f32.mrf.mxu0
        %v1774 = vadd.f32 %v1541, %v1773
        %v1775 = vpop.f32.mrf.mxu0
        %v1776 = vadd.f32 %v1543, %v1775
        %1777 = vmatmul.bf16.gmra.mxu0 %v827
        %v1778 = vpop.f32.mrf.mxu0
        %v1779 = vadd.f32 %v1546, %v1778
        %v1780 = vpop.f32.mrf.mxu0
        %v1781 = vadd.f32 %v1548, %v1780
        %1782 = vmatmul.bf16.gmra.mxu0 %v828
        %v1783 = vpop.f32.mrf.mxu0
        %v1784 = vadd.f32 %v1551, %v1783
        %v1785 = vpop.f32.mrf.mxu0
        %v1786 = vadd.f32 %v1553, %v1785
        %1787 = vmatmul.bf16.gmra.mxu0 %v829
        %v1788 = vpop.f32.mrf.mxu0
        %v1789 = vadd.f32 %v1556, %v1788
        %v1790 = vpop.f32.mrf.mxu0
        %v1791 = vadd.f32 %v1558, %v1790
        %1792 = vmatmul.bf16.gmra.mxu0 %v830
        %v1793 = vpop.f32.mrf.mxu0
        %v1794 = vadd.f32 %v1561, %v1793
        %v1795 = vpop.f32.mrf.mxu0
        %v1796 = vadd.f32 %v1563, %v1795
        %1797 = vdwg.mxu0
        %1798 = vmatpush.bf16.msra.mxu0 %v1676
        %1799 = vmatpush.bf16.msra.mxu0 %v1675
        %1800 = vmatpush.bf16.msra.mxu0 %v1674
        %1801 = vmatpush.bf16.msra.mxu0 %v1673
        %1802 = vmatpush.bf16.msra.mxu0 %v1672
        %1803 = vmatpush.bf16.msra.mxu0 %v1671
        %1804 = vmatpush.bf16.msra.mxu0 %v1670
        %1805 = vmatpush.bf16.msra.mxu0 %v1669
        %1806 = vmatmul.bf16.gmra.mxu0 %v917
        %v1807 = vpop.f32.mrf.mxu0
        %v1808 = vadd.f32 %v1719, %v1807
        %v1809 = vpop.f32.mrf.mxu0
        %v1810 = vadd.f32 %v1721, %v1809
        %1811 = vmatmul.bf16.gmra.mxu0 %v918
        %v1812 = vpop.f32.mrf.mxu0
        %v1813 = vadd.f32 %v1724, %v1812
        %v1814 = vpop.f32.mrf.mxu0
        %v1815 = vadd.f32 %v1726, %v1814
        %1816 = vmatmul.bf16.gmra.mxu0 %v919
        %v1817 = vpop.f32.mrf.mxu0
        %v1818 = vadd.f32 %v1729, %v1817
        %v1819 = vpop.f32.mrf.mxu0
        %v1820 = vadd.f32 %v1731, %v1819
        %1821 = vmatmul.bf16.gmra.mxu0 %v920
        %v1822 = vpop.f32.mrf.mxu0
        %v1823 = vadd.f32 %v1734, %v1822
        %v1824 = vpop.f32.mrf.mxu0
        %v1825 = vadd.f32 %v1736, %v1824
        %1826 = vmatmul.bf16.gmra.mxu0 %v921
        %v1827 = vpop.f32.mrf.mxu0
        %v1828 = vadd.f32 %v1739, %v1827
        %v1829 = vpop.f32.mrf.mxu0
        %v1830 = vadd.f32 %v1741, %v1829
        %1831 = vmatmul.bf16.gmra.mxu0 %v922
        %v1832 = vpop.f32.mrf.mxu0
        %v1833 = vadd.f32 %v1744, %v1832
        %v1834 = vpop.f32.mrf.mxu0
        %v1835 = vadd.f32 %v1746, %v1834
        %1836 = vmatmul.bf16.gmra.mxu0 %v923
        %v1837 = vpop.f32.mrf.mxu0
        %v1838 = vadd.f32 %v1749, %v1837
        %v1839 = vpop.f32.mrf.mxu0
        %v1840 = vadd.f32 %v1751, %v1839
        %1841 = vmatmul.bf16.gmra.mxu0 %v924
        %v1842 = vpop.f32.mrf.mxu0
        %v1843 = vadd.f32 %v1754, %v1842
        %v1844 = vpop.f32.mrf.mxu0
        %v1845 = vadd.f32 %v1756, %v1844
        %1846 = vmatmul.bf16.gmra.mxu0 %v925
        %v1847 = vpop.f32.mrf.mxu0
        %v1848 = vadd.f32 %v1759, %v1847
        %v1849 = vpop.f32.mrf.mxu0
        %v1850 = vadd.f32 %v1761, %v1849
        %1851 = vmatmul.bf16.gmra.mxu0 %v926
        %v1852 = vpop.f32.mrf.mxu0
        %v1853 = vadd.f32 %v1764, %v1852
        %v1854 = vpop.f32.mrf.mxu0
        %v1855 = vadd.f32 %v1766, %v1854
        %1856 = vmatmul.bf16.gmra.mxu0 %v927
        %v1857 = vpop.f32.mrf.mxu0
        %v1858 = vadd.f32 %v1769, %v1857
        %v1859 = vpop.f32.mrf.mxu0
        %v1860 = vadd.f32 %v1771, %v1859
        %1861 = vmatmul.bf16.gmra.mxu0 %v928
        %v1862 = vpop.f32.mrf.mxu0
        %v1863 = vadd.f32 %v1774, %v1862
        %v1864 = vpop.f32.mrf.mxu0
        %v1865 = vadd.f32 %v1776, %v1864
        %1866 = vmatmul.bf16.gmra.mxu0 %v929
        %v1867 = vpop.f32.mrf.mxu0
        %v1868 = vadd.f32 %v1779, %v1867
        %v1869 = vpop.f32.mrf.mxu0
        %v1870 = vadd.f32 %v1781, %v1869
        %1871 = vmatmul.bf16.gmra.mxu0 %v930
        %v1872 = vpop.f32.mrf.mxu0
        %v1873 = vadd.f32 %v1784, %v1872
        %v1874 = vpop.f32.mrf.mxu0
        %v1875 = vadd.f32 %v1786, %v1874
        %1876 = vmatmul.bf16.gmra.mxu0 %v931
        %v1877 = vpop.f32.mrf.mxu0
        %v1878 = vadd.f32 %v1789, %v1877
        %v1879 = vpop.f32.mrf.mxu0
        %v1880 = vadd.f32 %v1791, %v1879
        %1881 = vmatmul.bf16.gmra.mxu0 %v932
        %v1882 = vpop.f32.mrf.mxu0
        %v1883 = vadd.f32 %v1794, %v1882
        %v1884 = vpop.f32.mrf.mxu0
        %v1885 = vadd.f32 %v1796, %v1884
        %1886 = vdwg.mxu0
        %1887 = vmatpush.bf16.msra.mxu0 %v1684
        %1888 = vmatpush.bf16.msra.mxu0 %v1683
        %1889 = vmatpush.bf16.msra.mxu0 %v1682
        %1890 = vmatpush.bf16.msra.mxu0 %v1681
        %1891 = vmatpush.bf16.msra.mxu0 %v1680
        %1892 = vmatpush.bf16.msra.mxu0 %v1679
        %1893 = vmatpush.bf16.msra.mxu0 %v1678
        %1894 = vmatpush.bf16.msra.mxu0 %v1677
        %1895 = vmatmul.bf16.gmra.mxu0 %v1021
        %v1896 = vpop.f32.mrf.mxu0
        %v1897 = vadd.f32 %v1808, %v1896
        %v1898 = vpop.f32.mrf.mxu0
        %v1899 = vadd.f32 %v1810, %v1898
        %1900 = vmatmul.bf16.gmra.mxu0 %v1022
        %v1901 = vpop.f32.mrf.mxu0
        %v1902 = vadd.f32 %v1813, %v1901
        %v1903 = vpop.f32.mrf.mxu0
        %v1904 = vadd.f32 %v1815, %v1903
        %1905 = vmatmul.bf16.gmra.mxu0 %v1023
        %v1906 = vpop.f32.mrf.mxu0
        %v1907 = vadd.f32 %v1818, %v1906
        %v1908 = vpop.f32.mrf.mxu0
        %v1909 = vadd.f32 %v1820, %v1908
        %1910 = vmatmul.bf16.gmra.mxu0 %v1024
        %v1911 = vpop.f32.mrf.mxu0
        %v1912 = vadd.f32 %v1823, %v1911
        %v1913 = vpop.f32.mrf.mxu0
        %v1914 = vadd.f32 %v1825, %v1913
        %1915 = vmatmul.bf16.gmra.mxu0 %v1025
        %v1916 = vpop.f32.mrf.mxu0
        %v1917 = vadd.f32 %v1828, %v1916
        %v1918 = vpop.f32.mrf.mxu0
        %v1919 = vadd.f32 %v1830, %v1918
        %1920 = vmatmul.bf16.gmra.mxu0 %v1026
        %v1921 = vpop.f32.mrf.mxu0
        %v1922 = vadd.f32 %v1833, %v1921
        %v1923 = vpop.f32.mrf.mxu0
        %v1924 = vadd.f32 %v1835, %v1923
        %1925 = vmatmul.bf16.gmra.mxu0 %v1027
        %v1926 = vpop.f32.mrf.mxu0
        %v1927 = vadd.f32 %v1838, %v1926
        %v1928 = vpop.f32.mrf.mxu0
        %v1929 = vadd.f32 %v1840, %v1928
        %1930 = vmatmul.bf16.gmra.mxu0 %v1028
        %v1931 = vpop.f32.mrf.mxu0
        %v1932 = vadd.f32 %v1843, %v1931
        %v1933 = vpop.f32.mrf.mxu0
        %v1934 = vadd.f32 %v1845, %v1933
        %1935 = vmatmul.bf16.gmra.mxu0 %v1029
        %v1936 = vpop.f32.mrf.mxu0
        %v1937 = vadd.f32 %v1848, %v1936
        %v1938 = vpop.f32.mrf.mxu0
        %v1939 = vadd.f32 %v1850, %v1938
        %1940 = vmatmul.bf16.gmra.mxu0 %v1030
        %v1941 = vpop.f32.mrf.mxu0
        %v1942 = vadd.f32 %v1853, %v1941
        %v1943 = vpop.f32.mrf.mxu0
        %v1944 = vadd.f32 %v1855, %v1943
        %1945 = vmatmul.bf16.gmra.mxu0 %v1031
        %v1946 = vpop.f32.mrf.mxu0
        %v1947 = vadd.f32 %v1858, %v1946
        %v1948 = vpop.f32.mrf.mxu0
        %v1949 = vadd.f32 %v1860, %v1948
        %1950 = vmatmul.bf16.gmra.mxu0 %v1032
        %v1951 = vpop.f32.mrf.mxu0
        %v1952 = vadd.f32 %v1863, %v1951
        %v1953 = vpop.f32.mrf.mxu0
        %v1954 = vadd.f32 %v1865, %v1953
        %1955 = vmatmul.bf16.gmra.mxu0 %v1033
        %v1956 = vpop.f32.mrf.mxu0
        %v1957 = vadd.f32 %v1868, %v1956
        %v1958 = vpop.f32.mrf.mxu0
        %v1959 = vadd.f32 %v1870, %v1958
        %1960 = vmatmul.bf16.gmra.mxu0 %v1034
        %v1961 = vpop.f32.mrf.mxu0
        %v1962 = vadd.f32 %v1873, %v1961
        %v1963 = vpop.f32.mrf.mxu0
        %v1964 = vadd.f32 %v1875, %v1963
        %1965 = vmatmul.bf16.gmra.mxu0 %v1035
        %v1966 = vpop.f32.mrf.mxu0
        %v1967 = vadd.f32 %v1878, %v1966
        %v1968 = vpop.f32.mrf.mxu0
        %v1969 = vadd.f32 %v1880, %v1968
        %1970 = vmatmul.bf16.gmra.mxu0 %v1036
        %v1971 = vpop.f32.mrf.mxu0
        %v1972 = vadd.f32 %v1883, %v1971
        %v1973 = vpop.f32.mrf.mxu0
        %v1974 = vadd.f32 %v1885, %v1973
        %1975 = vdwg.mxu0
        %s1976 = scalar_lea.vmem [#allocation7], 384
        %v1977 = vld [vmem:[%s1976] sm:$0xf]
        %v1978 = vld [vmem:[%s1976 + $0x4] sm:$0xf]
        %v1979 = vld [vmem:[%s1976 + $0x8] sm:$0xf]
        %v1980 = vld [vmem:[%s1976 + $0xc] sm:$0xf]
        %v1981 = vld [vmem:[%s1976 + $0x10] sm:$0xf]
        %v1982 = vld [vmem:[%s1976 + $0x14] sm:$0xf]
        %v1983 = vld [vmem:[%s1976 + $0x18] sm:$0xf]
        %v1984 = vld [vmem:[%s1976 + $0x1c] sm:$0xf]
        %v1985 = vld [vmem:[%s1976 + $0x20] sm:$0xf]
        %v1986 = vld [vmem:[%s1976 + $0x24] sm:$0xf]
        %v1987 = vld [vmem:[%s1976 + $0x28] sm:$0xf]
        %v1988 = vld [vmem:[%s1976 + $0x2c] sm:$0xf]
        %v1989 = vld [vmem:[%s1976 + $0x30] sm:$0xf]
        %v1990 = vld [vmem:[%s1976 + $0x34] sm:$0xf]
        %v1991 = vld [vmem:[%s1976 + $0x38] sm:$0xf]
        %v1992 = vld [vmem:[%s1976 + $0x3c] sm:$0xf]
        %v1993 = vld [vmem:[%s1976 + $0x40] sm:$0xf]
        %v1994 = vld [vmem:[%s1976 + $0x44] sm:$0xf]
        %v1995 = vld [vmem:[%s1976 + $0x48] sm:$0xf]
        %v1996 = vld [vmem:[%s1976 + $0x4c] sm:$0xf]
        %v1997 = vld [vmem:[%s1976 + $0x50] sm:$0xf]
        %v1998 = vld [vmem:[%s1976 + $0x54] sm:$0xf]
        %v1999 = vld [vmem:[%s1976 + $0x58] sm:$0xf]
        %v2000 = vld [vmem:[%s1976 + $0x5c] sm:$0xf]
        %v2001 = vld [vmem:[%s1976 + $0x60] sm:$0xf]
        %v2002 = vld [vmem:[%s1976 + $0x64] sm:$0xf]
        %v2003 = vld [vmem:[%s1976 + $0x68] sm:$0xf]
        %v2004 = vld [vmem:[%s1976 + $0x6c] sm:$0xf]
        %v2005 = vld [vmem:[%s1976 + $0x70] sm:$0xf]
        %v2006 = vld [vmem:[%s1976 + $0x74] sm:$0xf]
        %v2007 = vld [vmem:[%s1976 + $0x78] sm:$0xf]
        %v2008 = vld [vmem:[%s1976 + $0x7c] sm:$0xf]
        %v2009 = vld [vmem:[%s1976 + $0x80] sm:$0xf]
        %v2010 = vld [vmem:[%s1976 + $0x84] sm:$0xf]
        %v2011 = vld [vmem:[%s1976 + $0x88] sm:$0xf]
        %v2012 = vld [vmem:[%s1976 + $0x8c] sm:$0xf]
        %v2013 = vld [vmem:[%s1976 + $0x90] sm:$0xf]
        %v2014 = vld [vmem:[%s1976 + $0x94] sm:$0xf]
        %v2015 = vld [vmem:[%s1976 + $0x98] sm:$0xf]
        %v2016 = vld [vmem:[%s1976 + $0x9c] sm:$0xf]
        %v2017 = vld [vmem:[%s1976 + $0xa0] sm:$0xf]
        %v2018 = vld [vmem:[%s1976 + $0xa4] sm:$0xf]
        %v2019 = vld [vmem:[%s1976 + $0xa8] sm:$0xf]
        %v2020 = vld [vmem:[%s1976 + $0xac] sm:$0xf]
        %v2021 = vld [vmem:[%s1976 + $0xb0] sm:$0xf]
        %v2022 = vld [vmem:[%s1976 + $0xb4] sm:$0xf]
        %v2023 = vld [vmem:[%s1976 + $0xb8] sm:$0xf]
        %v2024 = vld [vmem:[%s1976 + $0xbc] sm:$0xf]
        %v2073 = vunpack.c.l.b16 %v1977
        %v2074 = vunpack.c.l.b16 %v1978
        %v2075 = vunpack.c.l.b16 %v1979
        %v2076 = vunpack.c.l.b16 %v1980
        %v2077 = vunpack.c.l.b16 %v1981
        %v2078 = vunpack.c.l.b16 %v1982
        %v2079 = vunpack.c.l.b16 %v1983
        %v2080 = vunpack.c.l.b16 %v1984
        %v2081 = vunpack.c.l.b16 %v1985
        %v2082 = vunpack.c.l.b16 %v1986
        %v2083 = vunpack.c.l.b16 %v1987
        %v2084 = vunpack.c.l.b16 %v1988
        %v2085 = vunpack.c.l.b16 %v1989
        %v2086 = vunpack.c.l.b16 %v1990
        %v2087 = vunpack.c.l.b16 %v1991
        %v2088 = vunpack.c.l.b16 %v1992
        %v2089 = vunpack.c.l.b16 %v1993
        %v2090 = vunpack.c.l.b16 %v1994
        %v2091 = vunpack.c.l.b16 %v1995
        %v2092 = vunpack.c.l.b16 %v1996
        %v2093 = vunpack.c.l.b16 %v1997
        %v2094 = vunpack.c.l.b16 %v1998
        %v2095 = vunpack.c.l.b16 %v1999
        %v2096 = vunpack.c.l.b16 %v2000
        %v2097 = vunpack.c.l.b16 %v2001
        %v2098 = vunpack.c.l.b16 %v2002
        %v2099 = vunpack.c.l.b16 %v2003
        %v2100 = vunpack.c.l.b16 %v2004
        %v2101 = vunpack.c.l.b16 %v2005
        %v2102 = vunpack.c.l.b16 %v2006
        %v2103 = vunpack.c.l.b16 %v2007
        %v2104 = vunpack.c.l.b16 %v2008
        %v2105 = vunpack.c.l.b16 %v2009
        %v2106 = vunpack.c.l.b16 %v2010
        %v2107 = vunpack.c.l.b16 %v2011
        %v2108 = vunpack.c.l.b16 %v2012
        %v2109 = vunpack.c.l.b16 %v2013
        %v2110 = vunpack.c.l.b16 %v2014
        %v2111 = vunpack.c.l.b16 %v2015
        %v2112 = vunpack.c.l.b16 %v2016
        %v2113 = vunpack.c.l.b16 %v2017
        %v2114 = vunpack.c.l.b16 %v2018
        %v2115 = vunpack.c.l.b16 %v2019
        %v2116 = vunpack.c.l.b16 %v2020
        %v2117 = vunpack.c.l.b16 %v2021
        %v2118 = vunpack.c.l.b16 %v2022
        %v2119 = vunpack.c.l.b16 %v2023
        %v2120 = vunpack.c.l.b16 %v2024
        %v2121 = vpack.c.b16 %v2074, %v2073
        %v2122 = vpack.c.b16 %v2076, %v2075
        %v2123 = vpack.c.b16 %v2078, %v2077
        %v2124 = vpack.c.b16 %v2080, %v2079
        %v2125 = vpack.c.b16 %v2082, %v2081
        %v2126 = vpack.c.b16 %v2084, %v2083
        %v2127 = vpack.c.b16 %v2086, %v2085
        %v2128 = vpack.c.b16 %v2088, %v2087
        %v2129 = vpack.c.b16 %v2090, %v2089
        %v2130 = vpack.c.b16 %v2092, %v2091
        %v2131 = vpack.c.b16 %v2094, %v2093
        %v2132 = vpack.c.b16 %v2096, %v2095
        %v2133 = vpack.c.b16 %v2098, %v2097
        %v2134 = vpack.c.b16 %v2100, %v2099
        %v2135 = vpack.c.b16 %v2102, %v2101
        %v2136 = vpack.c.b16 %v2104, %v2103
        %v2137 = vpack.c.b16 %v2106, %v2105
        %v2138 = vpack.c.b16 %v2108, %v2107
        %v2139 = vpack.c.b16 %v2110, %v2109
        %v2140 = vpack.c.b16 %v2112, %v2111
        %v2141 = vpack.c.b16 %v2114, %v2113
        %v2142 = vpack.c.b16 %v2116, %v2115
        %v2143 = vpack.c.b16 %v2118, %v2117
        %v2144 = vpack.c.b16 %v2120, %v2119
        %2169 = vmatpush.bf16.msra.mxu0 %v2128
        %2170 = vmatpush.bf16.msra.mxu0 %v2127
        %2171 = vmatpush.bf16.msra.mxu0 %v2126
        %2172 = vmatpush.bf16.msra.mxu0 %v2125
        %2173 = vmatpush.bf16.msra.mxu0 %v2124
        %2174 = vmatpush.bf16.msra.mxu0 %v2123
        %2175 = vmatpush.bf16.msra.mxu0 %v2122
        %2176 = vmatpush.bf16.msra.mxu0 %v2121
        %2177 = vmatmul.bf16.gmra.mxu0 %v817
        %v2178 = vpop.f32.mrf.mxu0
        %v2179 = vadd.f32 0.0, %v2178
        %v2180 = vpop.f32.mrf.mxu0
        %v2181 = vadd.f32 0.0, %v2180
        %2182 = vmatmul.bf16.gmra.mxu0 %v818
        %v2183 = vpop.f32.mrf.mxu0
        %v2184 = vadd.f32 0.0, %v2183
        %v2185 = vpop.f32.mrf.mxu0
        %v2186 = vadd.f32 0.0, %v2185
        %2187 = vmatmul.bf16.gmra.mxu0 %v819
        %v2188 = vpop.f32.mrf.mxu0
        %v2189 = vadd.f32 0.0, %v2188
        %v2190 = vpop.f32.mrf.mxu0
        %v2191 = vadd.f32 0.0, %v2190
        %2192 = vmatmul.bf16.gmra.mxu0 %v820
        %v2193 = vpop.f32.mrf.mxu0
        %v2194 = vadd.f32 0.0, %v2193
        %v2195 = vpop.f32.mrf.mxu0
        %v2196 = vadd.f32 0.0, %v2195
        %2197 = vmatmul.bf16.gmra.mxu0 %v821
        %v2198 = vpop.f32.mrf.mxu0
        %v2199 = vadd.f32 0.0, %v2198
        %v2200 = vpop.f32.mrf.mxu0
        %v2201 = vadd.f32 0.0, %v2200
        %2202 = vmatmul.bf16.gmra.mxu0 %v822
        %v2203 = vpop.f32.mrf.mxu0
        %v2204 = vadd.f32 0.0, %v2203
        %v2205 = vpop.f32.mrf.mxu0
        %v2206 = vadd.f32 0.0, %v2205
        %2207 = vmatmul.bf16.gmra.mxu0 %v823
        %v2208 = vpop.f32.mrf.mxu0
        %v2209 = vadd.f32 0.0, %v2208
        %v2210 = vpop.f32.mrf.mxu0
        %v2211 = vadd.f32 0.0, %v2210
        %2212 = vmatmul.bf16.gmra.mxu0 %v824
        %v2213 = vpop.f32.mrf.mxu0
        %v2214 = vadd.f32 0.0, %v2213
        %v2215 = vpop.f32.mrf.mxu0
        %v2216 = vadd.f32 0.0, %v2215
        %2217 = vmatmul.bf16.gmra.mxu0 %v825
        %v2218 = vpop.f32.mrf.mxu0
        %v2219 = vadd.f32 0.0, %v2218
        %v2220 = vpop.f32.mrf.mxu0
        %v2221 = vadd.f32 0.0, %v2220
        %2222 = vmatmul.bf16.gmra.mxu0 %v826
        %v2223 = vpop.f32.mrf.mxu0
        %v2224 = vadd.f32 0.0, %v2223
        %v2225 = vpop.f32.mrf.mxu0
        %v2226 = vadd.f32 0.0, %v2225
        %2227 = vmatmul.bf16.gmra.mxu0 %v827
        %v2228 = vpop.f32.mrf.mxu0
        %v2229 = vadd.f32 0.0, %v2228
        %v2230 = vpop.f32.mrf.mxu0
        %v2231 = vadd.f32 0.0, %v2230
        %2232 = vmatmul.bf16.gmra.mxu0 %v828
        %v2233 = vpop.f32.mrf.mxu0
        %v2234 = vadd.f32 0.0, %v2233
        %v2235 = vpop.f32.mrf.mxu0
        %v2236 = vadd.f32 0.0, %v2235
        %2237 = vmatmul.bf16.gmra.mxu0 %v829
        %v2238 = vpop.f32.mrf.mxu0
        %v2239 = vadd.f32 0.0, %v2238
        %v2240 = vpop.f32.mrf.mxu0
        %v2241 = vadd.f32 0.0, %v2240
        %2242 = vmatmul.bf16.gmra.mxu0 %v830
        %v2243 = vpop.f32.mrf.mxu0
        %v2244 = vadd.f32 0.0, %v2243
        %v2245 = vpop.f32.mrf.mxu0
        %v2246 = vadd.f32 0.0, %v2245
        %2247 = vmatmul.bf16.gmra.mxu0 %v831
        %v2248 = vpop.f32.mrf.mxu0
        %v2249 = vadd.f32 0.0, %v2248
        %v2250 = vpop.f32.mrf.mxu0
        %v2251 = vadd.f32 0.0, %v2250
        %2252 = vmatmul.bf16.gmra.mxu0 %v832
        %v2253 = vpop.f32.mrf.mxu0
        %v2254 = vadd.f32 0.0, %v2253
        %v2255 = vpop.f32.mrf.mxu0
        %v2256 = vadd.f32 0.0, %v2255
        %2257 = vdwg.mxu0
        %2258 = vmatpush.bf16.msra.mxu0 %v2136
        %2259 = vmatpush.bf16.msra.mxu0 %v2135
        %2260 = vmatpush.bf16.msra.mxu0 %v2134
        %2261 = vmatpush.bf16.msra.mxu0 %v2133
        %2262 = vmatpush.bf16.msra.mxu0 %v2132
        %2263 = vmatpush.bf16.msra.mxu0 %v2131
        %2264 = vmatpush.bf16.msra.mxu0 %v2130
        %2265 = vmatpush.bf16.msra.mxu0 %v2129
        %2266 = vmatmul.bf16.gmra.mxu0 %v919
        %v2267 = vpop.f32.mrf.mxu0
        %v2268 = vadd.f32 %v2179, %v2267
        %v2269 = vpop.f32.mrf.mxu0
        %v2270 = vadd.f32 %v2181, %v2269
        %2271 = vmatmul.bf16.gmra.mxu0 %v920
        %v2272 = vpop.f32.mrf.mxu0
        %v2273 = vadd.f32 %v2184, %v2272
        %v2274 = vpop.f32.mrf.mxu0
        %v2275 = vadd.f32 %v2186, %v2274
        %2276 = vmatmul.bf16.gmra.mxu0 %v921
        %v2277 = vpop.f32.mrf.mxu0
        %v2278 = vadd.f32 %v2189, %v2277
        %v2279 = vpop.f32.mrf.mxu0
        %v2280 = vadd.f32 %v2191, %v2279
        %2281 = vmatmul.bf16.gmra.mxu0 %v922
        %v2282 = vpop.f32.mrf.mxu0
        %v2283 = vadd.f32 %v2194, %v2282
        %v2284 = vpop.f32.mrf.mxu0
        %v2285 = vadd.f32 %v2196, %v2284
        %2286 = vmatmul.bf16.gmra.mxu0 %v923
        %v2287 = vpop.f32.mrf.mxu0
        %v2288 = vadd.f32 %v2199, %v2287
        %v2289 = vpop.f32.mrf.mxu0
        %v2290 = vadd.f32 %v2201, %v2289
        %2291 = vmatmul.bf16.gmra.mxu0 %v924
        %v2292 = vpop.f32.mrf.mxu0
        %v2293 = vadd.f32 %v2204, %v2292
        %v2294 = vpop.f32.mrf.mxu0
        %v2295 = vadd.f32 %v2206, %v2294
        %2296 = vmatmul.bf16.gmra.mxu0 %v925
        %v2297 = vpop.f32.mrf.mxu0
        %v2298 = vadd.f32 %v2209, %v2297
        %v2299 = vpop.f32.mrf.mxu0
        %v2300 = vadd.f32 %v2211, %v2299
        %2301 = vmatmul.bf16.gmra.mxu0 %v926
        %v2302 = vpop.f32.mrf.mxu0
        %v2303 = vadd.f32 %v2214, %v2302
        %v2304 = vpop.f32.mrf.mxu0
        %v2305 = vadd.f32 %v2216, %v2304
        %2306 = vmatmul.bf16.gmra.mxu0 %v927
        %v2307 = vpop.f32.mrf.mxu0
        %v2308 = vadd.f32 %v2219, %v2307
        %v2309 = vpop.f32.mrf.mxu0
        %v2310 = vadd.f32 %v2221, %v2309
        %2311 = vmatmul.bf16.gmra.mxu0 %v928
        %v2312 = vpop.f32.mrf.mxu0
        %v2313 = vadd.f32 %v2224, %v2312
        %v2314 = vpop.f32.mrf.mxu0
        %v2315 = vadd.f32 %v2226, %v2314
        %2316 = vmatmul.bf16.gmra.mxu0 %v929
        %v2317 = vpop.f32.mrf.mxu0
        %v2318 = vadd.f32 %v2229, %v2317
        %v2319 = vpop.f32.mrf.mxu0
        %v2320 = vadd.f32 %v2231, %v2319
        %2321 = vmatmul.bf16.gmra.mxu0 %v930
        %v2322 = vpop.f32.mrf.mxu0
        %v2323 = vadd.f32 %v2234, %v2322
        %v2324 = vpop.f32.mrf.mxu0
        %v2325 = vadd.f32 %v2236, %v2324
        %2326 = vmatmul.bf16.gmra.mxu0 %v931
        %v2327 = vpop.f32.mrf.mxu0
        %v2328 = vadd.f32 %v2239, %v2327
        %v2329 = vpop.f32.mrf.mxu0
        %v2330 = vadd.f32 %v2241, %v2329
        %2331 = vmatmul.bf16.gmra.mxu0 %v932
        %v2332 = vpop.f32.mrf.mxu0
        %v2333 = vadd.f32 %v2244, %v2332
        %v2334 = vpop.f32.mrf.mxu0
        %v2335 = vadd.f32 %v2246, %v2334
        %2336 = vmatmul.bf16.gmra.mxu0 %v933
        %v2337 = vpop.f32.mrf.mxu0
        %v2338 = vadd.f32 %v2249, %v2337
        %v2339 = vpop.f32.mrf.mxu0
        %v2340 = vadd.f32 %v2251, %v2339
        %2341 = vmatmul.bf16.gmra.mxu0 %v917
        %v2342 = vpop.f32.mrf.mxu0
        %v2343 = vadd.f32 %v2254, %v2342
        %v2344 = vpop.f32.mrf.mxu0
        %v2345 = vadd.f32 %v2256, %v2344
        %2346 = vdwg.mxu0
        %2347 = vmatpush.bf16.msra.mxu0 %v2144
        %2348 = vmatpush.bf16.msra.mxu0 %v2143
        %2349 = vmatpush.bf16.msra.mxu0 %v2142
        %2350 = vmatpush.bf16.msra.mxu0 %v2141
        %2351 = vmatpush.bf16.msra.mxu0 %v2140
        %2352 = vmatpush.bf16.msra.mxu0 %v2139
        %2353 = vmatpush.bf16.msra.mxu0 %v2138
        %2354 = vmatpush.bf16.msra.mxu0 %v2137
        %2355 = vmatmul.bf16.gmra.mxu0 %v1023
        %v2356 = vpop.f32.mrf.mxu0
        %v2357 = vadd.f32 %v2268, %v2356
        %v2358 = vpop.f32.mrf.mxu0
        %v2359 = vadd.f32 %v2270, %v2358
        %2360 = vmatmul.bf16.gmra.mxu0 %v1024
        %v2361 = vpop.f32.mrf.mxu0
        %v2362 = vadd.f32 %v2273, %v2361
        %v2363 = vpop.f32.mrf.mxu0
        %v2364 = vadd.f32 %v2275, %v2363
        %2365 = vmatmul.bf16.gmra.mxu0 %v1025
        %v2366 = vpop.f32.mrf.mxu0
        %v2367 = vadd.f32 %v2278, %v2366
        %v2368 = vpop.f32.mrf.mxu0
        %v2369 = vadd.f32 %v2280, %v2368
        %2370 = vmatmul.bf16.gmra.mxu0 %v1026
        %v2371 = vpop.f32.mrf.mxu0
        %v2372 = vadd.f32 %v2283, %v2371
        %v2373 = vpop.f32.mrf.mxu0
        %v2374 = vadd.f32 %v2285, %v2373
        %2375 = vmatmul.bf16.gmra.mxu0 %v1027
        %v2376 = vpop.f32.mrf.mxu0
        %v2377 = vadd.f32 %v2288, %v2376
        %v2378 = vpop.f32.mrf.mxu0
        %v2379 = vadd.f32 %v2290, %v2378
        %2380 = vmatmul.bf16.gmra.mxu0 %v1028
        %v2381 = vpop.f32.mrf.mxu0
        %v2382 = vadd.f32 %v2293, %v2381
        %v2383 = vpop.f32.mrf.mxu0
        %v2384 = vadd.f32 %v2295, %v2383
        %2385 = vmatmul.bf16.gmra.mxu0 %v1029
        %v2386 = vpop.f32.mrf.mxu0
        %v2387 = vadd.f32 %v2298, %v2386
        %v2388 = vpop.f32.mrf.mxu0
        %v2389 = vadd.f32 %v2300, %v2388
        %2390 = vmatmul.bf16.gmra.mxu0 %v1030
        %v2391 = vpop.f32.mrf.mxu0
        %v2392 = vadd.f32 %v2303, %v2391
        %v2393 = vpop.f32.mrf.mxu0
        %v2394 = vadd.f32 %v2305, %v2393
        %2395 = vmatmul.bf16.gmra.mxu0 %v1031
        %v2396 = vpop.f32.mrf.mxu0
        %v2397 = vadd.f32 %v2308, %v2396
        %v2398 = vpop.f32.mrf.mxu0
        %v2399 = vadd.f32 %v2310, %v2398
        %2400 = vmatmul.bf16.gmra.mxu0 %v1032
        %v2401 = vpop.f32.mrf.mxu0
        %v2402 = vadd.f32 %v2313, %v2401
        %v2403 = vpop.f32.mrf.mxu0
        %v2404 = vadd.f32 %v2315, %v2403
        %2405 = vmatmul.bf16.gmra.mxu0 %v1033
        %v2406 = vpop.f32.mrf.mxu0
        %v2407 = vadd.f32 %v2318, %v2406
        %v2408 = vpop.f32.mrf.mxu0
        %v2409 = vadd.f32 %v2320, %v2408
        %2410 = vmatmul.bf16.gmra.mxu0 %v1034
        %v2411 = vpop.f32.mrf.mxu0
        %v2412 = vadd.f32 %v2323, %v2411
        %v2413 = vpop.f32.mrf.mxu0
        %v2414 = vadd.f32 %v2325, %v2413
        %2415 = vmatmul.bf16.gmra.mxu0 %v1035
        %v2416 = vpop.f32.mrf.mxu0
        %v2417 = vadd.f32 %v2328, %v2416
        %v2418 = vpop.f32.mrf.mxu0
        %v2419 = vadd.f32 %v2330, %v2418
        %2420 = vmatmul.bf16.gmra.mxu0 %v1036
        %v2421 = vpop.f32.mrf.mxu0
        %v2422 = vadd.f32 %v2333, %v2421
        %v2423 = vpop.f32.mrf.mxu0
        %v2424 = vadd.f32 %v2335, %v2423
        %2425 = vmatmul.bf16.gmra.mxu0 %v1037
        %v2426 = vpop.f32.mrf.mxu0
        %v2427 = vadd.f32 %v2338, %v2426
        %v2428 = vpop.f32.mrf.mxu0
        %v2429 = vadd.f32 %v2340, %v2428
        %2430 = vmatmul.bf16.gmra.mxu0 %v1038
        %v2431 = vpop.f32.mrf.mxu0
        %v2432 = vadd.f32 %v2343, %v2431
        %v2433 = vpop.f32.mrf.mxu0
        %v2434 = vadd.f32 %v2345, %v2433
        %2435 = vdwg.mxu0
        %v2436 = vadd.f32 %v1897, %v2357
        %v2437 = vadd.f32 %v1899, %v2359
        %v2438 = vadd.f32 %v1902, %v2362
        %v2439 = vadd.f32 %v1904, %v2364
        %v2440 = vadd.f32 %v1907, %v2367
        %v2441 = vadd.f32 %v1909, %v2369
        %v2442 = vadd.f32 %v1912, %v2372
        %v2443 = vadd.f32 %v1914, %v2374
        %v2444 = vadd.f32 %v1917, %v2377
        %v2445 = vadd.f32 %v1919, %v2379
        %v2446 = vadd.f32 %v1922, %v2382
        %v2447 = vadd.f32 %v1924, %v2384
        %v2448 = vadd.f32 %v1927, %v2387
        %v2449 = vadd.f32 %v1929, %v2389
        %v2450 = vadd.f32 %v1932, %v2392
        %v2451 = vadd.f32 %v1934, %v2394
        %v2452 = vadd.f32 %v1937, %v2397
        %v2453 = vadd.f32 %v1939, %v2399
        %v2454 = vadd.f32 %v1942, %v2402
        %v2455 = vadd.f32 %v1944, %v2404
        %v2456 = vadd.f32 %v1947, %v2407
        %v2457 = vadd.f32 %v1949, %v2409
        %v2458 = vadd.f32 %v1952, %v2412
        %v2459 = vadd.f32 %v1954, %v2414
        %v2460 = vadd.f32 %v1957, %v2417
        %v2461 = vadd.f32 %v1959, %v2419
        %v2462 = vadd.f32 %v1962, %v2422
        %v2463 = vadd.f32 %v1964, %v2424
        %v2464 = vadd.f32 %v1967, %v2427
        %v2465 = vadd.f32 %v1969, %v2429
        %v2466 = vadd.f32 %v1972, %v2432
        %v2467 = vadd.f32 %v1974, %v2434
        %v2468 = vld [vmem:[%s3] sm:$0x1]
        %v2469 = vld [vmem:[%s3 + $0x1] sm:$0x1]
        %v2470 = vperm.slane %v2468, 0
        %v2471 = vmul.f32 %v2436, %v2470
        %v2472 = vmul.f32 %v2437, %v2470
        %v2473 = vmul.f32 %v2438, %v2470
        %v2474 = vmul.f32 %v2439, %v2470
        %v2475 = vmul.f32 %v2440, %v2470
        %v2476 = vmul.f32 %v2441, %v2470
        %v2477 = vmul.f32 %v2442, %v2470
        %v2478 = vmul.f32 %v2443, %v2470
        %v2479 = vmul.f32 %v2444, %v2470
        %v2480 = vmul.f32 %v2445, %v2470
        %v2481 = vmul.f32 %v2446, %v2470
        %v2482 = vmul.f32 %v2447, %v2470
        %v2483 = vmul.f32 %v2448, %v2470
        %v2484 = vmul.f32 %v2449, %v2470
        %v2485 = vmul.f32 %v2450, %v2470
        %v2486 = vmul.f32 %v2451, %v2470
        %v2487 = vmul.f32 %v2452, %v2470
        %v2488 = vmul.f32 %v2453, %v2470
        %v2489 = vmul.f32 %v2454, %v2470
        %v2490 = vmul.f32 %v2455, %v2470
        %v2491 = vmul.f32 %v2456, %v2470
        %v2492 = vmul.f32 %v2457, %v2470
        %v2493 = vmul.f32 %v2458, %v2470
        %v2494 = vmul.f32 %v2459, %v2470
        %v2495 = vmul.f32 %v2460, %v2470
        %v2496 = vmul.f32 %v2461, %v2470
        %v2497 = vmul.f32 %v2462, %v2470
        %v2498 = vmul.f32 %v2463, %v2470
        %v2499 = vmul.f32 %v2464, %v2470
        %v2500 = vmul.f32 %v2465, %v2470
        %v2501 = vmul.f32 %v2466, %v2470
        %v2502 = vmul.f32 %v2467, %v2470
        %v2503 = vperm.slane %v2469, 0
        %v2504 = vadd.f32 %v2471, %v2503
        %v2505 = vadd.f32 %v2472, %v2503
        %v2506 = vadd.f32 %v2473, %v2503
        %v2507 = vadd.f32 %v2474, %v2503
        %v2508 = vadd.f32 %v2475, %v2503
        %v2509 = vadd.f32 %v2476, %v2503
        %v2510 = vadd.f32 %v2477, %v2503
        %v2511 = vadd.f32 %v2478, %v2503
        %v2512 = vadd.f32 %v2479, %v2503
        %v2513 = vadd.f32 %v2480, %v2503
        %v2514 = vadd.f32 %v2481, %v2503
        %v2515 = vadd.f32 %v2482, %v2503
        %v2516 = vadd.f32 %v2483, %v2503
        %v2517 = vadd.f32 %v2484, %v2503
        %v2518 = vadd.f32 %v2485, %v2503
        %v2519 = vadd.f32 %v2486, %v2503
        %v2520 = vadd.f32 %v2487, %v2503
        %v2521 = vadd.f32 %v2488, %v2503
        %v2522 = vadd.f32 %v2489, %v2503
        %v2523 = vadd.f32 %v2490, %v2503
        %v2524 = vadd.f32 %v2491, %v2503
        %v2525 = vadd.f32 %v2492, %v2503
        %v2526 = vadd.f32 %v2493, %v2503
        %v2527 = vadd.f32 %v2494, %v2503
        %v2528 = vadd.f32 %v2495, %v2503
        %v2529 = vadd.f32 %v2496, %v2503
        %v2530 = vadd.f32 %v2497, %v2503
        %v2531 = vadd.f32 %v2498, %v2503
        %v2532 = vadd.f32 %v2499, %v2503
        %v2533 = vadd.f32 %v2500, %v2503
        %v2534 = vadd.f32 %v2501, %v2503
        %v2535 = vadd.f32 %v2502, %v2503
        %v2536 = vmax.f32 %v2504, 0.0
        %v2537 = vmax.f32 %v2505, 0.0
        %v2538 = vmax.f32 %v2506, 0.0
        %v2539 = vmax.f32 %v2507, 0.0
        %v2540 = vmax.f32 %v2508, 0.0
        %v2541 = vmax.f32 %v2509, 0.0
        %v2542 = vmax.f32 %v2510, 0.0
        %v2543 = vmax.f32 %v2511, 0.0
        %v2544 = vmax.f32 %v2512, 0.0
        %v2545 = vmax.f32 %v2513, 0.0
        %v2546 = vmax.f32 %v2514, 0.0
        %v2547 = vmax.f32 %v2515, 0.0
        %v2548 = vmax.f32 %v2516, 0.0
        %v2549 = vmax.f32 %v2517, 0.0
        %v2550 = vmax.f32 %v2518, 0.0
        %v2551 = vmax.f32 %v2519, 0.0
        %v2552 = vmax.f32 %v2520, 0.0
        %v2553 = vmax.f32 %v2521, 0.0
        %v2554 = vmax.f32 %v2522, 0.0
        %v2555 = vmax.f32 %v2523, 0.0
        %v2556 = vmax.f32 %v2524, 0.0
        %v2557 = vmax.f32 %v2525, 0.0
        %v2558 = vmax.f32 %v2526, 0.0
        %v2559 = vmax.f32 %v2527, 0.0
        %v2560 = vmax.f32 %v2528, 0.0
        %v2561 = vmax.f32 %v2529, 0.0
        %v2562 = vmax.f32 %v2530, 0.0
        %v2563 = vmax.f32 %v2531, 0.0
        %v2564 = vmax.f32 %v2532, 0.0
        %v2565 = vmax.f32 %v2533, 0.0
        %v2566 = vmax.f32 %v2534, 0.0
        %v2567 = vmax.f32 %v2535, 0.0
        %v2568 = vrot.slane %v2536, 7
        %v2569 = vrot.slane %v2537, 7
        %v2570 = vrot.slane %v2538, 7
        %v2571 = vrot.slane %v2539, 7
        %v2572 = vrot.slane %v2540, 7
        %v2573 = vrot.slane %v2541, 7
        %v2574 = vrot.slane %v2542, 7
        %v2575 = vrot.slane %v2543, 7
        %v2576 = vrot.slane %v2544, 7
        %v2577 = vrot.slane %v2545, 7
        %v2578 = vrot.slane %v2546, 7
        %v2579 = vrot.slane %v2547, 7
        %v2580 = vrot.slane %v2548, 7
        %v2581 = vrot.slane %v2549, 7
        %v2582 = vrot.slane %v2550, 7
        %v2583 = vrot.slane %v2551, 7
        %v2584 = vrot.slane %v2552, 7
        %v2585 = vrot.slane %v2553, 7
        %v2586 = vrot.slane %v2554, 7
        %v2587 = vrot.slane %v2555, 7
        %v2588 = vrot.slane %v2556, 7
        %v2589 = vrot.slane %v2557, 7
        %v2590 = vrot.slane %v2558, 7
        %v2591 = vrot.slane %v2559, 7
        %v2592 = vrot.slane %v2560, 7
        %v2593 = vrot.slane %v2561, 7
        %v2594 = vrot.slane %v2562, 7
        %v2595 = vrot.slane %v2563, 7
        %v2596 = vrot.slane %v2564, 7
        %v2597 = vrot.slane %v2565, 7
        %v2598 = vrot.slane %v2566, 7
        %v2599 = vrot.slane %v2567, 7
        %v2600 = vsel %vm472, %v2599, 0.0
        %v2601 = vsel %vm472, %v2598, %v2599
        %v2602 = vsel %vm472, %v2597, %v2598
        %v2603 = vsel %vm472, %v2596, %v2597
        %v2604 = vsel %vm472, %v2595, %v2596
        %v2605 = vsel %vm472, %v2594, %v2595
        %v2606 = vsel %vm472, %v2593, %v2594
        %v2607 = vsel %vm472, %v2592, %v2593
        %v2608 = vsel %vm472, %v2591, %v2592
        %v2609 = vsel %vm472, %v2590, %v2591
        %v2610 = vsel %vm472, %v2589, %v2590
        %v2611 = vsel %vm472, %v2588, %v2589
        %v2612 = vsel %vm472, %v2587, %v2588
        %v2613 = vsel %vm472, %v2586, %v2587
        %v2614 = vsel %vm472, %v2585, %v2586
        %v2615 = vsel %vm472, %v2584, %v2585
        %v2616 = vsel %vm472, %v2583, %v2584
        %v2617 = vsel %vm472, %v2582, %v2583
        %v2618 = vsel %vm472, %v2581, %v2582
        %v2619 = vsel %vm472, %v2580, %v2581
        %v2620 = vsel %vm472, %v2579, %v2580
        %v2621 = vsel %vm472, %v2578, %v2579
        %v2622 = vsel %vm472, %v2577, %v2578
        %v2623 = vsel %vm472, %v2576, %v2577
        %v2624 = vsel %vm472, %v2575, %v2576
        %v2625 = vsel %vm472, %v2574, %v2575
        %v2626 = vsel %vm472, %v2573, %v2574
        %v2627 = vsel %vm472, %v2572, %v2573
        %v2628 = vsel %vm472, %v2571, %v2572
        %v2629 = vsel %vm472, %v2570, %v2571
        %v2630 = vsel %vm472, %v2569, %v2570
        %v2631 = vsel %vm472, %v2568, %v2569
        %v2632 = vsel %vm472, 0.0, %v2568
        %v2633 = vmul.f32 %v2632, %v332
        %v2634 = vmul.f32 %v2631, %v333
        %v2635 = vmul.f32 %v2630, %v332
        %v2636 = vmul.f32 %v2629, %v333
        %v2637 = vmul.f32 %v2628, %v332
        %v2638 = vmul.f32 %v2627, %v333
        %v2639 = vmul.f32 %v2626, %v332
        %v2640 = vmul.f32 %v2625, %v333
        %v2641 = vmul.f32 %v2624, %v332
        %v2642 = vmul.f32 %v2623, %v333
        %v2643 = vmul.f32 %v2622, %v332
        %v2644 = vmul.f32 %v2621, %v333
        %v2645 = vmul.f32 %v2620, %v332
        %v2646 = vmul.f32 %v2619, %v333
        %v2647 = vmul.f32 %v2618, %v332
        %v2648 = vmul.f32 %v2617, %v333
        %v2649 = vmul.f32 %v2616, %v332
        %v2650 = vmul.f32 %v2615, %v333
        %v2651 = vmul.f32 %v2614, %v332
        %v2652 = vmul.f32 %v2613, %v333
        %v2653 = vmul.f32 %v2612, %v332
        %v2654 = vmul.f32 %v2611, %v333
        %v2655 = vmul.f32 %v2610, %v332
        %v2656 = vmul.f32 %v2609, %v333
        %v2657 = vmul.f32 %v2608, %v332
        %v2658 = vmul.f32 %v2607, %v333
        %v2659 = vmul.f32 %v2606, %v332
        %v2660 = vmul.f32 %v2605, %v333
        %v2661 = vmul.f32 %v2604, %v332
        %v2662 = vmul.f32 %v2603, %v333
        %v2663 = vmul.f32 %v2602, %v332
        %v2664 = vmul.f32 %v2601, %v333
        %v2665 = vmul.f32 %v2600, %v332
        %v2666 = vpack.c.bf16 %v2633, %v2633
        %v2667 = vpack.c.bf16 %v2634, %v2634
        %v2668 = vpack.c.bf16 %v2635, %v2635
        %v2669 = vpack.c.bf16 %v2636, %v2636
        %v2670 = vpack.c.bf16 %v2637, %v2637
        %v2671 = vpack.c.bf16 %v2638, %v2638
        %v2672 = vpack.c.bf16 %v2639, %v2639
        %v2673 = vpack.c.bf16 %v2640, %v2640
        %v2674 = vpack.c.bf16 %v2641, %v2641
        %v2675 = vpack.c.bf16 %v2642, %v2642
        %v2676 = vpack.c.bf16 %v2643, %v2643
        %v2677 = vpack.c.bf16 %v2644, %v2644
        %v2678 = vpack.c.bf16 %v2645, %v2645
        %v2679 = vpack.c.bf16 %v2646, %v2646
        %v2680 = vpack.c.bf16 %v2647, %v2647
        %v2681 = vpack.c.bf16 %v2648, %v2648
        %v2682 = vpack.c.bf16 %v2649, %v2649
        %v2683 = vpack.c.bf16 %v2650, %v2650
        %v2684 = vpack.c.bf16 %v2651, %v2651
        %v2685 = vpack.c.bf16 %v2652, %v2652
        %v2686 = vpack.c.bf16 %v2653, %v2653
        %v2687 = vpack.c.bf16 %v2654, %v2654
        %v2688 = vpack.c.bf16 %v2655, %v2655
        %v2689 = vpack.c.bf16 %v2656, %v2656
        %v2690 = vpack.c.bf16 %v2657, %v2657
        %v2691 = vpack.c.bf16 %v2658, %v2658
        %v2692 = vpack.c.bf16 %v2659, %v2659
        %v2693 = vpack.c.bf16 %v2660, %v2660
        %v2694 = vpack.c.bf16 %v2661, %v2661
        %v2695 = vpack.c.bf16 %v2662, %v2662
        %v2696 = vpack.c.bf16 %v2663, %v2663
        %v2697 = vpack.c.bf16 %v2664, %v2664
        %v2698 = vpack.c.bf16 %v2665, %v2665
        %v2699 = vpack.c.bf16 %v2536, %v2536
        %v2700 = vpack.c.bf16 %v2537, %v2537
        %v2701 = vpack.c.bf16 %v2538, %v2538
        %v2702 = vpack.c.bf16 %v2539, %v2539
        %v2703 = vpack.c.bf16 %v2540, %v2540
        %v2704 = vpack.c.bf16 %v2541, %v2541
        %v2705 = vpack.c.bf16 %v2542, %v2542
        %v2706 = vpack.c.bf16 %v2543, %v2543
        %v2707 = vpack.c.bf16 %v2544, %v2544
        %v2708 = vpack.c.bf16 %v2545, %v2545
        %v2709 = vpack.c.bf16 %v2546, %v2546
        %v2710 = vpack.c.bf16 %v2547, %v2547
        %v2711 = vpack.c.bf16 %v2548, %v2548
        %v2712 = vpack.c.bf16 %v2549, %v2549
        %v2713 = vpack.c.bf16 %v2550, %v2550
        %v2714 = vpack.c.bf16 %v2551, %v2551
        %v2715 = vpack.c.bf16 %v2552, %v2552
        %v2716 = vpack.c.bf16 %v2553, %v2553
        %v2717 = vpack.c.bf16 %v2554, %v2554
        %v2718 = vpack.c.bf16 %v2555, %v2555
        %v2719 = vpack.c.bf16 %v2556, %v2556
        %v2720 = vpack.c.bf16 %v2557, %v2557
        %v2721 = vpack.c.bf16 %v2558, %v2558
        %v2722 = vpack.c.bf16 %v2559, %v2559
        %v2723 = vpack.c.bf16 %v2560, %v2560
        %v2724 = vpack.c.bf16 %v2561, %v2561
        %v2725 = vpack.c.bf16 %v2562, %v2562
        %v2726 = vpack.c.bf16 %v2563, %v2563
        %v2727 = vpack.c.bf16 %v2564, %v2564
        %v2728 = vpack.c.bf16 %v2565, %v2565
        %v2729 = vpack.c.bf16 %v2566, %v2566
        %v2730 = vpack.c.bf16 %v2567, %v2567
        %v2731 = vrot.slane %v2536, 1
        %v2732 = vrot.slane %v2537, 1
        %v2733 = vrot.slane %v2538, 1
        %v2734 = vrot.slane %v2539, 1
        %v2735 = vrot.slane %v2540, 1
        %v2736 = vrot.slane %v2541, 1
        %v2737 = vrot.slane %v2542, 1
        %v2738 = vrot.slane %v2543, 1
        %v2739 = vrot.slane %v2544, 1
        %v2740 = vrot.slane %v2545, 1
        %v2741 = vrot.slane %v2546, 1
        %v2742 = vrot.slane %v2547, 1
        %v2743 = vrot.slane %v2548, 1
        %v2744 = vrot.slane %v2549, 1
        %v2745 = vrot.slane %v2550, 1
        %v2746 = vrot.slane %v2551, 1
        %v2747 = vrot.slane %v2552, 1
        %v2748 = vrot.slane %v2553, 1
        %v2749 = vrot.slane %v2554, 1
        %v2750 = vrot.slane %v2555, 1
        %v2751 = vrot.slane %v2556, 1
        %v2752 = vrot.slane %v2557, 1
        %v2753 = vrot.slane %v2558, 1
        %v2754 = vrot.slane %v2559, 1
        %v2755 = vrot.slane %v2560, 1
        %v2756 = vrot.slane %v2561, 1
        %v2757 = vrot.slane %v2562, 1
        %v2758 = vrot.slane %v2563, 1
        %v2759 = vrot.slane %v2564, 1
        %v2760 = vrot.slane %v2565, 1
        %v2761 = vrot.slane %v2566, 1
        %v2762 = vrot.slane %v2567, 1
        %v2763 = vsel %vm641, %v2762, 0.0
        %v2764 = vsel %vm641, %v2761, %v2762
        %v2765 = vsel %vm641, %v2760, %v2761
        %v2766 = vsel %vm641, %v2759, %v2760
        %v2767 = vsel %vm641, %v2758, %v2759
        %v2768 = vsel %vm641, %v2757, %v2758
        %v2769 = vsel %vm641, %v2756, %v2757
        %v2770 = vsel %vm641, %v2755, %v2756
        %v2771 = vsel %vm641, %v2754, %v2755
        %v2772 = vsel %vm641, %v2753, %v2754
        %v2773 = vsel %vm641, %v2752, %v2753
        %v2774 = vsel %vm641, %v2751, %v2752
        %v2775 = vsel %vm641, %v2750, %v2751
        %v2776 = vsel %vm641, %v2749, %v2750
        %v2777 = vsel %vm641, %v2748, %v2749
        %v2778 = vsel %vm641, %v2747, %v2748
        %v2779 = vsel %vm641, %v2746, %v2747
        %v2780 = vsel %vm641, %v2745, %v2746
        %v2781 = vsel %vm641, %v2744, %v2745
        %v2782 = vsel %vm641, %v2743, %v2744
        %v2783 = vsel %vm641, %v2742, %v2743
        %v2784 = vsel %vm641, %v2741, %v2742
        %v2785 = vsel %vm641, %v2740, %v2741
        %v2786 = vsel %vm641, %v2739, %v2740
        %v2787 = vsel %vm641, %v2738, %v2739
        %v2788 = vsel %vm641, %v2737, %v2738
        %v2789 = vsel %vm641, %v2736, %v2737
        %v2790 = vsel %vm641, %v2735, %v2736
        %v2791 = vsel %vm641, %v2734, %v2735
        %v2792 = vsel %vm641, %v2733, %v2734
        %v2793 = vsel %vm641, %v2732, %v2733
        %v2794 = vsel %vm641, %v2731, %v2732
        %v2795 = vsel %vm641, 0.0, %v2731
        %v2796 = vmul.f32 %v2795, %v339
        %v2797 = vmul.f32 %v2794, %v338
        %v2798 = vmul.f32 %v2793, %v339
        %v2799 = vmul.f32 %v2792, %v338
        %v2800 = vmul.f32 %v2791, %v339
        %v2801 = vmul.f32 %v2790, %v338
        %v2802 = vmul.f32 %v2789, %v339
        %v2803 = vmul.f32 %v2788, %v338
        %v2804 = vmul.f32 %v2787, %v339
        %v2805 = vmul.f32 %v2786, %v338
        %v2806 = vmul.f32 %v2785, %v339
        %v2807 = vmul.f32 %v2784, %v338
        %v2808 = vmul.f32 %v2783, %v339
        %v2809 = vmul.f32 %v2782, %v338
        %v2810 = vmul.f32 %v2781, %v339
        %v2811 = vmul.f32 %v2780, %v338
        %v2812 = vmul.f32 %v2779, %v339
        %v2813 = vmul.f32 %v2778, %v338
        %v2814 = vmul.f32 %v2777, %v339
        %v2815 = vmul.f32 %v2776, %v338
        %v2816 = vmul.f32 %v2775, %v339
        %v2817 = vmul.f32 %v2774, %v338
        %v2818 = vmul.f32 %v2773, %v339
        %v2819 = vmul.f32 %v2772, %v338
        %v2820 = vmul.f32 %v2771, %v339
        %v2821 = vmul.f32 %v2770, %v338
        %v2822 = vmul.f32 %v2769, %v339
        %v2823 = vmul.f32 %v2768, %v338
        %v2824 = vmul.f32 %v2767, %v339
        %v2825 = vmul.f32 %v2766, %v338
        %v2826 = vmul.f32 %v2765, %v339
        %v2827 = vmul.f32 %v2764, %v338
        %v2828 = vmul.f32 %v2763, %v339
        %v2829 = vpack.c.bf16 %v2796, %v2796
        %v2830 = vpack.c.bf16 %v2797, %v2797
        %v2831 = vpack.c.bf16 %v2798, %v2798
        %v2832 = vpack.c.bf16 %v2799, %v2799
        %v2833 = vpack.c.bf16 %v2800, %v2800
        %v2834 = vpack.c.bf16 %v2801, %v2801
        %v2835 = vpack.c.bf16 %v2802, %v2802
        %v2836 = vpack.c.bf16 %v2803, %v2803
        %v2837 = vpack.c.bf16 %v2804, %v2804
        %v2838 = vpack.c.bf16 %v2805, %v2805
        %v2839 = vpack.c.bf16 %v2806, %v2806
        %v2840 = vpack.c.bf16 %v2807, %v2807
        %v2841 = vpack.c.bf16 %v2808, %v2808
        %v2842 = vpack.c.bf16 %v2809, %v2809
        %v2843 = vpack.c.bf16 %v2810, %v2810
        %v2844 = vpack.c.bf16 %v2811, %v2811
        %v2845 = vpack.c.bf16 %v2812, %v2812
        %v2846 = vpack.c.bf16 %v2813, %v2813
        %v2847 = vpack.c.bf16 %v2814, %v2814
        %v2848 = vpack.c.bf16 %v2815, %v2815
        %v2849 = vpack.c.bf16 %v2816, %v2816
        %v2850 = vpack.c.bf16 %v2817, %v2817
        %v2851 = vpack.c.bf16 %v2818, %v2818
        %v2852 = vpack.c.bf16 %v2819, %v2819
        %v2853 = vpack.c.bf16 %v2820, %v2820
        %v2854 = vpack.c.bf16 %v2821, %v2821
        %v2855 = vpack.c.bf16 %v2822, %v2822
        %v2856 = vpack.c.bf16 %v2823, %v2823
        %v2857 = vpack.c.bf16 %v2824, %v2824
        %v2858 = vpack.c.bf16 %v2825, %v2825
        %v2859 = vpack.c.bf16 %v2826, %v2826
        %v2860 = vpack.c.bf16 %v2827, %v2827
        %v2861 = vpack.c.bf16 %v2828, %v2828
        %v2895 = vunpack.c.l.b16 %v2666
        %v2896 = vunpack.c.l.b16 %v2667
        %v2897 = vunpack.c.l.b16 %v2668
        %v2898 = vunpack.c.l.b16 %v2669
        %v2899 = vunpack.c.l.b16 %v2670
        %v2900 = vunpack.c.l.b16 %v2671
        %v2901 = vunpack.c.l.b16 %v2672
        %v2902 = vunpack.c.l.b16 %v2673
        %v2903 = vunpack.c.l.b16 %v2674
        %v2904 = vunpack.c.l.b16 %v2675
        %v2905 = vunpack.c.l.b16 %v2676
        %v2906 = vunpack.c.l.b16 %v2677
        %v2907 = vunpack.c.l.b16 %v2678
        %v2908 = vunpack.c.l.b16 %v2679
        %v2909 = vunpack.c.l.b16 %v2680
        %v2910 = vunpack.c.l.b16 %v2681
        %v2911 = vunpack.c.l.b16 %v2682
        %v2912 = vunpack.c.l.b16 %v2683
        %v2913 = vunpack.c.l.b16 %v2684
        %v2914 = vunpack.c.l.b16 %v2685
        %v2915 = vunpack.c.l.b16 %v2686
        %v2916 = vunpack.c.l.b16 %v2687
        %v2917 = vunpack.c.l.b16 %v2688
        %v2918 = vunpack.c.l.b16 %v2689
        %v2919 = vunpack.c.l.b16 %v2690
        %v2920 = vunpack.c.l.b16 %v2691
        %v2921 = vunpack.c.l.b16 %v2692
        %v2922 = vunpack.c.l.b16 %v2693
        %v2923 = vunpack.c.l.b16 %v2694
        %v2924 = vunpack.c.l.b16 %v2695
        %v2925 = vunpack.c.l.b16 %v2696
        %v2926 = vunpack.c.l.b16 %v2697
        %v2927 = vunpack.c.l.b16 %v2698
        %v2928 = vpack.c.b16 %v2896, %v2895
        %v2929 = vpack.c.b16 %v2898, %v2897
        %v2930 = vpack.c.b16 %v2900, %v2899
        %v2931 = vpack.c.b16 %v2902, %v2901
        %v2932 = vpack.c.b16 %v2904, %v2903
        %v2933 = vpack.c.b16 %v2906, %v2905
        %v2934 = vpack.c.b16 %v2908, %v2907
        %v2935 = vpack.c.b16 %v2910, %v2909
        %v2936 = vpack.c.b16 %v2912, %v2911
        %v2937 = vpack.c.b16 %v2914, %v2913
        %v2938 = vpack.c.b16 %v2916, %v2915
        %v2939 = vpack.c.b16 %v2918, %v2917
        %v2940 = vpack.c.b16 %v2920, %v2919
        %v2941 = vpack.c.b16 %v2922, %v2921
        %v2942 = vpack.c.b16 %v2924, %v2923
        %v2943 = vpack.c.b16 %v2926, %v2925
        %v2944 = vpack.c.b16 %v781, %v2927
        %v2994 = vunpack.c.l.b16 %v2699
        %v2995 = vunpack.c.l.b16 %v2700
        %v2996 = vunpack.c.l.b16 %v2701
        %v2997 = vunpack.c.l.b16 %v2702
        %v2998 = vunpack.c.l.b16 %v2703
        %v2999 = vunpack.c.l.b16 %v2704
        %v3000 = vunpack.c.l.b16 %v2705
        %v3001 = vunpack.c.l.b16 %v2706
        %v3002 = vunpack.c.l.b16 %v2707
        %v3003 = vunpack.c.l.b16 %v2708
        %v3004 = vunpack.c.l.b16 %v2709
        %v3005 = vunpack.c.l.b16 %v2710
        %v3006 = vunpack.c.l.b16 %v2711
        %v3007 = vunpack.c.l.b16 %v2712
        %v3008 = vunpack.c.l.b16 %v2713
        %v3009 = vunpack.c.l.b16 %v2714
        %v3010 = vunpack.c.l.b16 %v2715
        %v3011 = vunpack.c.l.b16 %v2716
        %v3012 = vunpack.c.l.b16 %v2717
        %v3013 = vunpack.c.l.b16 %v2718
        %v3014 = vunpack.c.l.b16 %v2719
        %v3015 = vunpack.c.l.b16 %v2720
        %v3016 = vunpack.c.l.b16 %v2721
        %v3017 = vunpack.c.l.b16 %v2722
        %v3018 = vunpack.c.l.b16 %v2723
        %v3019 = vunpack.c.l.b16 %v2724
        %v3020 = vunpack.c.l.b16 %v2725
        %v3021 = vunpack.c.l.b16 %v2726
        %v3022 = vunpack.c.l.b16 %v2727
        %v3023 = vunpack.c.l.b16 %v2728
        %v3024 = vunpack.c.l.b16 %v2729
        %v3025 = vunpack.c.l.b16 %v2730
        %v3026 = vpack.c.b16 %v2995, %v2994
        %v3027 = vpack.c.b16 %v2997, %v2996
        %v3028 = vpack.c.b16 %v2999, %v2998
        %v3029 = vpack.c.b16 %v3001, %v3000
        %v3030 = vpack.c.b16 %v3003, %v3002
        %v3031 = vpack.c.b16 %v3005, %v3004
        %v3032 = vpack.c.b16 %v3007, %v3006
        %v3033 = vpack.c.b16 %v3009, %v3008
        %v3034 = vpack.c.b16 %v3011, %v3010
        %v3035 = vpack.c.b16 %v3013, %v3012
        %v3036 = vpack.c.b16 %v3015, %v3014
        %v3037 = vpack.c.b16 %v3017, %v3016
        %v3038 = vpack.c.b16 %v3019, %v3018
        %v3039 = vpack.c.b16 %v3021, %v3020
        %v3040 = vpack.c.b16 %v3023, %v3022
        %v3041 = vpack.c.b16 %v3025, %v3024
        %v3091 = vunpack.c.l.b16 %v2829
        %v3092 = vunpack.c.l.b16 %v2830
        %v3093 = vunpack.c.l.b16 %v2831
        %v3094 = vunpack.c.l.b16 %v2832
        %v3095 = vunpack.c.l.b16 %v2833
        %v3096 = vunpack.c.l.b16 %v2834
        %v3097 = vunpack.c.l.b16 %v2835
        %v3098 = vunpack.c.l.b16 %v2836
        %v3099 = vunpack.c.l.b16 %v2837
        %v3100 = vunpack.c.l.b16 %v2838
        %v3101 = vunpack.c.l.b16 %v2839
        %v3102 = vunpack.c.l.b16 %v2840
        %v3103 = vunpack.c.l.b16 %v2841
        %v3104 = vunpack.c.l.b16 %v2842
        %v3105 = vunpack.c.l.b16 %v2843
        %v3106 = vunpack.c.l.b16 %v2844
        %v3107 = vunpack.c.l.b16 %v2845
        %v3108 = vunpack.c.l.b16 %v2846
        %v3109 = vunpack.c.l.b16 %v2847
        %v3110 = vunpack.c.l.b16 %v2848
        %v3111 = vunpack.c.l.b16 %v2849
        %v3112 = vunpack.c.l.b16 %v2850
        %v3113 = vunpack.c.l.b16 %v2851
        %v3114 = vunpack.c.l.b16 %v2852
        %v3115 = vunpack.c.l.b16 %v2853
        %v3116 = vunpack.c.l.b16 %v2854
        %v3117 = vunpack.c.l.b16 %v2855
        %v3118 = vunpack.c.l.b16 %v2856
        %v3119 = vunpack.c.l.b16 %v2857
        %v3120 = vunpack.c.l.b16 %v2858
        %v3121 = vunpack.c.l.b16 %v2859
        %v3122 = vunpack.c.l.b16 %v2860
        %v3123 = vunpack.c.l.b16 %v2861
        %v3124 = vpack.c.b16 %v3091, %v986
        %v3125 = vpack.c.b16 %v3093, %v3092
        %v3126 = vpack.c.b16 %v3095, %v3094
        %v3127 = vpack.c.b16 %v3097, %v3096
        %v3128 = vpack.c.b16 %v3099, %v3098
        %v3129 = vpack.c.b16 %v3101, %v3100
        %v3130 = vpack.c.b16 %v3103, %v3102
        %v3131 = vpack.c.b16 %v3105, %v3104
        %v3132 = vpack.c.b16 %v3107, %v3106
        %v3133 = vpack.c.b16 %v3109, %v3108
        %v3134 = vpack.c.b16 %v3111, %v3110
        %v3135 = vpack.c.b16 %v3113, %v3112
        %v3136 = vpack.c.b16 %v3115, %v3114
        %v3137 = vpack.c.b16 %v3117, %v3116
        %v3138 = vpack.c.b16 %v3119, %v3118
        %v3139 = vpack.c.b16 %v3121, %v3120
        %v3140 = vpack.c.b16 %v3123, %v3122
        %v3158 = vld [vmem:[#allocation8] sm:$0xf]
        %v3159 = vld [vmem:[#allocation8 + $0x4] sm:$0xf]
        %v3160 = vld [vmem:[#allocation8 + $0x8] sm:$0xf]
        %v3161 = vld [vmem:[#allocation8 + $0xc] sm:$0xf]
        %v3162 = vld [vmem:[#allocation8 + $0x10] sm:$0xf]
        %v3163 = vld [vmem:[#allocation8 + $0x14] sm:$0xf]
        %v3164 = vld [vmem:[#allocation8 + $0x18] sm:$0xf]
        %v3165 = vld [vmem:[#allocation8 + $0x1c] sm:$0xf]
        %v3166 = vld [vmem:[#allocation8 + $0x20] sm:$0xf]
        %v3167 = vld [vmem:[#allocation8 + $0x24] sm:$0xf]
        %v3168 = vld [vmem:[#allocation8 + $0x28] sm:$0xf]
        %v3169 = vld [vmem:[#allocation8 + $0x2c] sm:$0xf]
        %v3170 = vld [vmem:[#allocation8 + $0x30] sm:$0xf]
        %v3171 = vld [vmem:[#allocation8 + $0x34] sm:$0xf]
        %v3172 = vld [vmem:[#allocation8 + $0x38] sm:$0xf]
        %v3173 = vld [vmem:[#allocation8 + $0x3c] sm:$0xf]
        %v3174 = vld [vmem:[#allocation8 + $0x40] sm:$0xf]
        %v3175 = vld [vmem:[#allocation8 + $0x44] sm:$0xf]
        %v3176 = vld [vmem:[#allocation8 + $0x48] sm:$0xf]
        %v3177 = vld [vmem:[#allocation8 + $0x4c] sm:$0xf]
        %v3178 = vld [vmem:[#allocation8 + $0x50] sm:$0xf]
        %v3179 = vld [vmem:[#allocation8 + $0x54] sm:$0xf]
        %v3180 = vld [vmem:[#allocation8 + $0x58] sm:$0xf]
        %v3181 = vld [vmem:[#allocation8 + $0x5c] sm:$0xf]
        %v3182 = vld [vmem:[#allocation8 + $0x60] sm:$0xf]
        %v3183 = vld [vmem:[#allocation8 + $0x64] sm:$0xf]
        %v3184 = vld [vmem:[#allocation8 + $0x68] sm:$0xf]
        %v3185 = vld [vmem:[#allocation8 + $0x6c] sm:$0xf]
        %v3186 = vld [vmem:[#allocation8 + $0x70] sm:$0xf]
        %v3187 = vld [vmem:[#allocation8 + $0x74] sm:$0xf]
        %v3188 = vld [vmem:[#allocation8 + $0x78] sm:$0xf]
        %v3189 = vld [vmem:[#allocation8 + $0x7c] sm:$0xf]
        %v3190 = vld [vmem:[#allocation8 + $0x80] sm:$0xf]
        %v3191 = vld [vmem:[#allocation8 + $0x84] sm:$0xf]
        %v3192 = vld [vmem:[#allocation8 + $0x88] sm:$0xf]
        %v3193 = vld [vmem:[#allocation8 + $0x8c] sm:$0xf]
        %v3194 = vld [vmem:[#allocation8 + $0x90] sm:$0xf]
        %v3195 = vld [vmem:[#allocation8 + $0x94] sm:$0xf]
        %v3196 = vld [vmem:[#allocation8 + $0x98] sm:$0xf]
        %v3197 = vld [vmem:[#allocation8 + $0x9c] sm:$0xf]
        %v3198 = vld [vmem:[#allocation8 + $0xa0] sm:$0xf]
        %v3199 = vld [vmem:[#allocation8 + $0xa4] sm:$0xf]
        %v3200 = vld [vmem:[#allocation8 + $0xa8] sm:$0xf]
        %v3201 = vld [vmem:[#allocation8 + $0xac] sm:$0xf]
        %v3202 = vld [vmem:[#allocation8 + $0xb0] sm:$0xf]
        %v3203 = vld [vmem:[#allocation8 + $0xb4] sm:$0xf]
        %v3204 = vld [vmem:[#allocation8 + $0xb8] sm:$0xf]
        %v3205 = vld [vmem:[#allocation8 + $0xbc] sm:$0xf]
        %s3206 = scalar_lea.vmem [#allocation8], 192
        %v3207 = vld [vmem:[%s3206] sm:$0xf]
        %v3208 = vld [vmem:[%s3206 + $0x4] sm:$0xf]
        %v3209 = vld [vmem:[%s3206 + $0x8] sm:$0xf]
        %v3210 = vld [vmem:[%s3206 + $0xc] sm:$0xf]
        %v3211 = vld [vmem:[%s3206 + $0x10] sm:$0xf]
        %v3212 = vld [vmem:[%s3206 + $0x14] sm:$0xf]
        %v3213 = vld [vmem:[%s3206 + $0x18] sm:$0xf]
        %v3214 = vld [vmem:[%s3206 + $0x1c] sm:$0xf]
        %v3215 = vld [vmem:[%s3206 + $0x20] sm:$0xf]
        %v3216 = vld [vmem:[%s3206 + $0x24] sm:$0xf]
        %v3217 = vld [vmem:[%s3206 + $0x28] sm:$0xf]
        %v3218 = vld [vmem:[%s3206 + $0x2c] sm:$0xf]
        %v3219 = vld [vmem:[%s3206 + $0x30] sm:$0xf]
        %v3220 = vld [vmem:[%s3206 + $0x34] sm:$0xf]
        %v3221 = vld [vmem:[%s3206 + $0x38] sm:$0xf]
        %v3222 = vld [vmem:[%s3206 + $0x3c] sm:$0xf]
        %v3223 = vld [vmem:[%s3206 + $0x40] sm:$0xf]
        %v3224 = vld [vmem:[%s3206 + $0x44] sm:$0xf]
        %v3225 = vld [vmem:[%s3206 + $0x48] sm:$0xf]
        %v3226 = vld [vmem:[%s3206 + $0x4c] sm:$0xf]
        %v3227 = vld [vmem:[%s3206 + $0x50] sm:$0xf]
        %v3228 = vld [vmem:[%s3206 + $0x54] sm:$0xf]
        %v3229 = vld [vmem:[%s3206 + $0x58] sm:$0xf]
        %v3230 = vld [vmem:[%s3206 + $0x5c] sm:$0xf]
        %v3231 = vld [vmem:[%s3206 + $0x60] sm:$0xf]
        %v3232 = vld [vmem:[%s3206 + $0x64] sm:$0xf]
        %v3233 = vld [vmem:[%s3206 + $0x68] sm:$0xf]
        %v3234 = vld [vmem:[%s3206 + $0x6c] sm:$0xf]
        %v3235 = vld [vmem:[%s3206 + $0x70] sm:$0xf]
        %v3236 = vld [vmem:[%s3206 + $0x74] sm:$0xf]
        %v3237 = vld [vmem:[%s3206 + $0x78] sm:$0xf]
        %v3238 = vld [vmem:[%s3206 + $0x7c] sm:$0xf]
        %v3239 = vld [vmem:[%s3206 + $0x80] sm:$0xf]
        %v3240 = vld [vmem:[%s3206 + $0x84] sm:$0xf]
        %v3241 = vld [vmem:[%s3206 + $0x88] sm:$0xf]
        %v3242 = vld [vmem:[%s3206 + $0x8c] sm:$0xf]
        %v3243 = vld [vmem:[%s3206 + $0x90] sm:$0xf]
        %v3244 = vld [vmem:[%s3206 + $0x94] sm:$0xf]
        %v3245 = vld [vmem:[%s3206 + $0x98] sm:$0xf]
        %v3246 = vld [vmem:[%s3206 + $0x9c] sm:$0xf]
        %v3247 = vld [vmem:[%s3206 + $0xa0] sm:$0xf]
        %v3248 = vld [vmem:[%s3206 + $0xa4] sm:$0xf]
        %v3249 = vld [vmem:[%s3206 + $0xa8] sm:$0xf]
        %v3250 = vld [vmem:[%s3206 + $0xac] sm:$0xf]
        %v3251 = vld [vmem:[%s3206 + $0xb0] sm:$0xf]
        %v3252 = vld [vmem:[%s3206 + $0xb4] sm:$0xf]
        %v3253 = vld [vmem:[%s3206 + $0xb8] sm:$0xf]
        %v3254 = vld [vmem:[%s3206 + $0xbc] sm:$0xf]
        %v3303 = vunpack.c.l.b16 %v3207
        %v3304 = vunpack.c.l.b16 %v3208
        %v3305 = vunpack.c.l.b16 %v3209
        %v3306 = vunpack.c.l.b16 %v3210
        %v3307 = vunpack.c.l.b16 %v3211
        %v3308 = vunpack.c.l.b16 %v3212
        %v3309 = vunpack.c.l.b16 %v3213
        %v3310 = vunpack.c.l.b16 %v3214
        %v3311 = vunpack.c.l.b16 %v3215
        %v3312 = vunpack.c.l.b16 %v3216
        %v3313 = vunpack.c.l.b16 %v3217
        %v3314 = vunpack.c.l.b16 %v3218
        %v3315 = vunpack.c.l.b16 %v3219
        %v3316 = vunpack.c.l.b16 %v3220
        %v3317 = vunpack.c.l.b16 %v3221
        %v3318 = vunpack.c.l.b16 %v3222
        %v3319 = vunpack.c.l.b16 %v3223
        %v3320 = vunpack.c.l.b16 %v3224
        %v3321 = vunpack.c.l.b16 %v3225
        %v3322 = vunpack.c.l.b16 %v3226
        %v3323 = vunpack.c.l.b16 %v3227
        %v3324 = vunpack.c.l.b16 %v3228
        %v3325 = vunpack.c.l.b16 %v3229
        %v3326 = vunpack.c.l.b16 %v3230
        %v3327 = vunpack.c.l.b16 %v3231
        %v3328 = vunpack.c.l.b16 %v3232
        %v3329 = vunpack.c.l.b16 %v3233
        %v3330 = vunpack.c.l.b16 %v3234
        %v3331 = vunpack.c.l.b16 %v3235
        %v3332 = vunpack.c.l.b16 %v3236
        %v3333 = vunpack.c.l.b16 %v3237
        %v3334 = vunpack.c.l.b16 %v3238
        %v3335 = vunpack.c.l.b16 %v3239
        %v3336 = vunpack.c.l.b16 %v3240
        %v3337 = vunpack.c.l.b16 %v3241
        %v3338 = vunpack.c.l.b16 %v3242
        %v3339 = vunpack.c.l.b16 %v3243
        %v3340 = vunpack.c.l.b16 %v3244
        %v3341 = vunpack.c.l.b16 %v3245
        %v3342 = vunpack.c.l.b16 %v3246
        %v3343 = vunpack.c.l.b16 %v3247
        %v3344 = vunpack.c.l.b16 %v3248
        %v3345 = vunpack.c.l.b16 %v3249
        %v3346 = vunpack.c.l.b16 %v3250
        %v3347 = vunpack.c.l.b16 %v3251
        %v3348 = vunpack.c.l.b16 %v3252
        %v3349 = vunpack.c.l.b16 %v3253
        %v3350 = vunpack.c.l.b16 %v3254
        %v3351 = vpack.c.b16 %v3304, %v3303
        %v3352 = vpack.c.b16 %v3306, %v3305
        %v3353 = vpack.c.b16 %v3308, %v3307
        %v3354 = vpack.c.b16 %v3310, %v3309
        %v3355 = vpack.c.b16 %v3312, %v3311
        %v3356 = vpack.c.b16 %v3314, %v3313
        %v3357 = vpack.c.b16 %v3316, %v3315
        %v3358 = vpack.c.b16 %v3318, %v3317
        %v3359 = vpack.c.b16 %v3320, %v3319
        %v3360 = vpack.c.b16 %v3322, %v3321
        %v3361 = vpack.c.b16 %v3324, %v3323
        %v3362 = vpack.c.b16 %v3326, %v3325
        %v3363 = vpack.c.b16 %v3328, %v3327
        %v3364 = vpack.c.b16 %v3330, %v3329
        %v3365 = vpack.c.b16 %v3332, %v3331
        %v3366 = vpack.c.b16 %v3334, %v3333
        %v3367 = vpack.c.b16 %v3336, %v3335
        %v3368 = vpack.c.b16 %v3338, %v3337
        %v3369 = vpack.c.b16 %v3340, %v3339
        %v3370 = vpack.c.b16 %v3342, %v3341
        %v3371 = vpack.c.b16 %v3344, %v3343
        %v3372 = vpack.c.b16 %v3346, %v3345
        %v3373 = vpack.c.b16 %v3348, %v3347
        %v3374 = vpack.c.b16 %v3350, %v3349
        %3399 = vmatpush.bf16.msra.mxu0 %v3358
        %3400 = vmatpush.bf16.msra.mxu0 %v3357
        %3401 = vmatpush.bf16.msra.mxu0 %v3356
        %3402 = vmatpush.bf16.msra.mxu0 %v3355
        %3403 = vmatpush.bf16.msra.mxu0 %v3354
        %3404 = vmatpush.bf16.msra.mxu0 %v3353
        %3405 = vmatpush.bf16.msra.mxu0 %v3352
        %3406 = vmatpush.bf16.msra.mxu0 %v3351
        %3407 = vmatmul.bf16.gmra.mxu0 %v2928
        %v3408 = vpop.f32.mrf.mxu0
        %v3409 = vadd.f32 0.0, %v3408
        %v3410 = vpop.f32.mrf.mxu0
        %v3411 = vadd.f32 0.0, %v3410
        %3412 = vmatmul.bf16.gmra.mxu0 %v2929
        %v3413 = vpop.f32.mrf.mxu0
        %v3414 = vadd.f32 0.0, %v3413
        %v3415 = vpop.f32.mrf.mxu0
        %v3416 = vadd.f32 0.0, %v3415
        %3417 = vmatmul.bf16.gmra.mxu0 %v2930
        %v3418 = vpop.f32.mrf.mxu0
        %v3419 = vadd.f32 0.0, %v3418
        %v3420 = vpop.f32.mrf.mxu0
        %v3421 = vadd.f32 0.0, %v3420
        %3422 = vmatmul.bf16.gmra.mxu0 %v2931
        %v3423 = vpop.f32.mrf.mxu0
        %v3424 = vadd.f32 0.0, %v3423
        %v3425 = vpop.f32.mrf.mxu0
        %v3426 = vadd.f32 0.0, %v3425
        %3427 = vmatmul.bf16.gmra.mxu0 %v2932
        %v3428 = vpop.f32.mrf.mxu0
        %v3429 = vadd.f32 0.0, %v3428
        %v3430 = vpop.f32.mrf.mxu0
        %v3431 = vadd.f32 0.0, %v3430
        %3432 = vmatmul.bf16.gmra.mxu0 %v2933
        %v3433 = vpop.f32.mrf.mxu0
        %v3434 = vadd.f32 0.0, %v3433
        %v3435 = vpop.f32.mrf.mxu0
        %v3436 = vadd.f32 0.0, %v3435
        %3437 = vmatmul.bf16.gmra.mxu0 %v2934
        %v3438 = vpop.f32.mrf.mxu0
        %v3439 = vadd.f32 0.0, %v3438
        %v3440 = vpop.f32.mrf.mxu0
        %v3441 = vadd.f32 0.0, %v3440
        %3442 = vmatmul.bf16.gmra.mxu0 %v2935
        %v3443 = vpop.f32.mrf.mxu0
        %v3444 = vadd.f32 0.0, %v3443
        %v3445 = vpop.f32.mrf.mxu0
        %v3446 = vadd.f32 0.0, %v3445
        %3447 = vmatmul.bf16.gmra.mxu0 %v2936
        %v3448 = vpop.f32.mrf.mxu0
        %v3449 = vadd.f32 0.0, %v3448
        %v3450 = vpop.f32.mrf.mxu0
        %v3451 = vadd.f32 0.0, %v3450
        %3452 = vmatmul.bf16.gmra.mxu0 %v2937
        %v3453 = vpop.f32.mrf.mxu0
        %v3454 = vadd.f32 0.0, %v3453
        %v3455 = vpop.f32.mrf.mxu0
        %v3456 = vadd.f32 0.0, %v3455
        %3457 = vmatmul.bf16.gmra.mxu0 %v2938
        %v3458 = vpop.f32.mrf.mxu0
        %v3459 = vadd.f32 0.0, %v3458
        %v3460 = vpop.f32.mrf.mxu0
        %v3461 = vadd.f32 0.0, %v3460
        %3462 = vmatmul.bf16.gmra.mxu0 %v2939
        %v3463 = vpop.f32.mrf.mxu0
        %v3464 = vadd.f32 0.0, %v3463
        %v3465 = vpop.f32.mrf.mxu0
        %v3466 = vadd.f32 0.0, %v3465
        %3467 = vmatmul.bf16.gmra.mxu0 %v2940
        %v3468 = vpop.f32.mrf.mxu0
        %v3469 = vadd.f32 0.0, %v3468
        %v3470 = vpop.f32.mrf.mxu0
        %v3471 = vadd.f32 0.0, %v3470
        %3472 = vmatmul.bf16.gmra.mxu0 %v2941
        %v3473 = vpop.f32.mrf.mxu0
        %v3474 = vadd.f32 0.0, %v3473
        %v3475 = vpop.f32.mrf.mxu0
        %v3476 = vadd.f32 0.0, %v3475
        %3477 = vmatmul.bf16.gmra.mxu0 %v2942
        %v3478 = vpop.f32.mrf.mxu0
        %v3479 = vadd.f32 0.0, %v3478
        %v3480 = vpop.f32.mrf.mxu0
        %v3481 = vadd.f32 0.0, %v3480
        %3482 = vmatmul.bf16.gmra.mxu0 %v2943
        %v3483 = vpop.f32.mrf.mxu0
        %v3484 = vadd.f32 0.0, %v3483
        %v3485 = vpop.f32.mrf.mxu0
        %v3486 = vadd.f32 0.0, %v3485
        %3487 = vdwg.mxu0
        %3488 = vmatpush.bf16.msra.mxu0 %v3366
        %3489 = vmatpush.bf16.msra.mxu0 %v3365
        %3490 = vmatpush.bf16.msra.mxu0 %v3364
        %3491 = vmatpush.bf16.msra.mxu0 %v3363
        %3492 = vmatpush.bf16.msra.mxu0 %v3362
        %3493 = vmatpush.bf16.msra.mxu0 %v3361
        %3494 = vmatpush.bf16.msra.mxu0 %v3360
        %3495 = vmatpush.bf16.msra.mxu0 %v3359
        %3496 = vmatmul.bf16.gmra.mxu0 %v3026
        %v3497 = vpop.f32.mrf.mxu0
        %v3498 = vadd.f32 %v3409, %v3497
        %v3499 = vpop.f32.mrf.mxu0
        %v3500 = vadd.f32 %v3411, %v3499
        %3501 = vmatmul.bf16.gmra.mxu0 %v3027
        %v3502 = vpop.f32.mrf.mxu0
        %v3503 = vadd.f32 %v3414, %v3502
        %v3504 = vpop.f32.mrf.mxu0
        %v3505 = vadd.f32 %v3416, %v3504
        %3506 = vmatmul.bf16.gmra.mxu0 %v3028
        %v3507 = vpop.f32.mrf.mxu0
        %v3508 = vadd.f32 %v3419, %v3507
        %v3509 = vpop.f32.mrf.mxu0
        %v3510 = vadd.f32 %v3421, %v3509
        %3511 = vmatmul.bf16.gmra.mxu0 %v3029
        %v3512 = vpop.f32.mrf.mxu0
        %v3513 = vadd.f32 %v3424, %v3512
        %v3514 = vpop.f32.mrf.mxu0
        %v3515 = vadd.f32 %v3426, %v3514
        %3516 = vmatmul.bf16.gmra.mxu0 %v3030
        %v3517 = vpop.f32.mrf.mxu0
        %v3518 = vadd.f32 %v3429, %v3517
        %v3519 = vpop.f32.mrf.mxu0
        %v3520 = vadd.f32 %v3431, %v3519
        %3521 = vmatmul.bf16.gmra.mxu0 %v3031
        %v3522 = vpop.f32.mrf.mxu0
        %v3523 = vadd.f32 %v3434, %v3522
        %v3524 = vpop.f32.mrf.mxu0
        %v3525 = vadd.f32 %v3436, %v3524
        %3526 = vmatmul.bf16.gmra.mxu0 %v3032
        %v3527 = vpop.f32.mrf.mxu0
        %v3528 = vadd.f32 %v3439, %v3527
        %v3529 = vpop.f32.mrf.mxu0
        %v3530 = vadd.f32 %v3441, %v3529
        %3531 = vmatmul.bf16.gmra.mxu0 %v3033
        %v3532 = vpop.f32.mrf.mxu0
        %v3533 = vadd.f32 %v3444, %v3532
        %v3534 = vpop.f32.mrf.mxu0
        %v3535 = vadd.f32 %v3446, %v3534
        %3536 = vmatmul.bf16.gmra.mxu0 %v3034
        %v3537 = vpop.f32.mrf.mxu0
        %v3538 = vadd.f32 %v3449, %v3537
        %v3539 = vpop.f32.mrf.mxu0
        %v3540 = vadd.f32 %v3451, %v3539
        %3541 = vmatmul.bf16.gmra.mxu0 %v3035
        %v3542 = vpop.f32.mrf.mxu0
        %v3543 = vadd.f32 %v3454, %v3542
        %v3544 = vpop.f32.mrf.mxu0
        %v3545 = vadd.f32 %v3456, %v3544
        %3546 = vmatmul.bf16.gmra.mxu0 %v3036
        %v3547 = vpop.f32.mrf.mxu0
        %v3548 = vadd.f32 %v3459, %v3547
        %v3549 = vpop.f32.mrf.mxu0
        %v3550 = vadd.f32 %v3461, %v3549
        %3551 = vmatmul.bf16.gmra.mxu0 %v3037
        %v3552 = vpop.f32.mrf.mxu0
        %v3553 = vadd.f32 %v3464, %v3552
        %v3554 = vpop.f32.mrf.mxu0
        %v3555 = vadd.f32 %v3466, %v3554
        %3556 = vmatmul.bf16.gmra.mxu0 %v3038
        %v3557 = vpop.f32.mrf.mxu0
        %v3558 = vadd.f32 %v3469, %v3557
        %v3559 = vpop.f32.mrf.mxu0
        %v3560 = vadd.f32 %v3471, %v3559
        %3561 = vmatmul.bf16.gmra.mxu0 %v3039
        %v3562 = vpop.f32.mrf.mxu0
        %v3563 = vadd.f32 %v3474, %v3562
        %v3564 = vpop.f32.mrf.mxu0
        %v3565 = vadd.f32 %v3476, %v3564
        %3566 = vmatmul.bf16.gmra.mxu0 %v3040
        %v3567 = vpop.f32.mrf.mxu0
        %v3568 = vadd.f32 %v3479, %v3567
        %v3569 = vpop.f32.mrf.mxu0
        %v3570 = vadd.f32 %v3481, %v3569
        %3571 = vmatmul.bf16.gmra.mxu0 %v3041
        %v3572 = vpop.f32.mrf.mxu0
        %v3573 = vadd.f32 %v3484, %v3572
        %v3574 = vpop.f32.mrf.mxu0
        %v3575 = vadd.f32 %v3486, %v3574
        %3576 = vdwg.mxu0
        %3577 = vmatpush.bf16.msra.mxu0 %v3374
        %3578 = vmatpush.bf16.msra.mxu0 %v3373
        %3579 = vmatpush.bf16.msra.mxu0 %v3372
        %3580 = vmatpush.bf16.msra.mxu0 %v3371
        %3581 = vmatpush.bf16.msra.mxu0 %v3370
        %3582 = vmatpush.bf16.msra.mxu0 %v3369
        %3583 = vmatpush.bf16.msra.mxu0 %v3368
        %3584 = vmatpush.bf16.msra.mxu0 %v3367
        %3585 = vmatmul.bf16.gmra.mxu0 %v3125
        %v3586 = vpop.f32.mrf.mxu0
        %v3587 = vadd.f32 %v3498, %v3586
        %v3588 = vpop.f32.mrf.mxu0
        %v3589 = vadd.f32 %v3500, %v3588
        %3590 = vmatmul.bf16.gmra.mxu0 %v3126
        %v3591 = vpop.f32.mrf.mxu0
        %v3592 = vadd.f32 %v3503, %v3591
        %v3593 = vpop.f32.mrf.mxu0
        %v3594 = vadd.f32 %v3505, %v3593
        %3595 = vmatmul.bf16.gmra.mxu0 %v3127
        %v3596 = vpop.f32.mrf.mxu0
        %v3597 = vadd.f32 %v3508, %v3596
        %v3598 = vpop.f32.mrf.mxu0
        %v3599 = vadd.f32 %v3510, %v3598
        %3600 = vmatmul.bf16.gmra.mxu0 %v3128
        %v3601 = vpop.f32.mrf.mxu0
        %v3602 = vadd.f32 %v3513, %v3601
        %v3603 = vpop.f32.mrf.mxu0
        %v3604 = vadd.f32 %v3515, %v3603
        %3605 = vmatmul.bf16.gmra.mxu0 %v3129
        %v3606 = vpop.f32.mrf.mxu0
        %v3607 = vadd.f32 %v3518, %v3606
        %v3608 = vpop.f32.mrf.mxu0
        %v3609 = vadd.f32 %v3520, %v3608
        %3610 = vmatmul.bf16.gmra.mxu0 %v3130
        %v3611 = vpop.f32.mrf.mxu0
        %v3612 = vadd.f32 %v3523, %v3611
        %v3613 = vpop.f32.mrf.mxu0
        %v3614 = vadd.f32 %v3525, %v3613
        %3615 = vmatmul.bf16.gmra.mxu0 %v3131
        %v3616 = vpop.f32.mrf.mxu0
        %v3617 = vadd.f32 %v3528, %v3616
        %v3618 = vpop.f32.mrf.mxu0
        %v3619 = vadd.f32 %v3530, %v3618
        %3620 = vmatmul.bf16.gmra.mxu0 %v3132
        %v3621 = vpop.f32.mrf.mxu0
        %v3622 = vadd.f32 %v3533, %v3621
        %v3623 = vpop.f32.mrf.mxu0
        %v3624 = vadd.f32 %v3535, %v3623
        %3625 = vmatmul.bf16.gmra.mxu0 %v3133
        %v3626 = vpop.f32.mrf.mxu0
        %v3627 = vadd.f32 %v3538, %v3626
        %v3628 = vpop.f32.mrf.mxu0
        %v3629 = vadd.f32 %v3540, %v3628
        %3630 = vmatmul.bf16.gmra.mxu0 %v3134
        %v3631 = vpop.f32.mrf.mxu0
        %v3632 = vadd.f32 %v3543, %v3631
        %v3633 = vpop.f32.mrf.mxu0
        %v3634 = vadd.f32 %v3545, %v3633
        %3635 = vmatmul.bf16.gmra.mxu0 %v3135
        %v3636 = vpop.f32.mrf.mxu0
        %v3637 = vadd.f32 %v3548, %v3636
        %v3638 = vpop.f32.mrf.mxu0
        %v3639 = vadd.f32 %v3550, %v3638
        %3640 = vmatmul.bf16.gmra.mxu0 %v3136
        %v3641 = vpop.f32.mrf.mxu0
        %v3642 = vadd.f32 %v3553, %v3641
        %v3643 = vpop.f32.mrf.mxu0
        %v3644 = vadd.f32 %v3555, %v3643
        %3645 = vmatmul.bf16.gmra.mxu0 %v3137
        %v3646 = vpop.f32.mrf.mxu0
        %v3647 = vadd.f32 %v3558, %v3646
        %v3648 = vpop.f32.mrf.mxu0
        %v3649 = vadd.f32 %v3560, %v3648
        %3650 = vmatmul.bf16.gmra.mxu0 %v3138
        %v3651 = vpop.f32.mrf.mxu0
        %v3652 = vadd.f32 %v3563, %v3651
        %v3653 = vpop.f32.mrf.mxu0
        %v3654 = vadd.f32 %v3565, %v3653
        %3655 = vmatmul.bf16.gmra.mxu0 %v3139
        %v3656 = vpop.f32.mrf.mxu0
        %v3657 = vadd.f32 %v3568, %v3656
        %v3658 = vpop.f32.mrf.mxu0
        %v3659 = vadd.f32 %v3570, %v3658
        %3660 = vmatmul.bf16.gmra.mxu0 %v3140
        %v3661 = vpop.f32.mrf.mxu0
        %v3662 = vadd.f32 %v3573, %v3661
        %v3663 = vpop.f32.mrf.mxu0
        %v3664 = vadd.f32 %v3575, %v3663
        %3665 = vdwg.mxu0
        %v3714 = vunpack.c.l.b16 %v3158
        %v3715 = vunpack.c.l.b16 %v3159
        %v3716 = vunpack.c.l.b16 %v3160
        %v3717 = vunpack.c.l.b16 %v3161
        %v3718 = vunpack.c.l.b16 %v3162
        %v3719 = vunpack.c.l.b16 %v3163
        %v3720 = vunpack.c.l.b16 %v3164
        %v3721 = vunpack.c.l.b16 %v3165
        %v3722 = vunpack.c.l.b16 %v3166
        %v3723 = vunpack.c.l.b16 %v3167
        %v3724 = vunpack.c.l.b16 %v3168
        %v3725 = vunpack.c.l.b16 %v3169
        %v3726 = vunpack.c.l.b16 %v3170
        %v3727 = vunpack.c.l.b16 %v3171
        %v3728 = vunpack.c.l.b16 %v3172
        %v3729 = vunpack.c.l.b16 %v3173
        %v3730 = vunpack.c.l.b16 %v3174
        %v3731 = vunpack.c.l.b16 %v3175
        %v3732 = vunpack.c.l.b16 %v3176
        %v3733 = vunpack.c.l.b16 %v3177
        %v3734 = vunpack.c.l.b16 %v3178
        %v3735 = vunpack.c.l.b16 %v3179
        %v3736 = vunpack.c.l.b16 %v3180
        %v3737 = vunpack.c.l.b16 %v3181
        %v3738 = vunpack.c.l.b16 %v3182
        %v3739 = vunpack.c.l.b16 %v3183
        %v3740 = vunpack.c.l.b16 %v3184
        %v3741 = vunpack.c.l.b16 %v3185
        %v3742 = vunpack.c.l.b16 %v3186
        %v3743 = vunpack.c.l.b16 %v3187
        %v3744 = vunpack.c.l.b16 %v3188
        %v3745 = vunpack.c.l.b16 %v3189
        %v3746 = vunpack.c.l.b16 %v3190
        %v3747 = vunpack.c.l.b16 %v3191
        %v3748 = vunpack.c.l.b16 %v3192
        %v3749 = vunpack.c.l.b16 %v3193
        %v3750 = vunpack.c.l.b16 %v3194
        %v3751 = vunpack.c.l.b16 %v3195
        %v3752 = vunpack.c.l.b16 %v3196
        %v3753 = vunpack.c.l.b16 %v3197
        %v3754 = vunpack.c.l.b16 %v3198
        %v3755 = vunpack.c.l.b16 %v3199
        %v3756 = vunpack.c.l.b16 %v3200
        %v3757 = vunpack.c.l.b16 %v3201
        %v3758 = vunpack.c.l.b16 %v3202
        %v3759 = vunpack.c.l.b16 %v3203
        %v3760 = vunpack.c.l.b16 %v3204
        %v3761 = vunpack.c.l.b16 %v3205
        %v3762 = vpack.c.b16 %v3715, %v3714
        %v3763 = vpack.c.b16 %v3717, %v3716
        %v3764 = vpack.c.b16 %v3719, %v3718
        %v3765 = vpack.c.b16 %v3721, %v3720
        %v3766 = vpack.c.b16 %v3723, %v3722
        %v3767 = vpack.c.b16 %v3725, %v3724
        %v3768 = vpack.c.b16 %v3727, %v3726
        %v3769 = vpack.c.b16 %v3729, %v3728
        %v3770 = vpack.c.b16 %v3731, %v3730
        %v3771 = vpack.c.b16 %v3733, %v3732
        %v3772 = vpack.c.b16 %v3735, %v3734
        %v3773 = vpack.c.b16 %v3737, %v3736
        %v3774 = vpack.c.b16 %v3739, %v3738
        %v3775 = vpack.c.b16 %v3741, %v3740
        %v3776 = vpack.c.b16 %v3743, %v3742
        %v3777 = vpack.c.b16 %v3745, %v3744
        %v3778 = vpack.c.b16 %v3747, %v3746
        %v3779 = vpack.c.b16 %v3749, %v3748
        %v3780 = vpack.c.b16 %v3751, %v3750
        %v3781 = vpack.c.b16 %v3753, %v3752
        %v3782 = vpack.c.b16 %v3755, %v3754
        %v3783 = vpack.c.b16 %v3757, %v3756
        %v3784 = vpack.c.b16 %v3759, %v3758
        %v3785 = vpack.c.b16 %v3761, %v3760
        %3810 = vmatpush.bf16.msra.mxu0 %v3769
        %3811 = vmatpush.bf16.msra.mxu0 %v3768
        %3812 = vmatpush.bf16.msra.mxu0 %v3767
        %3813 = vmatpush.bf16.msra.mxu0 %v3766
        %3814 = vmatpush.bf16.msra.mxu0 %v3765
        %3815 = vmatpush.bf16.msra.mxu0 %v3764
        %3816 = vmatpush.bf16.msra.mxu0 %v3763
        %3817 = vmatpush.bf16.msra.mxu0 %v3762
        %3818 = vmatmul.bf16.gmra.mxu0 %v815
        %v3819 = vpop.f32.mrf.mxu0
        %v3820 = vadd.f32 %v3587, %v3819
        %v3821 = vpop.f32.mrf.mxu0
        %v3822 = vadd.f32 %v3589, %v3821
        %3823 = vmatmul.bf16.gmra.mxu0 %v2928
        %v3824 = vpop.f32.mrf.mxu0
        %v3825 = vadd.f32 %v3592, %v3824
        %v3826 = vpop.f32.mrf.mxu0
        %v3827 = vadd.f32 %v3594, %v3826
        %3828 = vmatmul.bf16.gmra.mxu0 %v2929
        %v3829 = vpop.f32.mrf.mxu0
        %v3830 = vadd.f32 %v3597, %v3829
        %v3831 = vpop.f32.mrf.mxu0
        %v3832 = vadd.f32 %v3599, %v3831
        %3833 = vmatmul.bf16.gmra.mxu0 %v2930
        %v3834 = vpop.f32.mrf.mxu0
        %v3835 = vadd.f32 %v3602, %v3834
        %v3836 = vpop.f32.mrf.mxu0
        %v3837 = vadd.f32 %v3604, %v3836
        %3838 = vmatmul.bf16.gmra.mxu0 %v2931
        %v3839 = vpop.f32.mrf.mxu0
        %v3840 = vadd.f32 %v3607, %v3839
        %v3841 = vpop.f32.mrf.mxu0
        %v3842 = vadd.f32 %v3609, %v3841
        %3843 = vmatmul.bf16.gmra.mxu0 %v2932
        %v3844 = vpop.f32.mrf.mxu0
        %v3845 = vadd.f32 %v3612, %v3844
        %v3846 = vpop.f32.mrf.mxu0
        %v3847 = vadd.f32 %v3614, %v3846
        %3848 = vmatmul.bf16.gmra.mxu0 %v2933
        %v3849 = vpop.f32.mrf.mxu0
        %v3850 = vadd.f32 %v3617, %v3849
        %v3851 = vpop.f32.mrf.mxu0
        %v3852 = vadd.f32 %v3619, %v3851
        %3853 = vmatmul.bf16.gmra.mxu0 %v2934
        %v3854 = vpop.f32.mrf.mxu0
        %v3855 = vadd.f32 %v3622, %v3854
        %v3856 = vpop.f32.mrf.mxu0
        %v3857 = vadd.f32 %v3624, %v3856
        %3858 = vmatmul.bf16.gmra.mxu0 %v2935
        %v3859 = vpop.f32.mrf.mxu0
        %v3860 = vadd.f32 %v3627, %v3859
        %v3861 = vpop.f32.mrf.mxu0
        %v3862 = vadd.f32 %v3629, %v3861
        %3863 = vmatmul.bf16.gmra.mxu0 %v2936
        %v3864 = vpop.f32.mrf.mxu0
        %v3865 = vadd.f32 %v3632, %v3864
        %v3866 = vpop.f32.mrf.mxu0
        %v3867 = vadd.f32 %v3634, %v3866
        %3868 = vmatmul.bf16.gmra.mxu0 %v2937
        %v3869 = vpop.f32.mrf.mxu0
        %v3870 = vadd.f32 %v3637, %v3869
        %v3871 = vpop.f32.mrf.mxu0
        %v3872 = vadd.f32 %v3639, %v3871
        %3873 = vmatmul.bf16.gmra.mxu0 %v2938
        %v3874 = vpop.f32.mrf.mxu0
        %v3875 = vadd.f32 %v3642, %v3874
        %v3876 = vpop.f32.mrf.mxu0
        %v3877 = vadd.f32 %v3644, %v3876
        %3878 = vmatmul.bf16.gmra.mxu0 %v2939
        %v3879 = vpop.f32.mrf.mxu0
        %v3880 = vadd.f32 %v3647, %v3879
        %v3881 = vpop.f32.mrf.mxu0
        %v3882 = vadd.f32 %v3649, %v3881
        %3883 = vmatmul.bf16.gmra.mxu0 %v2940
        %v3884 = vpop.f32.mrf.mxu0
        %v3885 = vadd.f32 %v3652, %v3884
        %v3886 = vpop.f32.mrf.mxu0
        %v3887 = vadd.f32 %v3654, %v3886
        %3888 = vmatmul.bf16.gmra.mxu0 %v2941
        %v3889 = vpop.f32.mrf.mxu0
        %v3890 = vadd.f32 %v3657, %v3889
        %v3891 = vpop.f32.mrf.mxu0
        %v3892 = vadd.f32 %v3659, %v3891
        %3893 = vmatmul.bf16.gmra.mxu0 %v2942
        %v3894 = vpop.f32.mrf.mxu0
        %v3895 = vadd.f32 %v3662, %v3894
        %v3896 = vpop.f32.mrf.mxu0
        %v3897 = vadd.f32 %v3664, %v3896
        %3898 = vdwg.mxu0
        %3899 = vmatpush.bf16.msra.mxu0 %v3777
        %3900 = vmatpush.bf16.msra.mxu0 %v3776
        %3901 = vmatpush.bf16.msra.mxu0 %v3775
        %3902 = vmatpush.bf16.msra.mxu0 %v3774
        %3903 = vmatpush.bf16.msra.mxu0 %v3773
        %3904 = vmatpush.bf16.msra.mxu0 %v3772
        %3905 = vmatpush.bf16.msra.mxu0 %v3771
        %3906 = vmatpush.bf16.msra.mxu0 %v3770
        %3907 = vmatmul.bf16.gmra.mxu0 %v917
        %v3908 = vpop.f32.mrf.mxu0
        %v3909 = vadd.f32 %v3820, %v3908
        %v3910 = vpop.f32.mrf.mxu0
        %v3911 = vadd.f32 %v3822, %v3910
        %3912 = vmatmul.bf16.gmra.mxu0 %v3026
        %v3913 = vpop.f32.mrf.mxu0
        %v3914 = vadd.f32 %v3825, %v3913
        %v3915 = vpop.f32.mrf.mxu0
        %v3916 = vadd.f32 %v3827, %v3915
        %3917 = vmatmul.bf16.gmra.mxu0 %v3027
        %v3918 = vpop.f32.mrf.mxu0
        %v3919 = vadd.f32 %v3830, %v3918
        %v3920 = vpop.f32.mrf.mxu0
        %v3921 = vadd.f32 %v3832, %v3920
        %3922 = vmatmul.bf16.gmra.mxu0 %v3028
        %v3923 = vpop.f32.mrf.mxu0
        %v3924 = vadd.f32 %v3835, %v3923
        %v3925 = vpop.f32.mrf.mxu0
        %v3926 = vadd.f32 %v3837, %v3925
        %3927 = vmatmul.bf16.gmra.mxu0 %v3029
        %v3928 = vpop.f32.mrf.mxu0
        %v3929 = vadd.f32 %v3840, %v3928
        %v3930 = vpop.f32.mrf.mxu0
        %v3931 = vadd.f32 %v3842, %v3930
        %3932 = vmatmul.bf16.gmra.mxu0 %v3030
        %v3933 = vpop.f32.mrf.mxu0
        %v3934 = vadd.f32 %v3845, %v3933
        %v3935 = vpop.f32.mrf.mxu0
        %v3936 = vadd.f32 %v3847, %v3935
        %3937 = vmatmul.bf16.gmra.mxu0 %v3031
        %v3938 = vpop.f32.mrf.mxu0
        %v3939 = vadd.f32 %v3850, %v3938
        %v3940 = vpop.f32.mrf.mxu0
        %v3941 = vadd.f32 %v3852, %v3940
        %3942 = vmatmul.bf16.gmra.mxu0 %v3032
        %v3943 = vpop.f32.mrf.mxu0
        %v3944 = vadd.f32 %v3855, %v3943
        %v3945 = vpop.f32.mrf.mxu0
        %v3946 = vadd.f32 %v3857, %v3945
        %3947 = vmatmul.bf16.gmra.mxu0 %v3033
        %v3948 = vpop.f32.mrf.mxu0
        %v3949 = vadd.f32 %v3860, %v3948
        %v3950 = vpop.f32.mrf.mxu0
        %v3951 = vadd.f32 %v3862, %v3950
        %3952 = vmatmul.bf16.gmra.mxu0 %v3034
        %v3953 = vpop.f32.mrf.mxu0
        %v3954 = vadd.f32 %v3865, %v3953
        %v3955 = vpop.f32.mrf.mxu0
        %v3956 = vadd.f32 %v3867, %v3955
        %3957 = vmatmul.bf16.gmra.mxu0 %v3035
        %v3958 = vpop.f32.mrf.mxu0
        %v3959 = vadd.f32 %v3870, %v3958
        %v3960 = vpop.f32.mrf.mxu0
        %v3961 = vadd.f32 %v3872, %v3960
        %3962 = vmatmul.bf16.gmra.mxu0 %v3036
        %v3963 = vpop.f32.mrf.mxu0
        %v3964 = vadd.f32 %v3875, %v3963
        %v3965 = vpop.f32.mrf.mxu0
        %v3966 = vadd.f32 %v3877, %v3965
        %3967 = vmatmul.bf16.gmra.mxu0 %v3037
        %v3968 = vpop.f32.mrf.mxu0
        %v3969 = vadd.f32 %v3880, %v3968
        %v3970 = vpop.f32.mrf.mxu0
        %v3971 = vadd.f32 %v3882, %v3970
        %3972 = vmatmul.bf16.gmra.mxu0 %v3038
        %v3973 = vpop.f32.mrf.mxu0
        %v3974 = vadd.f32 %v3885, %v3973
        %v3975 = vpop.f32.mrf.mxu0
        %v3976 = vadd.f32 %v3887, %v3975
        %3977 = vmatmul.bf16.gmra.mxu0 %v3039
        %v3978 = vpop.f32.mrf.mxu0
        %v3979 = vadd.f32 %v3890, %v3978
        %v3980 = vpop.f32.mrf.mxu0
        %v3981 = vadd.f32 %v3892, %v3980
        %3982 = vmatmul.bf16.gmra.mxu0 %v3040
        %v3983 = vpop.f32.mrf.mxu0
        %v3984 = vadd.f32 %v3895, %v3983
        %v3985 = vpop.f32.mrf.mxu0
        %v3986 = vadd.f32 %v3897, %v3985
        %3987 = vdwg.mxu0
        %3988 = vmatpush.bf16.msra.mxu0 %v3785
        %3989 = vmatpush.bf16.msra.mxu0 %v3784
        %3990 = vmatpush.bf16.msra.mxu0 %v3783
        %3991 = vmatpush.bf16.msra.mxu0 %v3782
        %3992 = vmatpush.bf16.msra.mxu0 %v3781
        %3993 = vmatpush.bf16.msra.mxu0 %v3780
        %3994 = vmatpush.bf16.msra.mxu0 %v3779
        %3995 = vmatpush.bf16.msra.mxu0 %v3778
        %3996 = vmatmul.bf16.gmra.mxu0 %v3124
        %v3997 = vpop.f32.mrf.mxu0
        %v3998 = vadd.f32 %v3909, %v3997
        %v3999 = vpop.f32.mrf.mxu0
        %v4000 = vadd.f32 %v3911, %v3999
        %4001 = vmatmul.bf16.gmra.mxu0 %v3125
        %v4002 = vpop.f32.mrf.mxu0
        %v4003 = vadd.f32 %v3914, %v4002
        %v4004 = vpop.f32.mrf.mxu0
        %v4005 = vadd.f32 %v3916, %v4004
        %4006 = vmatmul.bf16.gmra.mxu0 %v3126
        %v4007 = vpop.f32.mrf.mxu0
        %v4008 = vadd.f32 %v3919, %v4007
        %v4009 = vpop.f32.mrf.mxu0
        %v4010 = vadd.f32 %v3921, %v4009
        %4011 = vmatmul.bf16.gmra.mxu0 %v3127
        %v4012 = vpop.f32.mrf.mxu0
        %v4013 = vadd.f32 %v3924, %v4012
        %v4014 = vpop.f32.mrf.mxu0
        %v4015 = vadd.f32 %v3926, %v4014
        %4016 = vmatmul.bf16.gmra.mxu0 %v3128
        %v4017 = vpop.f32.mrf.mxu0
        %v4018 = vadd.f32 %v3929, %v4017
        %v4019 = vpop.f32.mrf.mxu0
        %v4020 = vadd.f32 %v3931, %v4019
        %4021 = vmatmul.bf16.gmra.mxu0 %v3129
        %v4022 = vpop.f32.mrf.mxu0
        %v4023 = vadd.f32 %v3934, %v4022
        %v4024 = vpop.f32.mrf.mxu0
        %v4025 = vadd.f32 %v3936, %v4024
        %4026 = vmatmul.bf16.gmra.mxu0 %v3130
        %v4027 = vpop.f32.mrf.mxu0
        %v4028 = vadd.f32 %v3939, %v4027
        %v4029 = vpop.f32.mrf.mxu0
        %v4030 = vadd.f32 %v3941, %v4029
        %4031 = vmatmul.bf16.gmra.mxu0 %v3131
        %v4032 = vpop.f32.mrf.mxu0
        %v4033 = vadd.f32 %v3944, %v4032
        %v4034 = vpop.f32.mrf.mxu0
        %v4035 = vadd.f32 %v3946, %v4034
        %4036 = vmatmul.bf16.gmra.mxu0 %v3132
        %v4037 = vpop.f32.mrf.mxu0
        %v4038 = vadd.f32 %v3949, %v4037
        %v4039 = vpop.f32.mrf.mxu0
        %v4040 = vadd.f32 %v3951, %v4039
        %4041 = vmatmul.bf16.gmra.mxu0 %v3133
        %v4042 = vpop.f32.mrf.mxu0
        %v4043 = vadd.f32 %v3954, %v4042
        %v4044 = vpop.f32.mrf.mxu0
        %v4045 = vadd.f32 %v3956, %v4044
        %4046 = vmatmul.bf16.gmra.mxu0 %v3134
        %v4047 = vpop.f32.mrf.mxu0
        %v4048 = vadd.f32 %v3959, %v4047
        %v4049 = vpop.f32.mrf.mxu0
        %v4050 = vadd.f32 %v3961, %v4049
        %4051 = vmatmul.bf16.gmra.mxu0 %v3135
        %v4052 = vpop.f32.mrf.mxu0
        %v4053 = vadd.f32 %v3964, %v4052
        %v4054 = vpop.f32.mrf.mxu0
        %v4055 = vadd.f32 %v3966, %v4054
        %4056 = vmatmul.bf16.gmra.mxu0 %v3136
        %v4057 = vpop.f32.mrf.mxu0
        %v4058 = vadd.f32 %v3969, %v4057
        %v4059 = vpop.f32.mrf.mxu0
        %v4060 = vadd.f32 %v3971, %v4059
        %4061 = vmatmul.bf16.gmra.mxu0 %v3137
        %v4062 = vpop.f32.mrf.mxu0
        %v4063 = vadd.f32 %v3974, %v4062
        %v4064 = vpop.f32.mrf.mxu0
        %v4065 = vadd.f32 %v3976, %v4064
        %4066 = vmatmul.bf16.gmra.mxu0 %v3138
        %v4067 = vpop.f32.mrf.mxu0
        %v4068 = vadd.f32 %v3979, %v4067
        %v4069 = vpop.f32.mrf.mxu0
        %v4070 = vadd.f32 %v3981, %v4069
        %4071 = vmatmul.bf16.gmra.mxu0 %v3139
        %v4072 = vpop.f32.mrf.mxu0
        %v4073 = vadd.f32 %v3984, %v4072
        %v4074 = vpop.f32.mrf.mxu0
        %v4075 = vadd.f32 %v3986, %v4074
        %4076 = vdwg.mxu0
        %s4077 = scalar_lea.vmem [#allocation8], 384
        %v4078 = vld [vmem:[%s4077] sm:$0xf]
        %v4079 = vld [vmem:[%s4077 + $0x4] sm:$0xf]
        %v4080 = vld [vmem:[%s4077 + $0x8] sm:$0xf]
        %v4081 = vld [vmem:[%s4077 + $0xc] sm:$0xf]
        %v4082 = vld [vmem:[%s4077 + $0x10] sm:$0xf]
        %v4083 = vld [vmem:[%s4077 + $0x14] sm:$0xf]
        %v4084 = vld [vmem:[%s4077 + $0x18] sm:$0xf]
        %v4085 = vld [vmem:[%s4077 + $0x1c] sm:$0xf]
        %v4086 = vld [vmem:[%s4077 + $0x20] sm:$0xf]
        %v4087 = vld [vmem:[%s4077 + $0x24] sm:$0xf]
        %v4088 = vld [vmem:[%s4077 + $0x28] sm:$0xf]
        %v4089 = vld [vmem:[%s4077 + $0x2c] sm:$0xf]
        %v4090 = vld [vmem:[%s4077 + $0x30] sm:$0xf]
        %v4091 = vld [vmem:[%s4077 + $0x34] sm:$0xf]
        %v4092 = vld [vmem:[%s4077 + $0x38] sm:$0xf]
        %v4093 = vld [vmem:[%s4077 + $0x3c] sm:$0xf]
        %v4094 = vld [vmem:[%s4077 + $0x40] sm:$0xf]
        %v4095 = vld [vmem:[%s4077 + $0x44] sm:$0xf]
        %v4096 = vld [vmem:[%s4077 + $0x48] sm:$0xf]
        %v4097 = vld [vmem:[%s4077 + $0x4c] sm:$0xf]
        %v4098 = vld [vmem:[%s4077 + $0x50] sm:$0xf]
        %v4099 = vld [vmem:[%s4077 + $0x54] sm:$0xf]
        %v4100 = vld [vmem:[%s4077 + $0x58] sm:$0xf]
        %v4101 = vld [vmem:[%s4077 + $0x5c] sm:$0xf]
        %v4102 = vld [vmem:[%s4077 + $0x60] sm:$0xf]
        %v4103 = vld [vmem:[%s4077 + $0x64] sm:$0xf]
        %v4104 = vld [vmem:[%s4077 + $0x68] sm:$0xf]
        %v4105 = vld [vmem:[%s4077 + $0x6c] sm:$0xf]
        %v4106 = vld [vmem:[%s4077 + $0x70] sm:$0xf]
        %v4107 = vld [vmem:[%s4077 + $0x74] sm:$0xf]
        %v4108 = vld [vmem:[%s4077 + $0x78] sm:$0xf]
        %v4109 = vld [vmem:[%s4077 + $0x7c] sm:$0xf]
        %v4110 = vld [vmem:[%s4077 + $0x80] sm:$0xf]
        %v4111 = vld [vmem:[%s4077 + $0x84] sm:$0xf]
        %v4112 = vld [vmem:[%s4077 + $0x88] sm:$0xf]
        %v4113 = vld [vmem:[%s4077 + $0x8c] sm:$0xf]
        %v4114 = vld [vmem:[%s4077 + $0x90] sm:$0xf]
        %v4115 = vld [vmem:[%s4077 + $0x94] sm:$0xf]
        %v4116 = vld [vmem:[%s4077 + $0x98] sm:$0xf]
        %v4117 = vld [vmem:[%s4077 + $0x9c] sm:$0xf]
        %v4118 = vld [vmem:[%s4077 + $0xa0] sm:$0xf]
        %v4119 = vld [vmem:[%s4077 + $0xa4] sm:$0xf]
        %v4120 = vld [vmem:[%s4077 + $0xa8] sm:$0xf]
        %v4121 = vld [vmem:[%s4077 + $0xac] sm:$0xf]
        %v4122 = vld [vmem:[%s4077 + $0xb0] sm:$0xf]
        %v4123 = vld [vmem:[%s4077 + $0xb4] sm:$0xf]
        %v4124 = vld [vmem:[%s4077 + $0xb8] sm:$0xf]
        %v4125 = vld [vmem:[%s4077 + $0xbc] sm:$0xf]
        %v4174 = vunpack.c.l.b16 %v4078
        %v4175 = vunpack.c.l.b16 %v4079
        %v4176 = vunpack.c.l.b16 %v4080
        %v4177 = vunpack.c.l.b16 %v4081
        %v4178 = vunpack.c.l.b16 %v4082
        %v4179 = vunpack.c.l.b16 %v4083
        %v4180 = vunpack.c.l.b16 %v4084
        %v4181 = vunpack.c.l.b16 %v4085
        %v4182 = vunpack.c.l.b16 %v4086
        %v4183 = vunpack.c.l.b16 %v4087
        %v4184 = vunpack.c.l.b16 %v4088
        %v4185 = vunpack.c.l.b16 %v4089
        %v4186 = vunpack.c.l.b16 %v4090
        %v4187 = vunpack.c.l.b16 %v4091
        %v4188 = vunpack.c.l.b16 %v4092
        %v4189 = vunpack.c.l.b16 %v4093
        %v4190 = vunpack.c.l.b16 %v4094
        %v4191 = vunpack.c.l.b16 %v4095
        %v4192 = vunpack.c.l.b16 %v4096
        %v4193 = vunpack.c.l.b16 %v4097
        %v4194 = vunpack.c.l.b16 %v4098
        %v4195 = vunpack.c.l.b16 %v4099
        %v4196 = vunpack.c.l.b16 %v4100
        %v4197 = vunpack.c.l.b16 %v4101
        %v4198 = vunpack.c.l.b16 %v4102
        %v4199 = vunpack.c.l.b16 %v4103
        %v4200 = vunpack.c.l.b16 %v4104
        %v4201 = vunpack.c.l.b16 %v4105
        %v4202 = vunpack.c.l.b16 %v4106
        %v4203 = vunpack.c.l.b16 %v4107
        %v4204 = vunpack.c.l.b16 %v4108
        %v4205 = vunpack.c.l.b16 %v4109
        %v4206 = vunpack.c.l.b16 %v4110
        %v4207 = vunpack.c.l.b16 %v4111
        %v4208 = vunpack.c.l.b16 %v4112
        %v4209 = vunpack.c.l.b16 %v4113
        %v4210 = vunpack.c.l.b16 %v4114
        %v4211 = vunpack.c.l.b16 %v4115
        %v4212 = vunpack.c.l.b16 %v4116
        %v4213 = vunpack.c.l.b16 %v4117
        %v4214 = vunpack.c.l.b16 %v4118
        %v4215 = vunpack.c.l.b16 %v4119
        %v4216 = vunpack.c.l.b16 %v4120
        %v4217 = vunpack.c.l.b16 %v4121
        %v4218 = vunpack.c.l.b16 %v4122
        %v4219 = vunpack.c.l.b16 %v4123
        %v4220 = vunpack.c.l.b16 %v4124
        %v4221 = vunpack.c.l.b16 %v4125
        %v4222 = vpack.c.b16 %v4175, %v4174
        %v4223 = vpack.c.b16 %v4177, %v4176
        %v4224 = vpack.c.b16 %v4179, %v4178
        %v4225 = vpack.c.b16 %v4181, %v4180
        %v4226 = vpack.c.b16 %v4183, %v4182
        %v4227 = vpack.c.b16 %v4185, %v4184
        %v4228 = vpack.c.b16 %v4187, %v4186
        %v4229 = vpack.c.b16 %v4189, %v4188
        %v4230 = vpack.c.b16 %v4191, %v4190
        %v4231 = vpack.c.b16 %v4193, %v4192
        %v4232 = vpack.c.b16 %v4195, %v4194
        %v4233 = vpack.c.b16 %v4197, %v4196
        %v4234 = vpack.c.b16 %v4199, %v4198
        %v4235 = vpack.c.b16 %v4201, %v4200
        %v4236 = vpack.c.b16 %v4203, %v4202
        %v4237 = vpack.c.b16 %v4205, %v4204
        %v4238 = vpack.c.b16 %v4207, %v4206
        %v4239 = vpack.c.b16 %v4209, %v4208
        %v4240 = vpack.c.b16 %v4211, %v4210
        %v4241 = vpack.c.b16 %v4213, %v4212
        %v4242 = vpack.c.b16 %v4215, %v4214
        %v4243 = vpack.c.b16 %v4217, %v4216
        %v4244 = vpack.c.b16 %v4219, %v4218
        %v4245 = vpack.c.b16 %v4221, %v4220
        %4270 = vmatpush.bf16.msra.mxu0 %v4229
        %4271 = vmatpush.bf16.msra.mxu0 %v4228
        %4272 = vmatpush.bf16.msra.mxu0 %v4227
        %4273 = vmatpush.bf16.msra.mxu0 %v4226
        %4274 = vmatpush.bf16.msra.mxu0 %v4225
        %4275 = vmatpush.bf16.msra.mxu0 %v4224
        %4276 = vmatpush.bf16.msra.mxu0 %v4223
        %4277 = vmatpush.bf16.msra.mxu0 %v4222
        %4278 = vmatmul.bf16.gmra.mxu0 %v2929
        %v4279 = vpop.f32.mrf.mxu0
        %v4280 = vadd.f32 0.0, %v4279
        %v4281 = vpop.f32.mrf.mxu0
        %v4282 = vadd.f32 0.0, %v4281
        %4283 = vmatmul.bf16.gmra.mxu0 %v2930
        %v4284 = vpop.f32.mrf.mxu0
        %v4285 = vadd.f32 0.0, %v4284
        %v4286 = vpop.f32.mrf.mxu0
        %v4287 = vadd.f32 0.0, %v4286
        %4288 = vmatmul.bf16.gmra.mxu0 %v2931
        %v4289 = vpop.f32.mrf.mxu0
        %v4290 = vadd.f32 0.0, %v4289
        %v4291 = vpop.f32.mrf.mxu0
        %v4292 = vadd.f32 0.0, %v4291
        %4293 = vmatmul.bf16.gmra.mxu0 %v2932
        %v4294 = vpop.f32.mrf.mxu0
        %v4295 = vadd.f32 0.0, %v4294
        %v4296 = vpop.f32.mrf.mxu0
        %v4297 = vadd.f32 0.0, %v4296
        %4298 = vmatmul.bf16.gmra.mxu0 %v2933
        %v4299 = vpop.f32.mrf.mxu0
        %v4300 = vadd.f32 0.0, %v4299
        %v4301 = vpop.f32.mrf.mxu0
        %v4302 = vadd.f32 0.0, %v4301
        %4303 = vmatmul.bf16.gmra.mxu0 %v2934
        %v4304 = vpop.f32.mrf.mxu0
        %v4305 = vadd.f32 0.0, %v4304
        %v4306 = vpop.f32.mrf.mxu0
        %v4307 = vadd.f32 0.0, %v4306
        %4308 = vmatmul.bf16.gmra.mxu0 %v2935
        %v4309 = vpop.f32.mrf.mxu0
        %v4310 = vadd.f32 0.0, %v4309
        %v4311 = vpop.f32.mrf.mxu0
        %v4312 = vadd.f32 0.0, %v4311
        %4313 = vmatmul.bf16.gmra.mxu0 %v2936
        %v4314 = vpop.f32.mrf.mxu0
        %v4315 = vadd.f32 0.0, %v4314
        %v4316 = vpop.f32.mrf.mxu0
        %v4317 = vadd.f32 0.0, %v4316
        %4318 = vmatmul.bf16.gmra.mxu0 %v2937
        %v4319 = vpop.f32.mrf.mxu0
        %v4320 = vadd.f32 0.0, %v4319
        %v4321 = vpop.f32.mrf.mxu0
        %v4322 = vadd.f32 0.0, %v4321
        %4323 = vmatmul.bf16.gmra.mxu0 %v2938
        %v4324 = vpop.f32.mrf.mxu0
        %v4325 = vadd.f32 0.0, %v4324
        %v4326 = vpop.f32.mrf.mxu0
        %v4327 = vadd.f32 0.0, %v4326
        %4328 = vmatmul.bf16.gmra.mxu0 %v2939
        %v4329 = vpop.f32.mrf.mxu0
        %v4330 = vadd.f32 0.0, %v4329
        %v4331 = vpop.f32.mrf.mxu0
        %v4332 = vadd.f32 0.0, %v4331
        %4333 = vmatmul.bf16.gmra.mxu0 %v2940
        %v4334 = vpop.f32.mrf.mxu0
        %v4335 = vadd.f32 0.0, %v4334
        %v4336 = vpop.f32.mrf.mxu0
        %v4337 = vadd.f32 0.0, %v4336
        %4338 = vmatmul.bf16.gmra.mxu0 %v2941
        %v4339 = vpop.f32.mrf.mxu0
        %v4340 = vadd.f32 0.0, %v4339
        %v4341 = vpop.f32.mrf.mxu0
        %v4342 = vadd.f32 0.0, %v4341
        %4343 = vmatmul.bf16.gmra.mxu0 %v2942
        %v4344 = vpop.f32.mrf.mxu0
        %v4345 = vadd.f32 0.0, %v4344
        %v4346 = vpop.f32.mrf.mxu0
        %v4347 = vadd.f32 0.0, %v4346
        %4348 = vmatmul.bf16.gmra.mxu0 %v2943
        %v4349 = vpop.f32.mrf.mxu0
        %v4350 = vadd.f32 0.0, %v4349
        %v4351 = vpop.f32.mrf.mxu0
        %v4352 = vadd.f32 0.0, %v4351
        %4353 = vmatmul.bf16.gmra.mxu0 %v2944
        %v4354 = vpop.f32.mrf.mxu0
        %v4355 = vadd.f32 0.0, %v4354
        %v4356 = vpop.f32.mrf.mxu0
        %v4357 = vadd.f32 0.0, %v4356
        %4358 = vdwg.mxu0
        %4359 = vmatpush.bf16.msra.mxu0 %v4237
        %4360 = vmatpush.bf16.msra.mxu0 %v4236
        %4361 = vmatpush.bf16.msra.mxu0 %v4235
        %4362 = vmatpush.bf16.msra.mxu0 %v4234
        %4363 = vmatpush.bf16.msra.mxu0 %v4233
        %4364 = vmatpush.bf16.msra.mxu0 %v4232
        %4365 = vmatpush.bf16.msra.mxu0 %v4231
        %4366 = vmatpush.bf16.msra.mxu0 %v4230
        %4367 = vmatmul.bf16.gmra.mxu0 %v3027
        %v4368 = vpop.f32.mrf.mxu0
        %v4369 = vadd.f32 %v4280, %v4368
        %v4370 = vpop.f32.mrf.mxu0
        %v4371 = vadd.f32 %v4282, %v4370
        %4372 = vmatmul.bf16.gmra.mxu0 %v3028
        %v4373 = vpop.f32.mrf.mxu0
        %v4374 = vadd.f32 %v4285, %v4373
        %v4375 = vpop.f32.mrf.mxu0
        %v4376 = vadd.f32 %v4287, %v4375
        %4377 = vmatmul.bf16.gmra.mxu0 %v3029
        %v4378 = vpop.f32.mrf.mxu0
        %v4379 = vadd.f32 %v4290, %v4378
        %v4380 = vpop.f32.mrf.mxu0
        %v4381 = vadd.f32 %v4292, %v4380
        %4382 = vmatmul.bf16.gmra.mxu0 %v3030
        %v4383 = vpop.f32.mrf.mxu0
        %v4384 = vadd.f32 %v4295, %v4383
        %v4385 = vpop.f32.mrf.mxu0
        %v4386 = vadd.f32 %v4297, %v4385
        %4387 = vmatmul.bf16.gmra.mxu0 %v3031
        %v4388 = vpop.f32.mrf.mxu0
        %v4389 = vadd.f32 %v4300, %v4388
        %v4390 = vpop.f32.mrf.mxu0
        %v4391 = vadd.f32 %v4302, %v4390
        %4392 = vmatmul.bf16.gmra.mxu0 %v3032
        %v4393 = vpop.f32.mrf.mxu0
        %v4394 = vadd.f32 %v4305, %v4393
        %v4395 = vpop.f32.mrf.mxu0
        %v4396 = vadd.f32 %v4307, %v4395
        %4397 = vmatmul.bf16.gmra.mxu0 %v3033
        %v4398 = vpop.f32.mrf.mxu0
        %v4399 = vadd.f32 %v4310, %v4398
        %v4400 = vpop.f32.mrf.mxu0
        %v4401 = vadd.f32 %v4312, %v4400
        %4402 = vmatmul.bf16.gmra.mxu0 %v3034
        %v4403 = vpop.f32.mrf.mxu0
        %v4404 = vadd.f32 %v4315, %v4403
        %v4405 = vpop.f32.mrf.mxu0
        %v4406 = vadd.f32 %v4317, %v4405
        %4407 = vmatmul.bf16.gmra.mxu0 %v3035
        %v4408 = vpop.f32.mrf.mxu0
        %v4409 = vadd.f32 %v4320, %v4408
        %v4410 = vpop.f32.mrf.mxu0
        %v4411 = vadd.f32 %v4322, %v4410
        %4412 = vmatmul.bf16.gmra.mxu0 %v3036
        %v4413 = vpop.f32.mrf.mxu0
        %v4414 = vadd.f32 %v4325, %v4413
        %v4415 = vpop.f32.mrf.mxu0
        %v4416 = vadd.f32 %v4327, %v4415
        %4417 = vmatmul.bf16.gmra.mxu0 %v3037
        %v4418 = vpop.f32.mrf.mxu0
        %v4419 = vadd.f32 %v4330, %v4418
        %v4420 = vpop.f32.mrf.mxu0
        %v4421 = vadd.f32 %v4332, %v4420
        %4422 = vmatmul.bf16.gmra.mxu0 %v3038
        %v4423 = vpop.f32.mrf.mxu0
        %v4424 = vadd.f32 %v4335, %v4423
        %v4425 = vpop.f32.mrf.mxu0
        %v4426 = vadd.f32 %v4337, %v4425
        %4427 = vmatmul.bf16.gmra.mxu0 %v3039
        %v4428 = vpop.f32.mrf.mxu0
        %v4429 = vadd.f32 %v4340, %v4428
        %v4430 = vpop.f32.mrf.mxu0
        %v4431 = vadd.f32 %v4342, %v4430
        %4432 = vmatmul.bf16.gmra.mxu0 %v3040
        %v4433 = vpop.f32.mrf.mxu0
        %v4434 = vadd.f32 %v4345, %v4433
        %v4435 = vpop.f32.mrf.mxu0
        %v4436 = vadd.f32 %v4347, %v4435
        %4437 = vmatmul.bf16.gmra.mxu0 %v3041
        %v4438 = vpop.f32.mrf.mxu0
        %v4439 = vadd.f32 %v4350, %v4438
        %v4440 = vpop.f32.mrf.mxu0
        %v4441 = vadd.f32 %v4352, %v4440
        %4442 = vmatmul.bf16.gmra.mxu0 %v917
        %v4443 = vpop.f32.mrf.mxu0
        %v4444 = vadd.f32 %v4355, %v4443
        %v4445 = vpop.f32.mrf.mxu0
        %v4446 = vadd.f32 %v4357, %v4445
        %4447 = vdwg.mxu0
        %4448 = vmatpush.bf16.msra.mxu0 %v4245
        %4449 = vmatpush.bf16.msra.mxu0 %v4244
        %4450 = vmatpush.bf16.msra.mxu0 %v4243
        %4451 = vmatpush.bf16.msra.mxu0 %v4242
        %4452 = vmatpush.bf16.msra.mxu0 %v4241
        %4453 = vmatpush.bf16.msra.mxu0 %v4240
        %4454 = vmatpush.bf16.msra.mxu0 %v4239
        %4455 = vmatpush.bf16.msra.mxu0 %v4238
        %4456 = vmatmul.bf16.gmra.mxu0 %v3126
        %v4457 = vpop.f32.mrf.mxu0
        %v4458 = vadd.f32 %v4369, %v4457
        %v4459 = vpop.f32.mrf.mxu0
        %v4460 = vadd.f32 %v4371, %v4459
        %4461 = vmatmul.bf16.gmra.mxu0 %v3127
        %v4462 = vpop.f32.mrf.mxu0
        %v4463 = vadd.f32 %v4374, %v4462
        %v4464 = vpop.f32.mrf.mxu0
        %v4465 = vadd.f32 %v4376, %v4464
        %4466 = vmatmul.bf16.gmra.mxu0 %v3128
        %v4467 = vpop.f32.mrf.mxu0
        %v4468 = vadd.f32 %v4379, %v4467
        %v4469 = vpop.f32.mrf.mxu0
        %v4470 = vadd.f32 %v4381, %v4469
        %4471 = vmatmul.bf16.gmra.mxu0 %v3129
        %v4472 = vpop.f32.mrf.mxu0
        %v4473 = vadd.f32 %v4384, %v4472
        %v4474 = vpop.f32.mrf.mxu0
        %v4475 = vadd.f32 %v4386, %v4474
        %4476 = vmatmul.bf16.gmra.mxu0 %v3130
        %v4477 = vpop.f32.mrf.mxu0
        %v4478 = vadd.f32 %v4389, %v4477
        %v4479 = vpop.f32.mrf.mxu0
        %v4480 = vadd.f32 %v4391, %v4479
        %4481 = vmatmul.bf16.gmra.mxu0 %v3131
        %v4482 = vpop.f32.mrf.mxu0
        %v4483 = vadd.f32 %v4394, %v4482
        %v4484 = vpop.f32.mrf.mxu0
        %v4485 = vadd.f32 %v4396, %v4484
        %4486 = vmatmul.bf16.gmra.mxu0 %v3132
        %v4487 = vpop.f32.mrf.mxu0
        %v4488 = vadd.f32 %v4399, %v4487
        %v4489 = vpop.f32.mrf.mxu0
        %v4490 = vadd.f32 %v4401, %v4489
        %4491 = vmatmul.bf16.gmra.mxu0 %v3133
        %v4492 = vpop.f32.mrf.mxu0
        %v4493 = vadd.f32 %v4404, %v4492
        %v4494 = vpop.f32.mrf.mxu0
        %v4495 = vadd.f32 %v4406, %v4494
        %4496 = vmatmul.bf16.gmra.mxu0 %v3134
        %v4497 = vpop.f32.mrf.mxu0
        %v4498 = vadd.f32 %v4409, %v4497
        %v4499 = vpop.f32.mrf.mxu0
        %v4500 = vadd.f32 %v4411, %v4499
        %4501 = vmatmul.bf16.gmra.mxu0 %v3135
        %v4502 = vpop.f32.mrf.mxu0
        %v4503 = vadd.f32 %v4414, %v4502
        %v4504 = vpop.f32.mrf.mxu0
        %v4505 = vadd.f32 %v4416, %v4504
        %4506 = vmatmul.bf16.gmra.mxu0 %v3136
        %v4507 = vpop.f32.mrf.mxu0
        %v4508 = vadd.f32 %v4419, %v4507
        %v4509 = vpop.f32.mrf.mxu0
        %v4510 = vadd.f32 %v4421, %v4509
        %4511 = vmatmul.bf16.gmra.mxu0 %v3137
        %v4512 = vpop.f32.mrf.mxu0
        %v4513 = vadd.f32 %v4424, %v4512
        %v4514 = vpop.f32.mrf.mxu0
        %v4515 = vadd.f32 %v4426, %v4514
        %4516 = vmatmul.bf16.gmra.mxu0 %v3138
        %v4517 = vpop.f32.mrf.mxu0
        %v4518 = vadd.f32 %v4429, %v4517
        %v4519 = vpop.f32.mrf.mxu0
        %v4520 = vadd.f32 %v4431, %v4519
        %4521 = vmatmul.bf16.gmra.mxu0 %v3139
        %v4522 = vpop.f32.mrf.mxu0
        %v4523 = vadd.f32 %v4434, %v4522
        %v4524 = vpop.f32.mrf.mxu0
        %v4525 = vadd.f32 %v4436, %v4524
        %4526 = vmatmul.bf16.gmra.mxu0 %v3140
        %v4527 = vpop.f32.mrf.mxu0
        %v4528 = vadd.f32 %v4439, %v4527
        %v4529 = vpop.f32.mrf.mxu0
        %v4530 = vadd.f32 %v4441, %v4529
        %4531 = vmatmul.bf16.gmra.mxu0 %v1038
        %v4532 = vpop.f32.mrf.mxu0
        %v4533 = vadd.f32 %v4444, %v4532
        %v4534 = vpop.f32.mrf.mxu0
        %v4535 = vadd.f32 %v4446, %v4534
        %4536 = vdwg.mxu0
        %v4537 = vadd.f32 %v3998, %v4458
        %v4538 = vadd.f32 %v4000, %v4460
        %v4539 = vadd.f32 %v4003, %v4463
        %v4540 = vadd.f32 %v4005, %v4465
        %v4541 = vadd.f32 %v4008, %v4468
        %v4542 = vadd.f32 %v4010, %v4470
        %v4543 = vadd.f32 %v4013, %v4473
        %v4544 = vadd.f32 %v4015, %v4475
        %v4545 = vadd.f32 %v4018, %v4478
        %v4546 = vadd.f32 %v4020, %v4480
        %v4547 = vadd.f32 %v4023, %v4483
        %v4548 = vadd.f32 %v4025, %v4485
        %v4549 = vadd.f32 %v4028, %v4488
        %v4550 = vadd.f32 %v4030, %v4490
        %v4551 = vadd.f32 %v4033, %v4493
        %v4552 = vadd.f32 %v4035, %v4495
        %v4553 = vadd.f32 %v4038, %v4498
        %v4554 = vadd.f32 %v4040, %v4500
        %v4555 = vadd.f32 %v4043, %v4503
        %v4556 = vadd.f32 %v4045, %v4505
        %v4557 = vadd.f32 %v4048, %v4508
        %v4558 = vadd.f32 %v4050, %v4510
        %v4559 = vadd.f32 %v4053, %v4513
        %v4560 = vadd.f32 %v4055, %v4515
        %v4561 = vadd.f32 %v4058, %v4518
        %v4562 = vadd.f32 %v4060, %v4520
        %v4563 = vadd.f32 %v4063, %v4523
        %v4564 = vadd.f32 %v4065, %v4525
        %v4565 = vadd.f32 %v4068, %v4528
        %v4566 = vadd.f32 %v4070, %v4530
        %v4567 = vadd.f32 %v4073, %v4533
        %v4568 = vadd.f32 %v4075, %v4535
        %v4569 = vadd.f32 %v4537, %v293
        %v4570 = vadd.f32 %v4538, %v294
        %v4571 = vadd.f32 %v4539, %v295
        %v4572 = vadd.f32 %v4540, %v296
        %v4573 = vadd.f32 %v4541, %v297
        %v4574 = vadd.f32 %v4542, %v298
        %v4575 = vadd.f32 %v4543, %v299
        %v4576 = vadd.f32 %v4544, %v300
        %v4577 = vadd.f32 %v4545, %v301
        %v4578 = vadd.f32 %v4546, %v302
        %v4579 = vadd.f32 %v4547, %v303
        %v4580 = vadd.f32 %v4548, %v304
        %v4581 = vadd.f32 %v4549, %v305
        %v4582 = vadd.f32 %v4550, %v306
        %v4583 = vadd.f32 %v4551, %v307
        %v4584 = vadd.f32 %v4552, %v308
        %v4585 = vadd.f32 %v4553, %v309
        %v4586 = vadd.f32 %v4554, %v310
        %v4587 = vadd.f32 %v4555, %v311
        %v4588 = vadd.f32 %v4556, %v312
        %v4589 = vadd.f32 %v4557, %v313
        %v4590 = vadd.f32 %v4558, %v314
        %v4591 = vadd.f32 %v4559, %v315
        %v4592 = vadd.f32 %v4560, %v316
        %v4593 = vadd.f32 %v4561, %v317
        %v4594 = vadd.f32 %v4562, %v318
        %v4595 = vadd.f32 %v4563, %v319
        %v4596 = vadd.f32 %v4564, %v320
        %v4597 = vadd.f32 %v4565, %v321
        %v4598 = vadd.f32 %v4566, %v322
        %v4599 = vadd.f32 %v4567, %v323
        %v4600 = vadd.f32 %v4568, %v324
        %4601 = vst [vmem:[%s292] sm:$0xff] %v4569
        %4602 = vst [vmem:[%s292 + $0x8] sm:$0xff] %v4570
        %4603 = vst [vmem:[%s292 + $0x10] sm:$0xff] %v4571
        %4604 = vst [vmem:[%s292 + $0x18] sm:$0xff] %v4572
        %4605 = vst [vmem:[%s292 + $0x20] sm:$0xff] %v4573
        %4606 = vst [vmem:[%s292 + $0x28] sm:$0xff] %v4574
        %4607 = vst [vmem:[%s292 + $0x30] sm:$0xff] %v4575
        %4608 = vst [vmem:[%s292 + $0x38] sm:$0xff] %v4576
        %4609 = vst [vmem:[%s292 + $0x40] sm:$0xff] %v4577
        %4610 = vst [vmem:[%s292 + $0x48] sm:$0xff] %v4578
        %4611 = vst [vmem:[%s292 + $0x50] sm:$0xff] %v4579
        %4612 = vst [vmem:[%s292 + $0x58] sm:$0xff] %v4580
        %4613 = vst [vmem:[%s292 + $0x60] sm:$0xff] %v4581
        %4614 = vst [vmem:[%s292 + $0x68] sm:$0xff] %v4582
        %4615 = vst [vmem:[%s292 + $0x70] sm:$0xff] %v4583
        %4616 = vst [vmem:[%s292 + $0x78] sm:$0xff] %v4584
        %4617 = vst [vmem:[%s292 + $0x80] sm:$0xff] %v4585
        %4618 = vst [vmem:[%s292 + $0x88] sm:$0xff] %v4586
        %4619 = vst [vmem:[%s292 + $0x90] sm:$0xff] %v4587
        %4620 = vst [vmem:[%s292 + $0x98] sm:$0xff] %v4588
        %4621 = vst [vmem:[%s292 + $0xa0] sm:$0xff] %v4589
        %4622 = vst [vmem:[%s292 + $0xa8] sm:$0xff] %v4590
        %4623 = vst [vmem:[%s292 + $0xb0] sm:$0xff] %v4591
        %4624 = vst [vmem:[%s292 + $0xb8] sm:$0xff] %v4592
        %4625 = vst [vmem:[%s292 + $0xc0] sm:$0xff] %v4593
        %4626 = vst [vmem:[%s292 + $0xc8] sm:$0xff] %v4594
        %4627 = vst [vmem:[%s292 + $0xd0] sm:$0xff] %v4595
        %4628 = vst [vmem:[%s292 + $0xd8] sm:$0xff] %v4596
        %4629 = vst [vmem:[%s292 + $0xe0] sm:$0xff] %v4597
        %4630 = vst [vmem:[%s292 + $0xe8] sm:$0xff] %v4598
        %4631 = vst [vmem:[%s292 + $0xf0] sm:$0xff] %v4599
        %4632 = vst [vmem:[%s292 + $0xf8] sm:$0xff] %v4600
        %s4633 = sand.u32 %s142, 1
        %s4634 = scalar_lea.sflag [#allocation4], %s4633
        %s4635 = sand.u32 %s142, 1
        %s4636 = smul.addr %s4635, 256
        %s4637 = scalar_lea.vmem [#allocation10], %s4636
        // Predicated region
        $region57: #{tpu_custom_call.1} parent=39 // pred_check
          %p4638 = pneg %p152
        $region58: #{tpu_custom_call.1} parent=39 // pred_check_branch
          %4640 = sbr.rel (%p4638) target = $region60
        $region59: #{tpu_custom_call.1} parent=39 // pred_region
          %4642 = vsyncadd %s4634, 0
          %s4643 = smul.addr %s24, 32
          %s4644 = smul.addr %s4643, 8
          %s4645 = scalar_lea.hbm %s5, %s4644
          %s4646 = sshll.u32 %s4637, 4
          %s4647 = int_to_ptr.vmem [resolvable:$true] %s4646
          %s4648 = sshll.u32 %s4645, 4
          %s4649 = int_to_ptr.hbm [resolvable:$true] %s4648
          %4654 = dma.vmem_to_hbm [thread:$0]  %s4647, 4096, %s4649, %s4634, 128, 128, 8
        $region60: #{tpu_custom_call.1} parent=39 // pred_fallthru
          _
      $region40: #{tpu_custom_call.1} parent=5 // pred_fallthru
        _
      %p4655 = scmp.le.s32.totalorder 2, %s19
      // Predicated region
      $region61: #{tpu_custom_call.1} parent=5 // pred_check
        %p4656 = pneg %p4655
      $region62: #{tpu_custom_call.1} parent=5 // pred_check_branch
        %4658 = sbr.rel (%p4656) target = $region64
      $region63: #{tpu_custom_call.1} parent=5 // pred_region
        %s4659 = ssub.s32 %s19, 2
        // Predicated region
        $region65: #{tpu_custom_call.1} parent=63 // pred_check
          %p4660 = pneg %p158
        $region66: #{tpu_custom_call.1} parent=63 // pred_check_branch
          %4662 = sbr.rel (%p4660) target = $region68
        $region67: #{tpu_custom_call.1} parent=63 // pred_region
          %s4663 = sand.u32 %s143, 1
          %s4664 = scalar_lea.sflag [#allocation4], %s4663
          %s4665 = sand.u32 %s143, 1
          %s4666 = smul.addr %s4665, 256
          %s4667 = scalar_lea.vmem [#allocation10], %s4666
          %4669 = dma.done %s4664, 4096
        $region68: #{tpu_custom_call.1} parent=63 // pred_fallthru
          _
      $region64: #{tpu_custom_call.1} parent=5 // pred_fallthru
        _
    $region6: #{tpu_custom_call.1} parent=1 // loop_footer
      %s23 = sadd.s32 1, %s19
    $region7: #{tpu_custom_call.1} parent=1 // loop_footer_branch
      %18 = sbr.rel target = $region3
    $region8: #{tpu_custom_call.1} parent=1 // loop_exit
      _
    %4670 = vsyncpa [#allocation3], 1
    %s4671 = scalar_lea.sflag [#allocation3], 1
    %4672 = vsyncpa %s4671, 1
    %4673 = vsyncpa [#allocation6], 1
    %4674 = vsyncpa [#allocation9], 1
    %4675 = vsyncpa [#allocation4], 1
    %s4676 = scalar_lea.sflag [#allocation4], 1
    %4677 = vsyncpa %s4676, 1

</llo_original>
